<compile_context>
chip_gen: v7x
topology: tpu7x:2x2x1
jax: 0.10.0
libtpu: 0.0.40
codegen_flags: <defaults>
</compile_context>

<pallas_src>
import functools

import jax
import jax.numpy as jnp
import numpy as np
from jax.experimental import pallas as pl
from jax.experimental.pallas import tpu as pltpu

LANE = 128
SUBLANE = 8


def _round_up(n, m):
    return (n + m - 1) // m * m


def _lstm_seq_kernel(ids_ref, embed_ref, w_x_ref, w_h_ref, b_ref, w_fc_ref, b_fc_ref,
                     h0_ref, c0_ref,
                     logits_ref, h_out_ref, c_out_ref,
                     *, seq_len, batch, bp, num_layers, hidden, vocab_p):
    """Whole-sequence multi-layer LSTM + Linear, weights VMEM-resident, state vreg-carried.

    ids_ref:    (T*B,) int32 in SMEM         token ids, step-major
    embed_ref:  (Vp, H)                      embedding table (rows >= V are zero)
    w_x_ref:    (L, H, 4H)                   W_ih^T, gate g in lanes [g*H,(g+1)*H)
    w_h_ref:    (L, H, 4H)                   W_hh^T, same gate blocking
    b_ref:      (L, 1, 4H)                   b_ih + b_hh
    w_fc_ref:   (H, Op)                      fc weight^T (lane-padded to Op)
    b_fc_ref:   (1, Op)
    h0/c0_ref:  (L, Bp, H)                   initial state (batch-padded)
    logits_ref: (T, Bp, Op)                  per-step logits
    h/c_out:    (L, Bp, H)                   final state (written once)
    """
    H = hidden
    # Hoisted iotas for the one-hot build (broadcast_in_dim is not CSE'd -> build once).
    row = jax.lax.broadcasted_iota(jnp.int32, (bp, vocab_p), 0)
    col = jax.lax.broadcasted_iota(jnp.int32, (bp, vocab_p), 1)

    def step(t, carry):
        hs, cs = carry

        # --- embedding lookup as a one-hot MXU matmul (ids read from SMEM) ---
        onehot = jnp.zeros((bp, vocab_p), jnp.float32)
        for b in range(batch):                              # batch is tiny & static
            tok = ids_ref[t * batch + b]
            onehot = onehot + jnp.where((row == b) & (col == tok), 1.0, 0.0)
        x = jnp.dot(onehot, embed_ref[...],
                    preferred_element_type=jnp.float32)     # (Bp, H)

        new_hs, new_cs = [], []
        for l in range(num_layers):                         # static unroll over layers
            h_prev, c_prev = hs[l], cs[l]
            # Two accumulated dots (no lane concat temp); gates densely packed in 4H lanes.
            gates = (jnp.dot(x, w_x_ref[l], preferred_element_type=jnp.float32)
                     + jnp.dot(h_prev, w_h_ref[l], preferred_element_type=jnp.float32)
                     + b_ref[l])                            # (Bp, 4H)
            i_g = jax.nn.sigmoid(gates[:, 0 * H:1 * H])
            f_g = jax.nn.sigmoid(gates[:, 1 * H:2 * H])
            g_g = jnp.tanh(gates[:, 2 * H:3 * H])
            o_g = jax.nn.sigmoid(gates[:, 3 * H:4 * H])
            c_new = f_g * c_prev + i_g * g_g
            h_new = o_g * jnp.tanh(c_new)
            new_hs.append(h_new)
            new_cs.append(c_new)
            x = h_new                                       # feed next layer (vreg value)
            # TODO(synk): LSTM inter-layer dropout is train-mode only; eval semantics here.

        logits_ref[t] = (jnp.dot(x, w_fc_ref[...], preferred_element_type=jnp.float32)
                         + b_fc_ref[...])                   # (Bp, Op) lane-dense store
        return (tuple(new_hs), tuple(new_cs))

    init = (tuple(h0_ref[l] for l in range(num_layers)),
            tuple(c0_ref[l] for l in range(num_layers)))
    # Short fixed T -> fully unrolled so the LLO scheduler can overlap steps.
    hs, cs = jax.lax.fori_loop(0, seq_len, step, init, unroll=True)

    for l in range(num_layers):                             # state written back exactly once
        h_out_ref[l] = hs[l]
        c_out_ref[l] = cs[l]


def prepare_params(params):
    """One-time packing: transpose W to (H,4H), fold biases, lane-pad fc/vocab. All f32."""
    H = params["hidden_size"]
    L = params["layer_count"]
    O = params["output_size"]
    V = params["embed"].shape[0]
    Vp = _round_up(V, LANE)
    Op = _round_up(O, LANE)

    w_x = jnp.transpose(params["w_ih"], (0, 2, 1))                 # (L, H, 4H)
    w_h = jnp.transpose(params["w_hh"], (0, 2, 1))                 # (L, H, 4H)
    b = (params["b_ih"] + params["b_hh"]).reshape(L, 1, 4 * H)     # (L, 1, 4H)
    w_fc = jnp.pad(params["w_fc"].T, ((0, 0), (0, Op - O)))        # (H, Op)
    b_fc = jnp.pad(params["b_fc"], (0, Op - O)).reshape(1, Op)     # (1, Op)
    embed = jnp.pad(params["embed"], ((0, Vp - V), (0, 0)))        # (Vp, H)

    return {"H": H, "L": L, "O": O, "Op": Op, "V": V, "Vp": Vp,
            "embed": embed, "w_x": w_x, "w_h": w_h, "b": b, "w_fc": w_fc, "b_fc": b_fc}


def rnn_forward_seq(prep, data_seq, hidden, cell):
    """data_seq: (T, B) int32 token ids == T chained module forward() calls.
    hidden/cell: (L, B, H) f32.  Returns (logits (T,B,O), (h, c))."""
    H, L, O, Op, Vp = prep["H"], prep["L"], prep["O"], prep["Op"], prep["Vp"]
    T, B = data_seq.shape
    Bp = _round_up(B, SUBLANE)

    h0 = jnp.pad(hidden, ((0, 0), (0, Bp - B), (0, 0)))            # (L, Bp, H), once per seq
    c0 = jnp.pad(cell, ((0, 0), (0, Bp - B), (0, 0)))
    ids = data_seq.reshape(-1).astype(jnp.int32)                   # (T*B,) -> SMEM

    vmem = pl.BlockSpec(memory_space=pltpu.MemorySpace.VMEM)
    smem = pl.BlockSpec(memory_space=pltpu.MemorySpace.SMEM)
    kernel = functools.partial(_lstm_seq_kernel, seq_len=T, batch=B, bp=Bp,
                               num_layers=L, hidden=H, vocab_p=Vp)

    # Resident VMEM footprint ~0.2 MiB at these shapes -- far under 64 MiB (v7x) /
    # 128 MiB (v5e/v6e).  If H/L scale up, re-derive: w_x+w_h grow as L*2*H*4H*4B; then
    # set vmem_limit_bytes or tile the 4H gate axis with a grid.  At B=2 a parallel batch
    # grid axis (v7x 2nd TensorCore) is not worth it.
    logits, h_out, c_out = pl.pallas_call(
        kernel,
        out_shape=(
            jax.ShapeDtypeStruct((T, Bp, Op), jnp.float32),
            jax.ShapeDtypeStruct((L, Bp, H), jnp.float32),
            jax.ShapeDtypeStruct((L, Bp, H), jnp.float32),
        ),
        in_specs=[smem] + [vmem] * 8,
        out_specs=(vmem, vmem, vmem),
    )(ids, prep["embed"], prep["w_x"], prep["w_h"], prep["b"],
      prep["w_fc"], prep["b_fc"], h0, c0)

    return logits[:, :B, :O], (h_out[:, :B, :], c_out[:, :B, :])


def rnn_forward(prep, data, hidden, cell):
    """Module-equivalent single-step forward: data (B,) int32 -> (logits (B,O), (h, c))."""
    logits_seq, (h, c) = rnn_forward_seq(prep, data[None, :], hidden, cell)
    return logits_seq[0], (h, c)


# ----------------------------- pure-JAX references -----------------------------
def ref_forward(params, data, hidden, cell):
    """Mirrors torch: embed -> nn.LSTM (eval, one step, gates i,f,g,o) -> Linear."""
    H = params["hidden_size"]
    x = params["embed"][data]
    hs, cs = [], []
    for l in range(params["layer_count"]):
        gates = (x @ params["w_ih"][l].T + params["b_ih"][l]
                 + hidden[l] @ params["w_hh"][l].T + params["b_hh"][l])
        i = jax.nn.sigmoid(gates[:, :H])
        f = jax.nn.sigmoid(gates[:, H:2 * H])
        g = jnp.tanh(gates[:, 2 * H:3 * H])
        o = jax.nn.sigmoid(gates[:, 3 * H:])
        c_new = f * cell[l] + i * g
        h_new = o * jnp.tanh(c_new)
        hs.append(h_new)
        cs.append(c_new)
        x = h_new
    logits = x @ params["w_fc"].T + params["b_fc"]
    return logits, (jnp.stack(hs), jnp.stack(cs))


def ref_forward_seq(params, data_seq, hidden, cell):
    outs = []
    for t in range(data_seq.shape[0]):
        logits, (hidden, cell) = ref_forward(params, data_seq[t], hidden, cell)
        outs.append(logits)
    return jnp.stack(outs), (hidden, cell)


def init_params(key, input_size, hidden_size, layer_count, output_size):
    k = 1.0 / np.sqrt(hidden_size)
    keys = jax.random.split(key, 8)
    u = lambda kk, shape: jax.random.uniform(kk, shape, jnp.float32, -k, k)
    return {
        "hidden_size": hidden_size,
        "layer_count": layer_count,
        "output_size": output_size,
        "embed": jax.random.normal(keys[0], (input_size, hidden_size), jnp.float32),
        "w_ih": u(keys[1], (layer_count, 4 * hidden_size, hidden_size)),
        "w_hh": u(keys[2], (layer_count, 4 * hidden_size, hidden_size)),
        "b_ih": u(keys[3], (layer_count, 4 * hidden_size)),
        "b_hh": u(keys[4], (layer_count, 4 * hidden_size)),
        "w_fc": u(keys[5], (output_size, hidden_size)),
        "b_fc": u(keys[6], (output_size,)),
    }


if __name__ == "__main__":
    INPUT_SIZE = 50     # vocab
    HIDDEN_SIZE = 32
    LAYER_COUNT = 2
    OUTPUT_SIZE = 50
    BATCH = 2
    SEQ_LEN = 8

    key = jax.random.PRNGKey(0)
    pkey, dkey = jax.random.split(key)
    params = init_params(pkey, INPUT_SIZE, HIDDEN_SIZE, LAYER_COUNT, OUTPUT_SIZE)
    prep = prepare_params(params)                       # one-time weight packing (hoisted)

    data_seq = jax.random.randint(dkey, (SEQ_LEN, BATCH), 0, INPUT_SIZE, dtype=jnp.int32)
    # initializeHiddenAndCell
    hidden = jnp.zeros((LAYER_COUNT, BATCH, HIDDEN_SIZE), jnp.float32)
    cell = jnp.zeros((LAYER_COUNT, BATCH, HIDDEN_SIZE), jnp.float32)

    # Whole sequence in ONE pallas_call (== SEQ_LEN chained module forward() calls).
    logits_seq, (h_new, c_new) = rnn_forward_seq(prep, data_seq, hidden, cell)
    jax.block_until_ready((logits_seq, h_new, c_new))

    # Single-step module API: forward(data, hidden, cell).
    logits_1, (h_1, c_1) = rnn_forward(prep, data_seq[0], hidden, cell)
    jax.block_until_ready((logits_1, h_1, c_1))

    ref_seq, (ref_h, ref_c) = ref_forward_seq(params, data_seq, hidden, cell)
    ref_1, (ref_h1, ref_c1) = ref_forward(params, data_seq[0], hidden, cell)

    np.testing.assert_allclose(np.asarray(logits_seq), np.asarray(ref_seq), atol=2e-2, rtol=2e-2)
    np.testing.assert_allclose(np.asarray(h_new), np.asarray(ref_h), atol=2e-2, rtol=2e-2)
    np.testing.assert_allclose(np.asarray(c_new), np.asarray(ref_c), atol=2e-2, rtol=2e-2)
    np.testing.assert_allclose(np.asarray(logits_1), np.asarray(ref_1), atol=2e-2, rtol=2e-2)
    np.testing.assert_allclose(np.asarray(h_1), np.asarray(ref_h1), atol=2e-2, rtol=2e-2)
    np.testing.assert_allclose(np.asarray(c_1), np.asarray(ref_c1), atol=2e-2, rtol=2e-2)

    print("KERNEL_OK")
</pallas_src>

<mosaic_0001>
module attributes {stable_mosaic.version = 11 : i64} {
  func.func @_lstm_seq_kernel(%arg0: memref<16xi32, #tpu.memory_space<smem>>, %arg1: memref<128x32xf32, #tpu.memory_space<vmem>>, %arg2: memref<2x32x128xf32, #tpu.memory_space<vmem>>, %arg3: memref<2x32x128xf32, #tpu.memory_space<vmem>>, %arg4: memref<2x1x128xf32, #tpu.memory_space<vmem>>, %arg5: memref<32x128xf32, #tpu.memory_space<vmem>>, %arg6: memref<1x128xf32, #tpu.memory_space<vmem>>, %arg7: memref<2x8x32xf32, #tpu.memory_space<vmem>>, %arg8: memref<2x8x32xf32, #tpu.memory_space<vmem>>, %arg9: memref<8x8x128xf32, #tpu.memory_space<vmem>>, %arg10: memref<2x8x32xf32, #tpu.memory_space<vmem>>, %arg11: memref<2x8x32xf32, #tpu.memory_space<vmem>>) attributes {dimension_semantics = [], scalar_prefetch = 0 : i64, scratch_operands = 0 : i64, tpu.core_type = #tpu.core_type<tc>} {
    %0 = tpu.iota {dimensions = array<i32: 0>} : vector<8x128xi32>
    %1 = tpu.iota {dimensions = array<i32: 1>} : vector<8x128xi32>
    %c0 = arith.constant 0 : index
    %c0_0 = arith.constant 0 : index
    %c0_1 = arith.constant 0 : index
    %2 = vector.load %arg7[%c0, %c0_0, %c0_1] : memref<2x8x32xf32, #tpu.memory_space<vmem>>, vector<1x8x32xf32>
    %3 = vector.shape_cast %2 : vector<1x8x32xf32> to vector<8x32xf32>
    %c1 = arith.constant 1 : index
    %c0_2 = arith.constant 0 : index
    %c0_3 = arith.constant 0 : index
    %4 = vector.load %arg7[%c1, %c0_2, %c0_3] : memref<2x8x32xf32, #tpu.memory_space<vmem>>, vector<1x8x32xf32>
    %5 = vector.shape_cast %4 : vector<1x8x32xf32> to vector<8x32xf32>
    %c0_4 = arith.constant 0 : index
    %c0_5 = arith.constant 0 : index
    %c0_6 = arith.constant 0 : index
    %6 = vector.load %arg8[%c0_4, %c0_5, %c0_6] : memref<2x8x32xf32, #tpu.memory_space<vmem>>, vector<1x8x32xf32>
    %7 = vector.shape_cast %6 : vector<1x8x32xf32> to vector<8x32xf32>
    %c1_7 = arith.constant 1 : index
    %c0_8 = arith.constant 0 : index
    %c0_9 = arith.constant 0 : index
    %8 = vector.load %arg8[%c1_7, %c0_8, %c0_9] : memref<2x8x32xf32, #tpu.memory_space<vmem>>, vector<1x8x32xf32>
    %9 = vector.shape_cast %8 : vector<1x8x32xf32> to vector<8x32xf32>
    %c0_i32 = arith.constant 0 : i32
    %cst = arith.constant 0.000000e+00 : f32
    %10 = vector.broadcast %cst : f32 to vector<8x128xf32>
    %c2_i32 = arith.constant 2 : i32
    %11 = arith.muli %c0_i32, %c2_i32 : i32
    %c0_i32_10 = arith.constant 0 : i32
    %12 = arith.addi %11, %c0_i32_10 : i32
    %13 = arith.index_cast %12 : i32 to index
    %14 = memref.load %arg0[%13] : memref<16xi32, #tpu.memory_space<smem>>
    %c0_i32_11 = arith.constant 0 : i32
    %15 = vector.broadcast %c0_i32_11 : i32 to vector<8x128xi32>
    %16 = arith.cmpi eq, %0, %15 : vector<8x128xi32>
    %17 = vector.broadcast %14 : i32 to vector<8x128xi32>
    %18 = arith.cmpi eq, %1, %17 : vector<8x128xi32>
    %19 = arith.andi %16, %18 : vector<8x128xi1>
    %cst_12 = arith.constant 1.000000e+00 : f32
    %cst_13 = arith.constant 0.000000e+00 : f32
    %20 = vector.broadcast %cst_12 : f32 to vector<8x128xf32>
    %21 = vector.broadcast %cst_13 : f32 to vector<8x128xf32>
    %22 = arith.select %19, %20, %21 : vector<8x128xi1>, vector<8x128xf32>
    %23 = arith.addf %10, %22 : vector<8x128xf32>
    %c2_i32_14 = arith.constant 2 : i32
    %24 = arith.muli %c0_i32, %c2_i32_14 : i32
    %c1_i32 = arith.constant 1 : i32
    %25 = arith.addi %24, %c1_i32 : i32
    %26 = arith.index_cast %25 : i32 to index
    %27 = memref.load %arg0[%26] : memref<16xi32, #tpu.memory_space<smem>>
    %c1_i32_15 = arith.constant 1 : i32
    %28 = vector.broadcast %c1_i32_15 : i32 to vector<8x128xi32>
    %29 = arith.cmpi eq, %0, %28 : vector<8x128xi32>
    %30 = vector.broadcast %27 : i32 to vector<8x128xi32>
    %31 = arith.cmpi eq, %1, %30 : vector<8x128xi32>
    %32 = arith.andi %29, %31 : vector<8x128xi1>
    %cst_16 = arith.constant 1.000000e+00 : f32
    %cst_17 = arith.constant 0.000000e+00 : f32
    %33 = vector.broadcast %cst_16 : f32 to vector<8x128xf32>
    %34 = vector.broadcast %cst_17 : f32 to vector<8x128xf32>
    %35 = arith.select %32, %33, %34 : vector<8x128xi1>, vector<8x128xf32>
    %36 = arith.addf %23, %35 : vector<8x128xf32>
    %c0_18 = arith.constant 0 : index
    %c0_19 = arith.constant 0 : index
    %37 = vector.load %arg1[%c0_18, %c0_19] : memref<128x32xf32, #tpu.memory_space<vmem>>, vector<128x32xf32>
    %cst_20 = arith.constant dense<0.000000e+00> : vector<8x32xf32>
    %38 = tpu.matmul %36, %37, %cst_20 {dimension_numbers = #tpu.dot_dimension_numbers<[1], [0], [0], [1], [0, 0, 1, 1], [], []>} : vector<8x128xf32>, vector<128x32xf32>, vector<8x32xf32> -> vector<8x32xf32>
    %c0_21 = arith.constant 0 : index
    %c0_22 = arith.constant 0 : index
    %c0_23 = arith.constant 0 : index
    %39 = vector.load %arg2[%c0_21, %c0_22, %c0_23] : memref<2x32x128xf32, #tpu.memory_space<vmem>>, vector<1x32x128xf32>
    %40 = vector.shape_cast %39 : vector<1x32x128xf32> to vector<32x128xf32>
    %cst_24 = arith.constant dense<0.000000e+00> : vector<8x128xf32>
    %41 = tpu.matmul %38, %40, %cst_24 {dimension_numbers = #tpu.dot_dimension_numbers<[1], [0], [0], [1], [0, 0, 1, 1], [], []>} : vector<8x32xf32>, vector<32x128xf32>, vector<8x128xf32> -> vector<8x128xf32>
    %c0_25 = arith.constant 0 : index
    %c0_26 = arith.constant 0 : index
    %c0_27 = arith.constant 0 : index
    %42 = vector.load %arg3[%c0_25, %c0_26, %c0_27] : memref<2x32x128xf32, #tpu.memory_space<vmem>>, vector<1x32x128xf32>
    %43 = vector.shape_cast %42 : vector<1x32x128xf32> to vector<32x128xf32>
    %cst_28 = arith.constant dense<0.000000e+00> : vector<8x128xf32>
    %44 = tpu.matmul %3, %43, %cst_28 {dimension_numbers = #tpu.dot_dimension_numbers<[1], [0], [0], [1], [0, 0, 1, 1], [], []>} : vector<8x32xf32>, vector<32x128xf32>, vector<8x128xf32> -> vector<8x128xf32>
    %45 = arith.addf %41, %44 : vector<8x128xf32>
    %c0_29 = arith.constant 0 : index
    %c0_30 = arith.constant 0 : index
    %c0_31 = arith.constant 0 : index
    %46 = vector.load %arg4[%c0_29, %c0_30, %c0_31] : memref<2x1x128xf32, #tpu.memory_space<vmem>>, vector<1x1x128xf32>
    %47 = vector.shape_cast %46 : vector<1x1x128xf32> to vector<1x128xf32>
    %48 = vector.broadcast %47 : vector<1x128xf32> to vector<8x128xf32>
    %49 = arith.addf %45, %48 : vector<8x128xf32>
    %50 = vector.extract_strided_slice %49 {offsets = [0, 0], sizes = [8, 32], strides = [1, 1]} : vector<8x128xf32> to vector<8x32xf32>
    %51 = arith.negf %50 : vector<8x32xf32>
    %52 = math.exp %51 : vector<8x32xf32>
    %cst_32 = arith.constant 1.000000e+00 : f32
    %53 = vector.broadcast %cst_32 : f32 to vector<8x32xf32>
    %54 = arith.addf %53, %52 : vector<8x32xf32>
    %55 = arith.divf %53, %54 : vector<8x32xf32>
    %56 = vector.extract_strided_slice %49 {offsets = [0, 32], sizes = [8, 32], strides = [1, 1]} : vector<8x128xf32> to vector<8x32xf32>
    %57 = arith.negf %56 : vector<8x32xf32>
    %58 = math.exp %57 : vector<8x32xf32>
    %cst_33 = arith.constant 1.000000e+00 : f32
    %59 = vector.broadcast %cst_33 : f32 to vector<8x32xf32>
    %60 = arith.addf %59, %58 : vector<8x32xf32>
    %61 = arith.divf %59, %60 : vector<8x32xf32>
    %62 = vector.extract_strided_slice %49 {offsets = [0, 64], sizes = [8, 32], strides = [1, 1]} : vector<8x128xf32> to vector<8x32xf32>
    %63 = math.tanh %62 : vector<8x32xf32>
    %64 = vector.extract_strided_slice %49 {offsets = [0, 96], sizes = [8, 32], strides = [1, 1]} : vector<8x128xf32> to vector<8x32xf32>
    %65 = arith.negf %64 : vector<8x32xf32>
    %66 = math.exp %65 : vector<8x32xf32>
    %cst_34 = arith.constant 1.000000e+00 : f32
    %67 = vector.broadcast %cst_34 : f32 to vector<8x32xf32>
    %68 = arith.addf %67, %66 : vector<8x32xf32>
    %69 = arith.divf %67, %68 : vector<8x32xf32>
    %70 = arith.mulf %61, %7 : vector<8x32xf32>
    %71 = arith.mulf %55, %63 : vector<8x32xf32>
    %72 = arith.addf %70, %71 : vector<8x32xf32>
    %73 = math.tanh %72 : vector<8x32xf32>
    %74 = arith.mulf %69, %73 : vector<8x32xf32>
    %c1_35 = arith.constant 1 : index
    %c0_36 = arith.constant 0 : index
    %c0_37 = arith.constant 0 : index
    %75 = vector.load %arg2[%c1_35, %c0_36, %c0_37] : memref<2x32x128xf32, #tpu.memory_space<vmem>>, vector<1x32x128xf32>
    %76 = vector.shape_cast %75 : vector<1x32x128xf32> to vector<32x128xf32>
    %cst_38 = arith.constant dense<0.000000e+00> : vector<8x128xf32>
    %77 = tpu.matmul %74, %76, %cst_38 {dimension_numbers = #tpu.dot_dimension_numbers<[1], [0], [0], [1], [0, 0, 1, 1], [], []>} : vector<8x32xf32>, vector<32x128xf32>, vector<8x128xf32> -> vector<8x128xf32>
    %c1_39 = arith.constant 1 : index
    %c0_40 = arith.constant 0 : index
    %c0_41 = arith.constant 0 : index
    %78 = vector.load %arg3[%c1_39, %c0_40, %c0_41] : memref<2x32x128xf32, #tpu.memory_space<vmem>>, vector<1x32x128xf32>
    %79 = vector.shape_cast %78 : vector<1x32x128xf32> to vector<32x128xf32>
    %cst_42 = arith.constant dense<0.000000e+00> : vector<8x128xf32>
    %80 = tpu.matmul %5, %79, %cst_42 {dimension_numbers = #tpu.dot_dimension_numbers<[1], [0], [0], [1], [0, 0, 1, 1], [], []>} : vector<8x32xf32>, vector<32x128xf32>, vector<8x128xf32> -> vector<8x128xf32>
    %81 = arith.addf %77, %80 : vector<8x128xf32>
    %c1_43 = arith.constant 1 : index
    %c0_44 = arith.constant 0 : index
    %c0_45 = arith.constant 0 : index
    %82 = vector.load %arg4[%c1_43, %c0_44, %c0_45] : memref<2x1x128xf32, #tpu.memory_space<vmem>>, vector<1x1x128xf32>
    %83 = vector.shape_cast %82 : vector<1x1x128xf32> to vector<1x128xf32>
    %84 = vector.broadcast %83 : vector<1x128xf32> to vector<8x128xf32>
    %85 = arith.addf %81, %84 : vector<8x128xf32>
    %86 = vector.extract_strided_slice %85 {offsets = [0, 0], sizes = [8, 32], strides = [1, 1]} : vector<8x128xf32> to vector<8x32xf32>
    %87 = arith.negf %86 : vector<8x32xf32>
    %88 = math.exp %87 : vector<8x32xf32>
    %cst_46 = arith.constant 1.000000e+00 : f32
    %89 = vector.broadcast %cst_46 : f32 to vector<8x32xf32>
    %90 = arith.addf %89, %88 : vector<8x32xf32>
    %91 = arith.divf %89, %90 : vector<8x32xf32>
    %92 = vector.extract_strided_slice %85 {offsets = [0, 32], sizes = [8, 32], strides = [1, 1]} : vector<8x128xf32> to vector<8x32xf32>
    %93 = arith.negf %92 : vector<8x32xf32>
    %94 = math.exp %93 : vector<8x32xf32>
    %cst_47 = arith.constant 1.000000e+00 : f32
    %95 = vector.broadcast %cst_47 : f32 to vector<8x32xf32>
    %96 = arith.addf %95, %94 : vector<8x32xf32>
    %97 = arith.divf %95, %96 : vector<8x32xf32>
    %98 = vector.extract_strided_slice %85 {offsets = [0, 64], sizes = [8, 32], strides = [1, 1]} : vector<8x128xf32> to vector<8x32xf32>
    %99 = math.tanh %98 : vector<8x32xf32>
    %100 = vector.extract_strided_slice %85 {offsets = [0, 96], sizes = [8, 32], strides = [1, 1]} : vector<8x128xf32> to vector<8x32xf32>
    %101 = arith.negf %100 : vector<8x32xf32>
    %102 = math.exp %101 : vector<8x32xf32>
    %cst_48 = arith.constant 1.000000e+00 : f32
    %103 = vector.broadcast %cst_48 : f32 to vector<8x32xf32>
    %104 = arith.addf %103, %102 : vector<8x32xf32>
    %105 = arith.divf %103, %104 : vector<8x32xf32>
    %106 = arith.mulf %97, %9 : vector<8x32xf32>
    %107 = arith.mulf %91, %99 : vector<8x32xf32>
    %108 = arith.addf %106, %107 : vector<8x32xf32>
    %109 = math.tanh %108 : vector<8x32xf32>
    %110 = arith.mulf %105, %109 : vector<8x32xf32>
    %c0_49 = arith.constant 0 : index
    %c0_50 = arith.constant 0 : index
    %111 = vector.load %arg5[%c0_49, %c0_50] : memref<32x128xf32, #tpu.memory_space<vmem>>, vector<32x128xf32>
    %cst_51 = arith.constant dense<0.000000e+00> : vector<8x128xf32>
    %112 = tpu.matmul %110, %111, %cst_51 {dimension_numbers = #tpu.dot_dimension_numbers<[1], [0], [0], [1], [0, 0, 1, 1], [], []>} : vector<8x32xf32>, vector<32x128xf32>, vector<8x128xf32> -> vector<8x128xf32>
    %c0_52 = arith.constant 0 : index
    %c0_53 = arith.constant 0 : index
    %113 = vector.load %arg6[%c0_52, %c0_53] : memref<1x128xf32, #tpu.memory_space<vmem>>, vector<1x128xf32>
    %114 = vector.broadcast %113 : vector<1x128xf32> to vector<8x128xf32>
    %115 = arith.addf %112, %114 : vector<8x128xf32>
    %116 = arith.index_cast %c0_i32 : i32 to index
    %c0_54 = arith.constant 0 : index
    %c0_55 = arith.constant 0 : index
    %117 = vector.load %arg9[%116, %c0_54, %c0_55] : memref<8x8x128xf32, #tpu.memory_space<vmem>>, vector<1x8x128xf32>
    %118 = vector.shape_cast %117 : vector<1x8x128xf32> to vector<8x128xf32>
    %119 = vector.shape_cast %115 : vector<8x128xf32> to vector<1x8x128xf32>
    tpu.vector_store %arg9[%116, %c0_54, %c0_55], %119 {strides = array<i32>} : memref<8x8x128xf32, #tpu.memory_space<vmem>>, vector<1x8x128xf32>,
    %c1_i32_56 = arith.constant 1 : i32
    %cst_57 = arith.constant 0.000000e+00 : f32
    %120 = vector.broadcast %cst_57 : f32 to vector<8x128xf32>
    %c2_i32_58 = arith.constant 2 : i32
    %121 = arith.muli %c1_i32_56, %c2_i32_58 : i32
    %c0_i32_59 = arith.constant 0 : i32
    %122 = arith.addi %121, %c0_i32_59 : i32
    %123 = arith.index_cast %122 : i32 to index
    %124 = memref.load %arg0[%123] : memref<16xi32, #tpu.memory_space<smem>>
    %c0_i32_60 = arith.constant 0 : i32
    %125 = vector.broadcast %c0_i32_60 : i32 to vector<8x128xi32>
    %126 = arith.cmpi eq, %0, %125 : vector<8x128xi32>
    %127 = vector.broadcast %124 : i32 to vector<8x128xi32>
    %128 = arith.cmpi eq, %1, %127 : vector<8x128xi32>
    %129 = arith.andi %126, %128 : vector<8x128xi1>
    %cst_61 = arith.constant 1.000000e+00 : f32
    %cst_62 = arith.constant 0.000000e+00 : f32
    %130 = vector.broadcast %cst_61 : f32 to vector<8x128xf32>
    %131 = vector.broadcast %cst_62 : f32 to vector<8x128xf32>
    %132 = arith.select %129, %130, %131 : vector<8x128xi1>, vector<8x128xf32>
    %133 = arith.addf %120, %132 : vector<8x128xf32>
    %c2_i32_63 = arith.constant 2 : i32
    %134 = arith.muli %c1_i32_56, %c2_i32_63 : i32
    %c1_i32_64 = arith.constant 1 : i32
    %135 = arith.addi %134, %c1_i32_64 : i32
    %136 = arith.index_cast %135 : i32 to index
    %137 = memref.load %arg0[%136] : memref<16xi32, #tpu.memory_space<smem>>
    %c1_i32_65 = arith.constant 1 : i32
    %138 = vector.broadcast %c1_i32_65 : i32 to vector<8x128xi32>
    %139 = arith.cmpi eq, %0, %138 : vector<8x128xi32>
    %140 = vector.broadcast %137 : i32 to vector<8x128xi32>
    %141 = arith.cmpi eq, %1, %140 : vector<8x128xi32>
    %142 = arith.andi %139, %141 : vector<8x128xi1>
    %cst_66 = arith.constant 1.000000e+00 : f32
    %cst_67 = arith.constant 0.000000e+00 : f32
    %143 = vector.broadcast %cst_66 : f32 to vector<8x128xf32>
    %144 = vector.broadcast %cst_67 : f32 to vector<8x128xf32>
    %145 = arith.select %142, %143, %144 : vector<8x128xi1>, vector<8x128xf32>
    %146 = arith.addf %133, %145 : vector<8x128xf32>
    %c0_68 = arith.constant 0 : index
    %c0_69 = arith.constant 0 : index
    %147 = vector.load %arg1[%c0_68, %c0_69] : memref<128x32xf32, #tpu.memory_space<vmem>>, vector<128x32xf32>
    %cst_70 = arith.constant dense<0.000000e+00> : vector<8x32xf32>
    %148 = tpu.matmul %146, %147, %cst_70 {dimension_numbers = #tpu.dot_dimension_numbers<[1], [0], [0], [1], [0, 0, 1, 1], [], []>} : vector<8x128xf32>, vector<128x32xf32>, vector<8x32xf32> -> vector<8x32xf32>
    %c0_71 = arith.constant 0 : index
    %c0_72 = arith.constant 0 : index
    %c0_73 = arith.constant 0 : index
    %149 = vector.load %arg2[%c0_71, %c0_72, %c0_73] : memref<2x32x128xf32, #tpu.memory_space<vmem>>, vector<1x32x128xf32>
    %150 = vector.shape_cast %149 : vector<1x32x128xf32> to vector<32x128xf32>
    %cst_74 = arith.constant dense<0.000000e+00> : vector<8x128xf32>
    %151 = tpu.matmul %148, %150, %cst_74 {dimension_numbers = #tpu.dot_dimension_numbers<[1], [0], [0], [1], [0, 0, 1, 1], [], []>} : vector<8x32xf32>, vector<32x128xf32>, vector<8x128xf32> -> vector<8x128xf32>
    %c0_75 = arith.constant 0 : index
    %c0_76 = arith.constant 0 : index
    %c0_77 = arith.constant 0 : index
    %152 = vector.load %arg3[%c0_75, %c0_76, %c0_77] : memref<2x32x128xf32, #tpu.memory_space<vmem>>, vector<1x32x128xf32>
    %153 = vector.shape_cast %152 : vector<1x32x128xf32> to vector<32x128xf32>
    %cst_78 = arith.constant dense<0.000000e+00> : vector<8x128xf32>
    %154 = tpu.matmul %74, %153, %cst_78 {dimension_numbers = #tpu.dot_dimension_numbers<[1], [0], [0], [1], [0, 0, 1, 1], [], []>} : vector<8x32xf32>, vector<32x128xf32>, vector<8x128xf32> -> vector<8x128xf32>
    %155 = arith.addf %151, %154 : vector<8x128xf32>
    %c0_79 = arith.constant 0 : index
    %c0_80 = arith.constant 0 : index
    %c0_81 = arith.constant 0 : index
    %156 = vector.load %arg4[%c0_79, %c0_80, %c0_81] : memref<2x1x128xf32, #tpu.memory_space<vmem>>, vector<1x1x128xf32>
    %157 = vector.shape_cast %156 : vector<1x1x128xf32> to vector<1x128xf32>
    %158 = vector.broadcast %157 : vector<1x128xf32> to vector<8x128xf32>
    %159 = arith.addf %155, %158 : vector<8x128xf32>
    %160 = vector.extract_strided_slice %159 {offsets = [0, 0], sizes = [8, 32], strides = [1, 1]} : vector<8x128xf32> to vector<8x32xf32>
    %161 = arith.negf %160 : vector<8x32xf32>
    %162 = math.exp %161 : vector<8x32xf32>
    %cst_82 = arith.constant 1.000000e+00 : f32
    %163 = vector.broadcast %cst_82 : f32 to vector<8x32xf32>
    %164 = arith.addf %163, %162 : vector<8x32xf32>
    %165 = arith.divf %163, %164 : vector<8x32xf32>
    %166 = vector.extract_strided_slice %159 {offsets = [0, 32], sizes = [8, 32], strides = [1, 1]} : vector<8x128xf32> to vector<8x32xf32>
    %167 = arith.negf %166 : vector<8x32xf32>
    %168 = math.exp %167 : vector<8x32xf32>
    %cst_83 = arith.constant 1.000000e+00 : f32
    %169 = vector.broadcast %cst_83 : f32 to vector<8x32xf32>
    %170 = arith.addf %169, %168 : vector<8x32xf32>
    %171 = arith.divf %169, %170 : vector<8x32xf32>
    %172 = vector.extract_strided_slice %159 {offsets = [0, 64], sizes = [8, 32], strides = [1, 1]} : vector<8x128xf32> to vector<8x32xf32>
    %173 = math.tanh %172 : vector<8x32xf32>
    %174 = vector.extract_strided_slice %159 {offsets = [0, 96], sizes = [8, 32], strides = [1, 1]} : vector<8x128xf32> to vector<8x32xf32>
    %175 = arith.negf %174 : vector<8x32xf32>
    %176 = math.exp %175 : vector<8x32xf32>
    %cst_84 = arith.constant 1.000000e+00 : f32
    %177 = vector.broadcast %cst_84 : f32 to vector<8x32xf32>
    %178 = arith.addf %177, %176 : vector<8x32xf32>
    %179 = arith.divf %177, %178 : vector<8x32xf32>
    %180 = arith.mulf %171, %72 : vector<8x32xf32>
    %181 = arith.mulf %165, %173 : vector<8x32xf32>
    %182 = arith.addf %180, %181 : vector<8x32xf32>
    %183 = math.tanh %182 : vector<8x32xf32>
    %184 = arith.mulf %179, %183 : vector<8x32xf32>
    %c1_85 = arith.constant 1 : index
    %c0_86 = arith.constant 0 : index
    %c0_87 = arith.constant 0 : index
    %185 = vector.load %arg2[%c1_85, %c0_86, %c0_87] : memref<2x32x128xf32, #tpu.memory_space<vmem>>, vector<1x32x128xf32>
    %186 = vector.shape_cast %185 : vector<1x32x128xf32> to vector<32x128xf32>
    %cst_88 = arith.constant dense<0.000000e+00> : vector<8x128xf32>
    %187 = tpu.matmul %184, %186, %cst_88 {dimension_numbers = #tpu.dot_dimension_numbers<[1], [0], [0], [1], [0, 0, 1, 1], [], []>} : vector<8x32xf32>, vector<32x128xf32>, vector<8x128xf32> -> vector<8x128xf32>
    %c1_89 = arith.constant 1 : index
    %c0_90 = arith.constant 0 : index
    %c0_91 = arith.constant 0 : index
    %188 = vector.load %arg3[%c1_89, %c0_90, %c0_91] : memref<2x32x128xf32, #tpu.memory_space<vmem>>, vector<1x32x128xf32>
    %189 = vector.shape_cast %188 : vector<1x32x128xf32> to vector<32x128xf32>
    %cst_92 = arith.constant dense<0.000000e+00> : vector<8x128xf32>
    %190 = tpu.matmul %110, %189, %cst_92 {dimension_numbers = #tpu.dot_dimension_numbers<[1], [0], [0], [1], [0, 0, 1, 1], [], []>} : vector<8x32xf32>, vector<32x128xf32>, vector<8x128xf32> -> vector<8x128xf32>
    %191 = arith.addf %187, %190 : vector<8x128xf32>
    %c1_93 = arith.constant 1 : index
    %c0_94 = arith.constant 0 : index
    %c0_95 = arith.constant 0 : index
    %192 = vector.load %arg4[%c1_93, %c0_94, %c0_95] : memref<2x1x128xf32, #tpu.memory_space<vmem>>, vector<1x1x128xf32>
    %193 = vector.shape_cast %192 : vector<1x1x128xf32> to vector<1x128xf32>
    %194 = vector.broadcast %193 : vector<1x128xf32> to vector<8x128xf32>
    %195 = arith.addf %191, %194 : vector<8x128xf32>
    %196 = vector.extract_strided_slice %195 {offsets = [0, 0], sizes = [8, 32], strides = [1, 1]} : vector<8x128xf32> to vector<8x32xf32>
    %197 = arith.negf %196 : vector<8x32xf32>
    %198 = math.exp %197 : vector<8x32xf32>
    %cst_96 = arith.constant 1.000000e+00 : f32
    %199 = vector.broadcast %cst_96 : f32 to vector<8x32xf32>
    %200 = arith.addf %199, %198 : vector<8x32xf32>
    %201 = arith.divf %199, %200 : vector<8x32xf32>
    %202 = vector.extract_strided_slice %195 {offsets = [0, 32], sizes = [8, 32], strides = [1, 1]} : vector<8x128xf32> to vector<8x32xf32>
    %203 = arith.negf %202 : vector<8x32xf32>
    %204 = math.exp %203 : vector<8x32xf32>
    %cst_97 = arith.constant 1.000000e+00 : f32
    %205 = vector.broadcast %cst_97 : f32 to vector<8x32xf32>
    %206 = arith.addf %205, %204 : vector<8x32xf32>
    %207 = arith.divf %205, %206 : vector<8x32xf32>
    %208 = vector.extract_strided_slice %195 {offsets = [0, 64], sizes = [8, 32], strides = [1, 1]} : vector<8x128xf32> to vector<8x32xf32>
    %209 = math.tanh %208 : vector<8x32xf32>
    %210 = vector.extract_strided_slice %195 {offsets = [0, 96], sizes = [8, 32], strides = [1, 1]} : vector<8x128xf32> to vector<8x32xf32>
    %211 = arith.negf %210 : vector<8x32xf32>
    %212 = math.exp %211 : vector<8x32xf32>
    %cst_98 = arith.constant 1.000000e+00 : f32
    %213 = vector.broadcast %cst_98 : f32 to vector<8x32xf32>
    %214 = arith.addf %213, %212 : vector<8x32xf32>
    %215 = arith.divf %213, %214 : vector<8x32xf32>
    %216 = arith.mulf %207, %108 : vector<8x32xf32>
    %217 = arith.mulf %201, %209 : vector<8x32xf32>
    %218 = arith.addf %216, %217 : vector<8x32xf32>
    %219 = math.tanh %218 : vector<8x32xf32>
    %220 = arith.mulf %215, %219 : vector<8x32xf32>
    %c0_99 = arith.constant 0 : index
    %c0_100 = arith.constant 0 : index
    %221 = vector.load %arg5[%c0_99, %c0_100] : memref<32x128xf32, #tpu.memory_space<vmem>>, vector<32x128xf32>
    %cst_101 = arith.constant dense<0.000000e+00> : vector<8x128xf32>
    %222 = tpu.matmul %220, %221, %cst_101 {dimension_numbers = #tpu.dot_dimension_numbers<[1], [0], [0], [1], [0, 0, 1, 1], [], []>} : vector<8x32xf32>, vector<32x128xf32>, vector<8x128xf32> -> vector<8x128xf32>
    %c0_102 = arith.constant 0 : index
    %c0_103 = arith.constant 0 : index
    %223 = vector.load %arg6[%c0_102, %c0_103] : memref<1x128xf32, #tpu.memory_space<vmem>>, vector<1x128xf32>
    %224 = vector.broadcast %223 : vector<1x128xf32> to vector<8x128xf32>
    %225 = arith.addf %222, %224 : vector<8x128xf32>
    %226 = arith.index_cast %c1_i32_56 : i32 to index
    %c0_104 = arith.constant 0 : index
    %c0_105 = arith.constant 0 : index
    %227 = vector.load %arg9[%226, %c0_104, %c0_105] : memref<8x8x128xf32, #tpu.memory_space<vmem>>, vector<1x8x128xf32>
    %228 = vector.shape_cast %227 : vector<1x8x128xf32> to vector<8x128xf32>
    %229 = vector.shape_cast %225 : vector<8x128xf32> to vector<1x8x128xf32>
    tpu.vector_store %arg9[%226, %c0_104, %c0_105], %229 {strides = array<i32>} : memref<8x8x128xf32, #tpu.memory_space<vmem>>, vector<1x8x128xf32>,
    %c2_i32_106 = arith.constant 2 : i32
    %cst_107 = arith.constant 0.000000e+00 : f32
    %230 = vector.broadcast %cst_107 : f32 to vector<8x128xf32>
    %c2_i32_108 = arith.constant 2 : i32
    %231 = arith.muli %c2_i32_106, %c2_i32_108 : i32
    %c0_i32_109 = arith.constant 0 : i32
    %232 = arith.addi %231, %c0_i32_109 : i32
    %233 = arith.index_cast %232 : i32 to index
    %234 = memref.load %arg0[%233] : memref<16xi32, #tpu.memory_space<smem>>
    %c0_i32_110 = arith.constant 0 : i32
    %235 = vector.broadcast %c0_i32_110 : i32 to vector<8x128xi32>
    %236 = arith.cmpi eq, %0, %235 : vector<8x128xi32>
    %237 = vector.broadcast %234 : i32 to vector<8x128xi32>
    %238 = arith.cmpi eq, %1, %237 : vector<8x128xi32>
    %239 = arith.andi %236, %238 : vector<8x128xi1>
    %cst_111 = arith.constant 1.000000e+00 : f32
    %cst_112 = arith.constant 0.000000e+00 : f32
    %240 = vector.broadcast %cst_111 : f32 to vector<8x128xf32>
    %241 = vector.broadcast %cst_112 : f32 to vector<8x128xf32>
    %242 = arith.select %239, %240, %241 : vector<8x128xi1>, vector<8x128xf32>
    %243 = arith.addf %230, %242 : vector<8x128xf32>
    %c2_i32_113 = arith.constant 2 : i32
    %244 = arith.muli %c2_i32_106, %c2_i32_113 : i32
    %c1_i32_114 = arith.constant 1 : i32
    %245 = arith.addi %244, %c1_i32_114 : i32
    %246 = arith.index_cast %245 : i32 to index
    %247 = memref.load %arg0[%246] : memref<16xi32, #tpu.memory_space<smem>>
    %c1_i32_115 = arith.constant 1 : i32
    %248 = vector.broadcast %c1_i32_115 : i32 to vector<8x128xi32>
    %249 = arith.cmpi eq, %0, %248 : vector<8x128xi32>
    %250 = vector.broadcast %247 : i32 to vector<8x128xi32>
    %251 = arith.cmpi eq, %1, %250 : vector<8x128xi32>
    %252 = arith.andi %249, %251 : vector<8x128xi1>
    %cst_116 = arith.constant 1.000000e+00 : f32
    %cst_117 = arith.constant 0.000000e+00 : f32
    %253 = vector.broadcast %cst_116 : f32 to vector<8x128xf32>
    %254 = vector.broadcast %cst_117 : f32 to vector<8x128xf32>
    %255 = arith.select %252, %253, %254 : vector<8x128xi1>, vector<8x128xf32>
    %256 = arith.addf %243, %255 : vector<8x128xf32>
    %c0_118 = arith.constant 0 : index
    %c0_119 = arith.constant 0 : index
    %257 = vector.load %arg1[%c0_118, %c0_119] : memref<128x32xf32, #tpu.memory_space<vmem>>, vector<128x32xf32>
    %cst_120 = arith.constant dense<0.000000e+00> : vector<8x32xf32>
    %258 = tpu.matmul %256, %257, %cst_120 {dimension_numbers = #tpu.dot_dimension_numbers<[1], [0], [0], [1], [0, 0, 1, 1], [], []>} : vector<8x128xf32>, vector<128x32xf32>, vector<8x32xf32> -> vector<8x32xf32>
    %c0_121 = arith.constant 0 : index
    %c0_122 = arith.constant 0 : index
    %c0_123 = arith.constant 0 : index
    %259 = vector.load %arg2[%c0_121, %c0_122, %c0_123] : memref<2x32x128xf32, #tpu.memory_space<vmem>>, vector<1x32x128xf32>
    %260 = vector.shape_cast %259 : vector<1x32x128xf32> to vector<32x128xf32>
    %cst_124 = arith.constant dense<0.000000e+00> : vector<8x128xf32>
    %261 = tpu.matmul %258, %260, %cst_124 {dimension_numbers = #tpu.dot_dimension_numbers<[1], [0], [0], [1], [0, 0, 1, 1], [], []>} : vector<8x32xf32>, vector<32x128xf32>, vector<8x128xf32> -> vector<8x128xf32>
    %c0_125 = arith.constant 0 : index
    %c0_126 = arith.constant 0 : index
    %c0_127 = arith.constant 0 : index
    %262 = vector.load %arg3[%c0_125, %c0_126, %c0_127] : memref<2x32x128xf32, #tpu.memory_space<vmem>>, vector<1x32x128xf32>
    %263 = vector.shape_cast %262 : vector<1x32x128xf32> to vector<32x128xf32>
    %cst_128 = arith.constant dense<0.000000e+00> : vector<8x128xf32>
    %264 = tpu.matmul %184, %263, %cst_128 {dimension_numbers = #tpu.dot_dimension_numbers<[1], [0], [0], [1], [0, 0, 1, 1], [], []>} : vector<8x32xf32>, vector<32x128xf32>, vector<8x128xf32> -> vector<8x128xf32>
    %265 = arith.addf %261, %264 : vector<8x128xf32>
    %c0_129 = arith.constant 0 : index
    %c0_130 = arith.constant 0 : index
    %c0_131 = arith.constant 0 : index
    %266 = vector.load %arg4[%c0_129, %c0_130, %c0_131] : memref<2x1x128xf32, #tpu.memory_space<vmem>>, vector<1x1x128xf32>
    %267 = vector.shape_cast %266 : vector<1x1x128xf32> to vector<1x128xf32>
    %268 = vector.broadcast %267 : vector<1x128xf32> to vector<8x128xf32>
    %269 = arith.addf %265, %268 : vector<8x128xf32>
    %270 = vector.extract_strided_slice %269 {offsets = [0, 0], sizes = [8, 32], strides = [1, 1]} : vector<8x128xf32> to vector<8x32xf32>
    %271 = arith.negf %270 : vector<8x32xf32>
    %272 = math.exp %271 : vector<8x32xf32>
    %cst_132 = arith.constant 1.000000e+00 : f32
    %273 = vector.broadcast %cst_132 : f32 to vector<8x32xf32>
    %274 = arith.addf %273, %272 : vector<8x32xf32>
    %275 = arith.divf %273, %274 : vector<8x32xf32>
    %276 = vector.extract_strided_slice %269 {offsets = [0, 32], sizes = [8, 32], strides = [1, 1]} : vector<8x128xf32> to vector<8x32xf32>
    %277 = arith.negf %276 : vector<8x32xf32>
    %278 = math.exp %277 : vector<8x32xf32>
    %cst_133 = arith.constant 1.000000e+00 : f32
    %279 = vector.broadcast %cst_133 : f32 to vector<8x32xf32>
    %280 = arith.addf %279, %278 : vector<8x32xf32>
    %281 = arith.divf %279, %280 : vector<8x32xf32>
    %282 = vector.extract_strided_slice %269 {offsets = [0, 64], sizes = [8, 32], strides = [1, 1]} : vector<8x128xf32> to vector<8x32xf32>
    %283 = math.tanh %282 : vector<8x32xf32>
    %284 = vector.extract_strided_slice %269 {offsets = [0, 96], sizes = [8, 32], strides = [1, 1]} : vector<8x128xf32> to vector<8x32xf32>
    %285 = arith.negf %284 : vector<8x32xf32>
    %286 = math.exp %285 : vector<8x32xf32>
    %cst_134 = arith.constant 1.000000e+00 : f32
    %287 = vector.broadcast %cst_134 : f32 to vector<8x32xf32>
    %288 = arith.addf %287, %286 : vector<8x32xf32>
    %289 = arith.divf %287, %288 : vector<8x32xf32>
    %290 = arith.mulf %281, %182 : vector<8x32xf32>
    %291 = arith.mulf %275, %283 : vector<8x32xf32>
    %292 = arith.addf %290, %291 : vector<8x32xf32>
    %293 = math.tanh %292 : vector<8x32xf32>
    %294 = arith.mulf %289, %293 : vector<8x32xf32>
    %c1_135 = arith.constant 1 : index
    %c0_136 = arith.constant 0 : index
    %c0_137 = arith.constant 0 : index
    %295 = vector.load %arg2[%c1_135, %c0_136, %c0_137] : memref<2x32x128xf32, #tpu.memory_space<vmem>>, vector<1x32x128xf32>
    %296 = vector.shape_cast %295 : vector<1x32x128xf32> to vector<32x128xf32>
    %cst_138 = arith.constant dense<0.000000e+00> : vector<8x128xf32>
    %297 = tpu.matmul %294, %296, %cst_138 {dimension_numbers = #tpu.dot_dimension_numbers<[1], [0], [0], [1], [0, 0, 1, 1], [], []>} : vector<8x32xf32>, vector<32x128xf32>, vector<8x128xf32> -> vector<8x128xf32>
    %c1_139 = arith.constant 1 : index
    %c0_140 = arith.constant 0 : index
    %c0_141 = arith.constant 0 : index
    %298 = vector.load %arg3[%c1_139, %c0_140, %c0_141] : memref<2x32x128xf32, #tpu.memory_space<vmem>>, vector<1x32x128xf32>
    %299 = vector.shape_cast %298 : vector<1x32x128xf32> to vector<32x128xf32>
    %cst_142 = arith.constant dense<0.000000e+00> : vector<8x128xf32>
    %300 = tpu.matmul %220, %299, %cst_142 {dimension_numbers = #tpu.dot_dimension_numbers<[1], [0], [0], [1], [0, 0, 1, 1], [], []>} : vector<8x32xf32>, vector<32x128xf32>, vector<8x128xf32> -> vector<8x128xf32>
    %301 = arith.addf %297, %300 : vector<8x128xf32>
    %c1_143 = arith.constant 1 : index
    %c0_144 = arith.constant 0 : index
    %c0_145 = arith.constant 0 : index
    %302 = vector.load %arg4[%c1_143, %c0_144, %c0_145] : memref<2x1x128xf32, #tpu.memory_space<vmem>>, vector<1x1x128xf32>
    %303 = vector.shape_cast %302 : vector<1x1x128xf32> to vector<1x128xf32>
    %304 = vector.broadcast %303 : vector<1x128xf32> to vector<8x128xf32>
    %305 = arith.addf %301, %304 : vector<8x128xf32>
    %306 = vector.extract_strided_slice %305 {offsets = [0, 0], sizes = [8, 32], strides = [1, 1]} : vector<8x128xf32> to vector<8x32xf32>
    %307 = arith.negf %306 : vector<8x32xf32>
    %308 = math.exp %307 : vector<8x32xf32>
    %cst_146 = arith.constant 1.000000e+00 : f32
    %309 = vector.broadcast %cst_146 : f32 to vector<8x32xf32>
    %310 = arith.addf %309, %308 : vector<8x32xf32>
    %311 = arith.divf %309, %310 : vector<8x32xf32>
    %312 = vector.extract_strided_slice %305 {offsets = [0, 32], sizes = [8, 32], strides = [1, 1]} : vector<8x128xf32> to vector<8x32xf32>
    %313 = arith.negf %312 : vector<8x32xf32>
    %314 = math.exp %313 : vector<8x32xf32>
    %cst_147 = arith.constant 1.000000e+00 : f32
    %315 = vector.broadcast %cst_147 : f32 to vector<8x32xf32>
    %316 = arith.addf %315, %314 : vector<8x32xf32>
    %317 = arith.divf %315, %316 : vector<8x32xf32>
    %318 = vector.extract_strided_slice %305 {offsets = [0, 64], sizes = [8, 32], strides = [1, 1]} : vector<8x128xf32> to vector<8x32xf32>
    %319 = math.tanh %318 : vector<8x32xf32>
    %320 = vector.extract_strided_slice %305 {offsets = [0, 96], sizes = [8, 32], strides = [1, 1]} : vector<8x128xf32> to vector<8x32xf32>
    %321 = arith.negf %320 : vector<8x32xf32>
    %322 = math.exp %321 : vector<8x32xf32>
    %cst_148 = arith.constant 1.000000e+00 : f32
    %323 = vector.broadcast %cst_148 : f32 to vector<8x32xf32>
    %324 = arith.addf %323, %322 : vector<8x32xf32>
    %325 = arith.divf %323, %324 : vector<8x32xf32>
    %326 = arith.mulf %317, %218 : vector<8x32xf32>
    %327 = arith.mulf %311, %319 : vector<8x32xf32>
    %328 = arith.addf %326, %327 : vector<8x32xf32>
    %329 = math.tanh %328 : vector<8x32xf32>
    %330 = arith.mulf %325, %329 : vector<8x32xf32>
    %c0_149 = arith.constant 0 : index
    %c0_150 = arith.constant 0 : index
    %331 = vector.load %arg5[%c0_149, %c0_150] : memref<32x128xf32, #tpu.memory_space<vmem>>, vector<32x128xf32>
    %cst_151 = arith.constant dense<0.000000e+00> : vector<8x128xf32>
    %332 = tpu.matmul %330, %331, %cst_151 {dimension_numbers = #tpu.dot_dimension_numbers<[1], [0], [0], [1], [0, 0, 1, 1], [], []>} : vector<8x32xf32>, vector<32x128xf32>, vector<8x128xf32> -> vector<8x128xf32>
    %c0_152 = arith.constant 0 : index
    %c0_153 = arith.constant 0 : index
    %333 = vector.load %arg6[%c0_152, %c0_153] : memref<1x128xf32, #tpu.memory_space<vmem>>, vector<1x128xf32>
    %334 = vector.broadcast %333 : vector<1x128xf32> to vector<8x128xf32>
    %335 = arith.addf %332, %334 : vector<8x128xf32>
    %336 = arith.index_cast %c2_i32_106 : i32 to index
    %c0_154 = arith.constant 0 : index
    %c0_155 = arith.constant 0 : index
    %337 = vector.load %arg9[%336, %c0_154, %c0_155] : memref<8x8x128xf32, #tpu.memory_space<vmem>>, vector<1x8x128xf32>
    %338 = vector.shape_cast %337 : vector<1x8x128xf32> to vector<8x128xf32>
    %339 = vector.shape_cast %335 : vector<8x128xf32> to vector<1x8x128xf32>
    tpu.vector_store %arg9[%336, %c0_154, %c0_155], %339 {strides = array<i32>} : memref<8x8x128xf32, #tpu.memory_space<vmem>>, vector<1x8x128xf32>,
    %c3_i32 = arith.constant 3 : i32
    %cst_156 = arith.constant 0.000000e+00 : f32
    %340 = vector.broadcast %cst_156 : f32 to vector<8x128xf32>
    %c2_i32_157 = arith.constant 2 : i32
    %341 = arith.muli %c3_i32, %c2_i32_157 : i32
    %c0_i32_158 = arith.constant 0 : i32
    %342 = arith.addi %341, %c0_i32_158 : i32
    %343 = arith.index_cast %342 : i32 to index
    %344 = memref.load %arg0[%343] : memref<16xi32, #tpu.memory_space<smem>>
    %c0_i32_159 = arith.constant 0 : i32
    %345 = vector.broadcast %c0_i32_159 : i32 to vector<8x128xi32>
    %346 = arith.cmpi eq, %0, %345 : vector<8x128xi32>
    %347 = vector.broadcast %344 : i32 to vector<8x128xi32>
    %348 = arith.cmpi eq, %1, %347 : vector<8x128xi32>
    %349 = arith.andi %346, %348 : vector<8x128xi1>
    %cst_160 = arith.constant 1.000000e+00 : f32
    %cst_161 = arith.constant 0.000000e+00 : f32
    %350 = vector.broadcast %cst_160 : f32 to vector<8x128xf32>
    %351 = vector.broadcast %cst_161 : f32 to vector<8x128xf32>
    %352 = arith.select %349, %350, %351 : vector<8x128xi1>, vector<8x128xf32>
    %353 = arith.addf %340, %352 : vector<8x128xf32>
    %c2_i32_162 = arith.constant 2 : i32
    %354 = arith.muli %c3_i32, %c2_i32_162 : i32
    %c1_i32_163 = arith.constant 1 : i32
    %355 = arith.addi %354, %c1_i32_163 : i32
    %356 = arith.index_cast %355 : i32 to index
    %357 = memref.load %arg0[%356] : memref<16xi32, #tpu.memory_space<smem>>
    %c1_i32_164 = arith.constant 1 : i32
    %358 = vector.broadcast %c1_i32_164 : i32 to vector<8x128xi32>
    %359 = arith.cmpi eq, %0, %358 : vector<8x128xi32>
    %360 = vector.broadcast %357 : i32 to vector<8x128xi32>
    %361 = arith.cmpi eq, %1, %360 : vector<8x128xi32>
    %362 = arith.andi %359, %361 : vector<8x128xi1>
    %cst_165 = arith.constant 1.000000e+00 : f32
    %cst_166 = arith.constant 0.000000e+00 : f32
    %363 = vector.broadcast %cst_165 : f32 to vector<8x128xf32>
    %364 = vector.broadcast %cst_166 : f32 to vector<8x128xf32>
    %365 = arith.select %362, %363, %364 : vector<8x128xi1>, vector<8x128xf32>
    %366 = arith.addf %353, %365 : vector<8x128xf32>
    %c0_167 = arith.constant 0 : index
    %c0_168 = arith.constant 0 : index
    %367 = vector.load %arg1[%c0_167, %c0_168] : memref<128x32xf32, #tpu.memory_space<vmem>>, vector<128x32xf32>
    %cst_169 = arith.constant dense<0.000000e+00> : vector<8x32xf32>
    %368 = tpu.matmul %366, %367, %cst_169 {dimension_numbers = #tpu.dot_dimension_numbers<[1], [0], [0], [1], [0, 0, 1, 1], [], []>} : vector<8x128xf32>, vector<128x32xf32>, vector<8x32xf32> -> vector<8x32xf32>
    %c0_170 = arith.constant 0 : index
    %c0_171 = arith.constant 0 : index
    %c0_172 = arith.constant 0 : index
    %369 = vector.load %arg2[%c0_170, %c0_171, %c0_172] : memref<2x32x128xf32, #tpu.memory_space<vmem>>, vector<1x32x128xf32>
    %370 = vector.shape_cast %369 : vector<1x32x128xf32> to vector<32x128xf32>
    %cst_173 = arith.constant dense<0.000000e+00> : vector<8x128xf32>
    %371 = tpu.matmul %368, %370, %cst_173 {dimension_numbers = #tpu.dot_dimension_numbers<[1], [0], [0], [1], [0, 0, 1, 1], [], []>} : vector<8x32xf32>, vector<32x128xf32>, vector<8x128xf32> -> vector<8x128xf32>
    %c0_174 = arith.constant 0 : index
    %c0_175 = arith.constant 0 : index
    %c0_176 = arith.constant 0 : index
    %372 = vector.load %arg3[%c0_174, %c0_175, %c0_176] : memref<2x32x128xf32, #tpu.memory_space<vmem>>, vector<1x32x128xf32>
    %373 = vector.shape_cast %372 : vector<1x32x128xf32> to vector<32x128xf32>
    %cst_177 = arith.constant dense<0.000000e+00> : vector<8x128xf32>
    %374 = tpu.matmul %294, %373, %cst_177 {dimension_numbers = #tpu.dot_dimension_numbers<[1], [0], [0], [1], [0, 0, 1, 1], [], []>} : vector<8x32xf32>, vector<32x128xf32>, vector<8x128xf32> -> vector<8x128xf32>
    %375 = arith.addf %371, %374 : vector<8x128xf32>
    %c0_178 = arith.constant 0 : index
    %c0_179 = arith.constant 0 : index
    %c0_180 = arith.constant 0 : index
    %376 = vector.load %arg4[%c0_178, %c0_179, %c0_180] : memref<2x1x128xf32, #tpu.memory_space<vmem>>, vector<1x1x128xf32>
    %377 = vector.shape_cast %376 : vector<1x1x128xf32> to vector<1x128xf32>
    %378 = vector.broadcast %377 : vector<1x128xf32> to vector<8x128xf32>
    %379 = arith.addf %375, %378 : vector<8x128xf32>
    %380 = vector.extract_strided_slice %379 {offsets = [0, 0], sizes = [8, 32], strides = [1, 1]} : vector<8x128xf32> to vector<8x32xf32>
    %381 = arith.negf %380 : vector<8x32xf32>
    %382 = math.exp %381 : vector<8x32xf32>
    %cst_181 = arith.constant 1.000000e+00 : f32
    %383 = vector.broadcast %cst_181 : f32 to vector<8x32xf32>
    %384 = arith.addf %383, %382 : vector<8x32xf32>
    %385 = arith.divf %383, %384 : vector<8x32xf32>
    %386 = vector.extract_strided_slice %379 {offsets = [0, 32], sizes = [8, 32], strides = [1, 1]} : vector<8x128xf32> to vector<8x32xf32>
    %387 = arith.negf %386 : vector<8x32xf32>
    %388 = math.exp %387 : vector<8x32xf32>
    %cst_182 = arith.constant 1.000000e+00 : f32
    %389 = vector.broadcast %cst_182 : f32 to vector<8x32xf32>
    %390 = arith.addf %389, %388 : vector<8x32xf32>
    %391 = arith.divf %389, %390 : vector<8x32xf32>
    %392 = vector.extract_strided_slice %379 {offsets = [0, 64], sizes = [8, 32], strides = [1, 1]} : vector<8x128xf32> to vector<8x32xf32>
    %393 = math.tanh %392 : vector<8x32xf32>
    %394 = vector.extract_strided_slice %379 {offsets = [0, 96], sizes = [8, 32], strides = [1, 1]} : vector<8x128xf32> to vector<8x32xf32>
    %395 = arith.negf %394 : vector<8x32xf32>
    %396 = math.exp %395 : vector<8x32xf32>
    %cst_183 = arith.constant 1.000000e+00 : f32
    %397 = vector.broadcast %cst_183 : f32 to vector<8x32xf32>
    %398 = arith.addf %397, %396 : vector<8x32xf32>
    %399 = arith.divf %397, %398 : vector<8x32xf32>
    %400 = arith.mulf %391, %292 : vector<8x32xf32>
    %401 = arith.mulf %385, %393 : vector<8x32xf32>
    %402 = arith.addf %400, %401 : vector<8x32xf32>
    %403 = math.tanh %402 : vector<8x32xf32>
    %404 = arith.mulf %399, %403 : vector<8x32xf32>
    %c1_184 = arith.constant 1 : index
    %c0_185 = arith.constant 0 : index
    %c0_186 = arith.constant 0 : index
    %405 = vector.load %arg2[%c1_184, %c0_185, %c0_186] : memref<2x32x128xf32, #tpu.memory_space<vmem>>, vector<1x32x128xf32>
    %406 = vector.shape_cast %405 : vector<1x32x128xf32> to vector<32x128xf32>
    %cst_187 = arith.constant dense<0.000000e+00> : vector<8x128xf32>
    %407 = tpu.matmul %404, %406, %cst_187 {dimension_numbers = #tpu.dot_dimension_numbers<[1], [0], [0], [1], [0, 0, 1, 1], [], []>} : vector<8x32xf32>, vector<32x128xf32>, vector<8x128xf32> -> vector<8x128xf32>
    %c1_188 = arith.constant 1 : index
    %c0_189 = arith.constant 0 : index
    %c0_190 = arith.constant 0 : index
    %408 = vector.load %arg3[%c1_188, %c0_189, %c0_190] : memref<2x32x128xf32, #tpu.memory_space<vmem>>, vector<1x32x128xf32>
    %409 = vector.shape_cast %408 : vector<1x32x128xf32> to vector<32x128xf32>
    %cst_191 = arith.constant dense<0.000000e+00> : vector<8x128xf32>
    %410 = tpu.matmul %330, %409, %cst_191 {dimension_numbers = #tpu.dot_dimension_numbers<[1], [0], [0], [1], [0, 0, 1, 1], [], []>} : vector<8x32xf32>, vector<32x128xf32>, vector<8x128xf32> -> vector<8x128xf32>
    %411 = arith.addf %407, %410 : vector<8x128xf32>
    %c1_192 = arith.constant 1 : index
    %c0_193 = arith.constant 0 : index
    %c0_194 = arith.constant 0 : index
    %412 = vector.load %arg4[%c1_192, %c0_193, %c0_194] : memref<2x1x128xf32, #tpu.memory_space<vmem>>, vector<1x1x128xf32>
    %413 = vector.shape_cast %412 : vector<1x1x128xf32> to vector<1x128xf32>
    %414 = vector.broadcast %413 : vector<1x128xf32> to vector<8x128xf32>
    %415 = arith.addf %411, %414 : vector<8x128xf32>
    %416 = vector.extract_strided_slice %415 {offsets = [0, 0], sizes = [8, 32], strides = [1, 1]} : vector<8x128xf32> to vector<8x32xf32>
    %417 = arith.negf %416 : vector<8x32xf32>
    %418 = math.exp %417 : vector<8x32xf32>
    %cst_195 = arith.constant 1.000000e+00 : f32
    %419 = vector.broadcast %cst_195 : f32 to vector<8x32xf32>
    %420 = arith.addf %419, %418 : vector<8x32xf32>
    %421 = arith.divf %419, %420 : vector<8x32xf32>
    %422 = vector.extract_strided_slice %415 {offsets = [0, 32], sizes = [8, 32], strides = [1, 1]} : vector<8x128xf32> to vector<8x32xf32>
    %423 = arith.negf %422 : vector<8x32xf32>
    %424 = math.exp %423 : vector<8x32xf32>
    %cst_196 = arith.constant 1.000000e+00 : f32
    %425 = vector.broadcast %cst_196 : f32 to vector<8x32xf32>
    %426 = arith.addf %425, %424 : vector<8x32xf32>
    %427 = arith.divf %425, %426 : vector<8x32xf32>
    %428 = vector.extract_strided_slice %415 {offsets = [0, 64], sizes = [8, 32], strides = [1, 1]} : vector<8x128xf32> to vector<8x32xf32>
    %429 = math.tanh %428 : vector<8x32xf32>
    %430 = vector.extract_strided_slice %415 {offsets = [0, 96], sizes = [8, 32], strides = [1, 1]} : vector<8x128xf32> to vector<8x32xf32>
    %431 = arith.negf %430 : vector<8x32xf32>
    %432 = math.exp %431 : vector<8x32xf32>
    %cst_197 = arith.constant 1.000000e+00 : f32
    %433 = vector.broadcast %cst_197 : f32 to vector<8x32xf32>
    %434 = arith.addf %433, %432 : vector<8x32xf32>
    %435 = arith.divf %433, %434 : vector<8x32xf32>
    %436 = arith.mulf %427, %328 : vector<8x32xf32>
    %437 = arith.mulf %421, %429 : vector<8x32xf32>
    %438 = arith.addf %436, %437 : vector<8x32xf32>
    %439 = math.tanh %438 : vector<8x32xf32>
    %440 = arith.mulf %435, %439 : vector<8x32xf32>
    %c0_198 = arith.constant 0 : index
    %c0_199 = arith.constant 0 : index
    %441 = vector.load %arg5[%c0_198, %c0_199] : memref<32x128xf32, #tpu.memory_space<vmem>>, vector<32x128xf32>
    %cst_200 = arith.constant dense<0.000000e+00> : vector<8x128xf32>
    %442 = tpu.matmul %440, %441, %cst_200 {dimension_numbers = #tpu.dot_dimension_numbers<[1], [0], [0], [1], [0, 0, 1, 1], [], []>} : vector<8x32xf32>, vector<32x128xf32>, vector<8x128xf32> -> vector<8x128xf32>
    %c0_201 = arith.constant 0 : index
    %c0_202 = arith.constant 0 : index
    %443 = vector.load %arg6[%c0_201, %c0_202] : memref<1x128xf32, #tpu.memory_space<vmem>>, vector<1x128xf32>
    %444 = vector.broadcast %443 : vector<1x128xf32> to vector<8x128xf32>
    %445 = arith.addf %442, %444 : vector<8x128xf32>
    %446 = arith.index_cast %c3_i32 : i32 to index
    %c0_203 = arith.constant 0 : index
    %c0_204 = arith.constant 0 : index
    %447 = vector.load %arg9[%446, %c0_203, %c0_204] : memref<8x8x128xf32, #tpu.memory_space<vmem>>, vector<1x8x128xf32>
    %448 = vector.shape_cast %447 : vector<1x8x128xf32> to vector<8x128xf32>
    %449 = vector.shape_cast %445 : vector<8x128xf32> to vector<1x8x128xf32>
    tpu.vector_store %arg9[%446, %c0_203, %c0_204], %449 {strides = array<i32>} : memref<8x8x128xf32, #tpu.memory_space<vmem>>, vector<1x8x128xf32>,
    %c4_i32 = arith.constant 4 : i32
    %cst_205 = arith.constant 0.000000e+00 : f32
    %450 = vector.broadcast %cst_205 : f32 to vector<8x128xf32>
    %c2_i32_206 = arith.constant 2 : i32
    %451 = arith.muli %c4_i32, %c2_i32_206 : i32
    %c0_i32_207 = arith.constant 0 : i32
    %452 = arith.addi %451, %c0_i32_207 : i32
    %453 = arith.index_cast %452 : i32 to index
    %454 = memref.load %arg0[%453] : memref<16xi32, #tpu.memory_space<smem>>
    %c0_i32_208 = arith.constant 0 : i32
    %455 = vector.broadcast %c0_i32_208 : i32 to vector<8x128xi32>
    %456 = arith.cmpi eq, %0, %455 : vector<8x128xi32>
    %457 = vector.broadcast %454 : i32 to vector<8x128xi32>
    %458 = arith.cmpi eq, %1, %457 : vector<8x128xi32>
    %459 = arith.andi %456, %458 : vector<8x128xi1>
    %cst_209 = arith.constant 1.000000e+00 : f32
    %cst_210 = arith.constant 0.000000e+00 : f32
    %460 = vector.broadcast %cst_209 : f32 to vector<8x128xf32>
    %461 = vector.broadcast %cst_210 : f32 to vector<8x128xf32>
    %462 = arith.select %459, %460, %461 : vector<8x128xi1>, vector<8x128xf32>
    %463 = arith.addf %450, %462 : vector<8x128xf32>
    %c2_i32_211 = arith.constant 2 : i32
    %464 = arith.muli %c4_i32, %c2_i32_211 : i32
    %c1_i32_212 = arith.constant 1 : i32
    %465 = arith.addi %464, %c1_i32_212 : i32
    %466 = arith.index_cast %465 : i32 to index
    %467 = memref.load %arg0[%466] : memref<16xi32, #tpu.memory_space<smem>>
    %c1_i32_213 = arith.constant 1 : i32
    %468 = vector.broadcast %c1_i32_213 : i32 to vector<8x128xi32>
    %469 = arith.cmpi eq, %0, %468 : vector<8x128xi32>
    %470 = vector.broadcast %467 : i32 to vector<8x128xi32>
    %471 = arith.cmpi eq, %1, %470 : vector<8x128xi32>
    %472 = arith.andi %469, %471 : vector<8x128xi1>
    %cst_214 = arith.constant 1.000000e+00 : f32
    %cst_215 = arith.constant 0.000000e+00 : f32
    %473 = vector.broadcast %cst_214 : f32 to vector<8x128xf32>
    %474 = vector.broadcast %cst_215 : f32 to vector<8x128xf32>
    %475 = arith.select %472, %473, %474 : vector<8x128xi1>, vector<8x128xf32>
    %476 = arith.addf %463, %475 : vector<8x128xf32>
    %c0_216 = arith.constant 0 : index
    %c0_217 = arith.constant 0 : index
    %477 = vector.load %arg1[%c0_216, %c0_217] : memref<128x32xf32, #tpu.memory_space<vmem>>, vector<128x32xf32>
    %cst_218 = arith.constant dense<0.000000e+00> : vector<8x32xf32>
    %478 = tpu.matmul %476, %477, %cst_218 {dimension_numbers = #tpu.dot_dimension_numbers<[1], [0], [0], [1], [0, 0, 1, 1], [], []>} : vector<8x128xf32>, vector<128x32xf32>, vector<8x32xf32> -> vector<8x32xf32>
    %c0_219 = arith.constant 0 : index
    %c0_220 = arith.constant 0 : index
    %c0_221 = arith.constant 0 : index
    %479 = vector.load %arg2[%c0_219, %c0_220, %c0_221] : memref<2x32x128xf32, #tpu.memory_space<vmem>>, vector<1x32x128xf32>
    %480 = vector.shape_cast %479 : vector<1x32x128xf32> to vector<32x128xf32>
    %cst_222 = arith.constant dense<0.000000e+00> : vector<8x128xf32>
    %481 = tpu.matmul %478, %480, %cst_222 {dimension_numbers = #tpu.dot_dimension_numbers<[1], [0], [0], [1], [0, 0, 1, 1], [], []>} : vector<8x32xf32>, vector<32x128xf32>, vector<8x128xf32> -> vector<8x128xf32>
    %c0_223 = arith.constant 0 : index
    %c0_224 = arith.constant 0 : index
    %c0_225 = arith.constant 0 : index
    %482 = vector.load %arg3[%c0_223, %c0_224, %c0_225] : memref<2x32x128xf32, #tpu.memory_space<vmem>>, vector<1x32x128xf32>
    %483 = vector.shape_cast %482 : vector<1x32x128xf32> to vector<32x128xf32>
    %cst_226 = arith.constant dense<0.000000e+00> : vector<8x128xf32>
    %484 = tpu.matmul %404, %483, %cst_226 {dimension_numbers = #tpu.dot_dimension_numbers<[1], [0], [0], [1], [0, 0, 1, 1], [], []>} : vector<8x32xf32>, vector<32x128xf32>, vector<8x128xf32> -> vector<8x128xf32>
    %485 = arith.addf %481, %484 : vector<8x128xf32>
    %c0_227 = arith.constant 0 : index
    %c0_228 = arith.constant 0 : index
    %c0_229 = arith.constant 0 : index
    %486 = vector.load %arg4[%c0_227, %c0_228, %c0_229] : memref<2x1x128xf32, #tpu.memory_space<vmem>>, vector<1x1x128xf32>
    %487 = vector.shape_cast %486 : vector<1x1x128xf32> to vector<1x128xf32>
    %488 = vector.broadcast %487 : vector<1x128xf32> to vector<8x128xf32>
    %489 = arith.addf %485, %488 : vector<8x128xf32>
    %490 = vector.extract_strided_slice %489 {offsets = [0, 0], sizes = [8, 32], strides = [1, 1]} : vector<8x128xf32> to vector<8x32xf32>
    %491 = arith.negf %490 : vector<8x32xf32>
    %492 = math.exp %491 : vector<8x32xf32>
    %cst_230 = arith.constant 1.000000e+00 : f32
    %493 = vector.broadcast %cst_230 : f32 to vector<8x32xf32>
    %494 = arith.addf %493, %492 : vector<8x32xf32>
    %495 = arith.divf %493, %494 : vector<8x32xf32>
    %496 = vector.extract_strided_slice %489 {offsets = [0, 32], sizes = [8, 32], strides = [1, 1]} : vector<8x128xf32> to vector<8x32xf32>
    %497 = arith.negf %496 : vector<8x32xf32>
    %498 = math.exp %497 : vector<8x32xf32>
    %cst_231 = arith.constant 1.000000e+00 : f32
    %499 = vector.broadcast %cst_231 : f32 to vector<8x32xf32>
    %500 = arith.addf %499, %498 : vector<8x32xf32>
    %501 = arith.divf %499, %500 : vector<8x32xf32>
    %502 = vector.extract_strided_slice %489 {offsets = [0, 64], sizes = [8, 32], strides = [1, 1]} : vector<8x128xf32> to vector<8x32xf32>
    %503 = math.tanh %502 : vector<8x32xf32>
    %504 = vector.extract_strided_slice %489 {offsets = [0, 96], sizes = [8, 32], strides = [1, 1]} : vector<8x128xf32> to vector<8x32xf32>
    %505 = arith.negf %504 : vector<8x32xf32>
    %506 = math.exp %505 : vector<8x32xf32>
    %cst_232 = arith.constant 1.000000e+00 : f32
    %507 = vector.broadcast %cst_232 : f32 to vector<8x32xf32>
    %508 = arith.addf %507, %506 : vector<8x32xf32>
    %509 = arith.divf %507, %508 : vector<8x32xf32>
    %510 = arith.mulf %501, %402 : vector<8x32xf32>
    %511 = arith.mulf %495, %503 : vector<8x32xf32>
    %512 = arith.addf %510, %511 : vector<8x32xf32>
    %513 = math.tanh %512 : vector<8x32xf32>
    %514 = arith.mulf %509, %513 : vector<8x32xf32>
    %c1_233 = arith.constant 1 : index
    %c0_234 = arith.constant 0 : index
    %c0_235 = arith.constant 0 : index
    %515 = vector.load %arg2[%c1_233, %c0_234, %c0_235] : memref<2x32x128xf32, #tpu.memory_space<vmem>>, vector<1x32x128xf32>
    %516 = vector.shape_cast %515 : vector<1x32x128xf32> to vector<32x128xf32>
    %cst_236 = arith.constant dense<0.000000e+00> : vector<8x128xf32>
    %517 = tpu.matmul %514, %516, %cst_236 {dimension_numbers = #tpu.dot_dimension_numbers<[1], [0], [0], [1], [0, 0, 1, 1], [], []>} : vector<8x32xf32>, vector<32x128xf32>, vector<8x128xf32> -> vector<8x128xf32>
    %c1_237 = arith.constant 1 : index
    %c0_238 = arith.constant 0 : index
    %c0_239 = arith.constant 0 : index
    %518 = vector.load %arg3[%c1_237, %c0_238, %c0_239] : memref<2x32x128xf32, #tpu.memory_space<vmem>>, vector<1x32x128xf32>
    %519 = vector.shape_cast %518 : vector<1x32x128xf32> to vector<32x128xf32>
    %cst_240 = arith.constant dense<0.000000e+00> : vector<8x128xf32>
    %520 = tpu.matmul %440, %519, %cst_240 {dimension_numbers = #tpu.dot_dimension_numbers<[1], [0], [0], [1], [0, 0, 1, 1], [], []>} : vector<8x32xf32>, vector<32x128xf32>, vector<8x128xf32> -> vector<8x128xf32>
    %521 = arith.addf %517, %520 : vector<8x128xf32>
    %c1_241 = arith.constant 1 : index
    %c0_242 = arith.constant 0 : index
    %c0_243 = arith.constant 0 : index
    %522 = vector.load %arg4[%c1_241, %c0_242, %c0_243] : memref<2x1x128xf32, #tpu.memory_space<vmem>>, vector<1x1x128xf32>
    %523 = vector.shape_cast %522 : vector<1x1x128xf32> to vector<1x128xf32>
    %524 = vector.broadcast %523 : vector<1x128xf32> to vector<8x128xf32>
    %525 = arith.addf %521, %524 : vector<8x128xf32>
    %526 = vector.extract_strided_slice %525 {offsets = [0, 0], sizes = [8, 32], strides = [1, 1]} : vector<8x128xf32> to vector<8x32xf32>
    %527 = arith.negf %526 : vector<8x32xf32>
    %528 = math.exp %527 : vector<8x32xf32>
    %cst_244 = arith.constant 1.000000e+00 : f32
    %529 = vector.broadcast %cst_244 : f32 to vector<8x32xf32>
    %530 = arith.addf %529, %528 : vector<8x32xf32>
    %531 = arith.divf %529, %530 : vector<8x32xf32>
    %532 = vector.extract_strided_slice %525 {offsets = [0, 32], sizes = [8, 32], strides = [1, 1]} : vector<8x128xf32> to vector<8x32xf32>
    %533 = arith.negf %532 : vector<8x32xf32>
    %534 = math.exp %533 : vector<8x32xf32>
    %cst_245 = arith.constant 1.000000e+00 : f32
    %535 = vector.broadcast %cst_245 : f32 to vector<8x32xf32>
    %536 = arith.addf %535, %534 : vector<8x32xf32>
    %537 = arith.divf %535, %536 : vector<8x32xf32>
    %538 = vector.extract_strided_slice %525 {offsets = [0, 64], sizes = [8, 32], strides = [1, 1]} : vector<8x128xf32> to vector<8x32xf32>
    %539 = math.tanh %538 : vector<8x32xf32>
    %540 = vector.extract_strided_slice %525 {offsets = [0, 96], sizes = [8, 32], strides = [1, 1]} : vector<8x128xf32> to vector<8x32xf32>
    %541 = arith.negf %540 : vector<8x32xf32>
    %542 = math.exp %541 : vector<8x32xf32>
    %cst_246 = arith.constant 1.000000e+00 : f32
    %543 = vector.broadcast %cst_246 : f32 to vector<8x32xf32>
    %544 = arith.addf %543, %542 : vector<8x32xf32>
    %545 = arith.divf %543, %544 : vector<8x32xf32>
    %546 = arith.mulf %537, %438 : vector<8x32xf32>
    %547 = arith.mulf %531, %539 : vector<8x32xf32>
    %548 = arith.addf %546, %547 : vector<8x32xf32>
    %549 = math.tanh %548 : vector<8x32xf32>
    %550 = arith.mulf %545, %549 : vector<8x32xf32>
    %c0_247 = arith.constant 0 : index
    %c0_248 = arith.constant 0 : index
    %551 = vector.load %arg5[%c0_247, %c0_248] : memref<32x128xf32, #tpu.memory_space<vmem>>, vector<32x128xf32>
    %cst_249 = arith.constant dense<0.000000e+00> : vector<8x128xf32>
    %552 = tpu.matmul %550, %551, %cst_249 {dimension_numbers = #tpu.dot_dimension_numbers<[1], [0], [0], [1], [0, 0, 1, 1], [], []>} : vector<8x32xf32>, vector<32x128xf32>, vector<8x128xf32> -> vector<8x128xf32>
    %c0_250 = arith.constant 0 : index
    %c0_251 = arith.constant 0 : index
    %553 = vector.load %arg6[%c0_250, %c0_251] : memref<1x128xf32, #tpu.memory_space<vmem>>, vector<1x128xf32>
    %554 = vector.broadcast %553 : vector<1x128xf32> to vector<8x128xf32>
    %555 = arith.addf %552, %554 : vector<8x128xf32>
    %556 = arith.index_cast %c4_i32 : i32 to index
    %c0_252 = arith.constant 0 : index
    %c0_253 = arith.constant 0 : index
    %557 = vector.load %arg9[%556, %c0_252, %c0_253] : memref<8x8x128xf32, #tpu.memory_space<vmem>>, vector<1x8x128xf32>
    %558 = vector.shape_cast %557 : vector<1x8x128xf32> to vector<8x128xf32>
    %559 = vector.shape_cast %555 : vector<8x128xf32> to vector<1x8x128xf32>
    tpu.vector_store %arg9[%556, %c0_252, %c0_253], %559 {strides = array<i32>} : memref<8x8x128xf32, #tpu.memory_space<vmem>>, vector<1x8x128xf32>,
    %c5_i32 = arith.constant 5 : i32
    %cst_254 = arith.constant 0.000000e+00 : f32
    %560 = vector.broadcast %cst_254 : f32 to vector<8x128xf32>
    %c2_i32_255 = arith.constant 2 : i32
    %561 = arith.muli %c5_i32, %c2_i32_255 : i32
    %c0_i32_256 = arith.constant 0 : i32
    %562 = arith.addi %561, %c0_i32_256 : i32
    %563 = arith.index_cast %562 : i32 to index
    %564 = memref.load %arg0[%563] : memref<16xi32, #tpu.memory_space<smem>>
    %c0_i32_257 = arith.constant 0 : i32
    %565 = vector.broadcast %c0_i32_257 : i32 to vector<8x128xi32>
    %566 = arith.cmpi eq, %0, %565 : vector<8x128xi32>
    %567 = vector.broadcast %564 : i32 to vector<8x128xi32>
    %568 = arith.cmpi eq, %1, %567 : vector<8x128xi32>
    %569 = arith.andi %566, %568 : vector<8x128xi1>
    %cst_258 = arith.constant 1.000000e+00 : f32
    %cst_259 = arith.constant 0.000000e+00 : f32
    %570 = vector.broadcast %cst_258 : f32 to vector<8x128xf32>
    %571 = vector.broadcast %cst_259 : f32 to vector<8x128xf32>
    %572 = arith.select %569, %570, %571 : vector<8x128xi1>, vector<8x128xf32>
    %573 = arith.addf %560, %572 : vector<8x128xf32>
    %c2_i32_260 = arith.constant 2 : i32
    %574 = arith.muli %c5_i32, %c2_i32_260 : i32
    %c1_i32_261 = arith.constant 1 : i32
    %575 = arith.addi %574, %c1_i32_261 : i32
    %576 = arith.index_cast %575 : i32 to index
    %577 = memref.load %arg0[%576] : memref<16xi32, #tpu.memory_space<smem>>
    %c1_i32_262 = arith.constant 1 : i32
    %578 = vector.broadcast %c1_i32_262 : i32 to vector<8x128xi32>
    %579 = arith.cmpi eq, %0, %578 : vector<8x128xi32>
    %580 = vector.broadcast %577 : i32 to vector<8x128xi32>
    %581 = arith.cmpi eq, %1, %580 : vector<8x128xi32>
    %582 = arith.andi %579, %581 : vector<8x128xi1>
    %cst_263 = arith.constant 1.000000e+00 : f32
    %cst_264 = arith.constant 0.000000e+00 : f32
    %583 = vector.broadcast %cst_263 : f32 to vector<8x128xf32>
    %584 = vector.broadcast %cst_264 : f32 to vector<8x128xf32>
    %585 = arith.select %582, %583, %584 : vector<8x128xi1>, vector<8x128xf32>
    %586 = arith.addf %573, %585 : vector<8x128xf32>
    %c0_265 = arith.constant 0 : index
    %c0_266 = arith.constant 0 : index
    %587 = vector.load %arg1[%c0_265, %c0_266] : memref<128x32xf32, #tpu.memory_space<vmem>>, vector<128x32xf32>
    %cst_267 = arith.constant dense<0.000000e+00> : vector<8x32xf32>
    %588 = tpu.matmul %586, %587, %cst_267 {dimension_numbers = #tpu.dot_dimension_numbers<[1], [0], [0], [1], [0, 0, 1, 1], [], []>} : vector<8x128xf32>, vector<128x32xf32>, vector<8x32xf32> -> vector<8x32xf32>
    %c0_268 = arith.constant 0 : index
    %c0_269 = arith.constant 0 : index
    %c0_270 = arith.constant 0 : index
    %589 = vector.load %arg2[%c0_268, %c0_269, %c0_270] : memref<2x32x128xf32, #tpu.memory_space<vmem>>, vector<1x32x128xf32>
    %590 = vector.shape_cast %589 : vector<1x32x128xf32> to vector<32x128xf32>
    %cst_271 = arith.constant dense<0.000000e+00> : vector<8x128xf32>
    %591 = tpu.matmul %588, %590, %cst_271 {dimension_numbers = #tpu.dot_dimension_numbers<[1], [0], [0], [1], [0, 0, 1, 1], [], []>} : vector<8x32xf32>, vector<32x128xf32>, vector<8x128xf32> -> vector<8x128xf32>
    %c0_272 = arith.constant 0 : index
    %c0_273 = arith.constant 0 : index
    %c0_274 = arith.constant 0 : index
    %592 = vector.load %arg3[%c0_272, %c0_273, %c0_274] : memref<2x32x128xf32, #tpu.memory_space<vmem>>, vector<1x32x128xf32>
    %593 = vector.shape_cast %592 : vector<1x32x128xf32> to vector<32x128xf32>
    %cst_275 = arith.constant dense<0.000000e+00> : vector<8x128xf32>
    %594 = tpu.matmul %514, %593, %cst_275 {dimension_numbers = #tpu.dot_dimension_numbers<[1], [0], [0], [1], [0, 0, 1, 1], [], []>} : vector<8x32xf32>, vector<32x128xf32>, vector<8x128xf32> -> vector<8x128xf32>
    %595 = arith.addf %591, %594 : vector<8x128xf32>
    %c0_276 = arith.constant 0 : index
    %c0_277 = arith.constant 0 : index
    %c0_278 = arith.constant 0 : index
    %596 = vector.load %arg4[%c0_276, %c0_277, %c0_278] : memref<2x1x128xf32, #tpu.memory_space<vmem>>, vector<1x1x128xf32>
    %597 = vector.shape_cast %596 : vector<1x1x128xf32> to vector<1x128xf32>
    %598 = vector.broadcast %597 : vector<1x128xf32> to vector<8x128xf32>
    %599 = arith.addf %595, %598 : vector<8x128xf32>
    %600 = vector.extract_strided_slice %599 {offsets = [0, 0], sizes = [8, 32], strides = [1, 1]} : vector<8x128xf32> to vector<8x32xf32>
    %601 = arith.negf %600 : vector<8x32xf32>
    %602 = math.exp %601 : vector<8x32xf32>
    %cst_279 = arith.constant 1.000000e+00 : f32
    %603 = vector.broadcast %cst_279 : f32 to vector<8x32xf32>
    %604 = arith.addf %603, %602 : vector<8x32xf32>
    %605 = arith.divf %603, %604 : vector<8x32xf32>
    %606 = vector.extract_strided_slice %599 {offsets = [0, 32], sizes = [8, 32], strides = [1, 1]} : vector<8x128xf32> to vector<8x32xf32>
    %607 = arith.negf %606 : vector<8x32xf32>
    %608 = math.exp %607 : vector<8x32xf32>
    %cst_280 = arith.constant 1.000000e+00 : f32
    %609 = vector.broadcast %cst_280 : f32 to vector<8x32xf32>
    %610 = arith.addf %609, %608 : vector<8x32xf32>
    %611 = arith.divf %609, %610 : vector<8x32xf32>
    %612 = vector.extract_strided_slice %599 {offsets = [0, 64], sizes = [8, 32], strides = [1, 1]} : vector<8x128xf32> to vector<8x32xf32>
    %613 = math.tanh %612 : vector<8x32xf32>
    %614 = vector.extract_strided_slice %599 {offsets = [0, 96], sizes = [8, 32], strides = [1, 1]} : vector<8x128xf32> to vector<8x32xf32>
    %615 = arith.negf %614 : vector<8x32xf32>
    %616 = math.exp %615 : vector<8x32xf32>
    %cst_281 = arith.constant 1.000000e+00 : f32
    %617 = vector.broadcast %cst_281 : f32 to vector<8x32xf32>
    %618 = arith.addf %617, %616 : vector<8x32xf32>
    %619 = arith.divf %617, %618 : vector<8x32xf32>
    %620 = arith.mulf %611, %512 : vector<8x32xf32>
    %621 = arith.mulf %605, %613 : vector<8x32xf32>
    %622 = arith.addf %620, %621 : vector<8x32xf32>
    %623 = math.tanh %622 : vector<8x32xf32>
    %624 = arith.mulf %619, %623 : vector<8x32xf32>
    %c1_282 = arith.constant 1 : index
    %c0_283 = arith.constant 0 : index
    %c0_284 = arith.constant 0 : index
    %625 = vector.load %arg2[%c1_282, %c0_283, %c0_284] : memref<2x32x128xf32, #tpu.memory_space<vmem>>, vector<1x32x128xf32>
    %626 = vector.shape_cast %625 : vector<1x32x128xf32> to vector<32x128xf32>
    %cst_285 = arith.constant dense<0.000000e+00> : vector<8x128xf32>
    %627 = tpu.matmul %624, %626, %cst_285 {dimension_numbers = #tpu.dot_dimension_numbers<[1], [0], [0], [1], [0, 0, 1, 1], [], []>} : vector<8x32xf32>, vector<32x128xf32>, vector<8x128xf32> -> vector<8x128xf32>
    %c1_286 = arith.constant 1 : index
    %c0_287 = arith.constant 0 : index
    %c0_288 = arith.constant 0 : index
    %628 = vector.load %arg3[%c1_286, %c0_287, %c0_288] : memref<2x32x128xf32, #tpu.memory_space<vmem>>, vector<1x32x128xf32>
    %629 = vector.shape_cast %628 : vector<1x32x128xf32> to vector<32x128xf32>
    %cst_289 = arith.constant dense<0.000000e+00> : vector<8x128xf32>
    %630 = tpu.matmul %550, %629, %cst_289 {dimension_numbers = #tpu.dot_dimension_numbers<[1], [0], [0], [1], [0, 0, 1, 1], [], []>} : vector<8x32xf32>, vector<32x128xf32>, vector<8x128xf32> -> vector<8x128xf32>
    %631 = arith.addf %627, %630 : vector<8x128xf32>
    %c1_290 = arith.constant 1 : index
    %c0_291 = arith.constant 0 : index
    %c0_292 = arith.constant 0 : index
    %632 = vector.load %arg4[%c1_290, %c0_291, %c0_292] : memref<2x1x128xf32, #tpu.memory_space<vmem>>, vector<1x1x128xf32>
    %633 = vector.shape_cast %632 : vector<1x1x128xf32> to vector<1x128xf32>
    %634 = vector.broadcast %633 : vector<1x128xf32> to vector<8x128xf32>
    %635 = arith.addf %631, %634 : vector<8x128xf32>
    %636 = vector.extract_strided_slice %635 {offsets = [0, 0], sizes = [8, 32], strides = [1, 1]} : vector<8x128xf32> to vector<8x32xf32>
    %637 = arith.negf %636 : vector<8x32xf32>
    %638 = math.exp %637 : vector<8x32xf32>
    %cst_293 = arith.constant 1.000000e+00 : f32
    %639 = vector.broadcast %cst_293 : f32 to vector<8x32xf32>
    %640 = arith.addf %639, %638 : vector<8x32xf32>
    %641 = arith.divf %639, %640 : vector<8x32xf32>
    %642 = vector.extract_strided_slice %635 {offsets = [0, 32], sizes = [8, 32], strides = [1, 1]} : vector<8x128xf32> to vector<8x32xf32>
    %643 = arith.negf %642 : vector<8x32xf32>
    %644 = math.exp %643 : vector<8x32xf32>
    %cst_294 = arith.constant 1.000000e+00 : f32
    %645 = vector.broadcast %cst_294 : f32 to vector<8x32xf32>
    %646 = arith.addf %645, %644 : vector<8x32xf32>
    %647 = arith.divf %645, %646 : vector<8x32xf32>
    %648 = vector.extract_strided_slice %635 {offsets = [0, 64], sizes = [8, 32], strides = [1, 1]} : vector<8x128xf32> to vector<8x32xf32>
    %649 = math.tanh %648 : vector<8x32xf32>
    %650 = vector.extract_strided_slice %635 {offsets = [0, 96], sizes = [8, 32], strides = [1, 1]} : vector<8x128xf32> to vector<8x32xf32>
    %651 = arith.negf %650 : vector<8x32xf32>
    %652 = math.exp %651 : vector<8x32xf32>
    %cst_295 = arith.constant 1.000000e+00 : f32
    %653 = vector.broadcast %cst_295 : f32 to vector<8x32xf32>
    %654 = arith.addf %653, %652 : vector<8x32xf32>
    %655 = arith.divf %653, %654 : vector<8x32xf32>
    %656 = arith.mulf %647, %548 : vector<8x32xf32>
    %657 = arith.mulf %641, %649 : vector<8x32xf32>
    %658 = arith.addf %656, %657 : vector<8x32xf32>
    %659 = math.tanh %658 : vector<8x32xf32>
    %660 = arith.mulf %655, %659 : vector<8x32xf32>
    %c0_296 = arith.constant 0 : index
    %c0_297 = arith.constant 0 : index
    %661 = vector.load %arg5[%c0_296, %c0_297] : memref<32x128xf32, #tpu.memory_space<vmem>>, vector<32x128xf32>
    %cst_298 = arith.constant dense<0.000000e+00> : vector<8x128xf32>
    %662 = tpu.matmul %660, %661, %cst_298 {dimension_numbers = #tpu.dot_dimension_numbers<[1], [0], [0], [1], [0, 0, 1, 1], [], []>} : vector<8x32xf32>, vector<32x128xf32>, vector<8x128xf32> -> vector<8x128xf32>
    %c0_299 = arith.constant 0 : index
    %c0_300 = arith.constant 0 : index
    %663 = vector.load %arg6[%c0_299, %c0_300] : memref<1x128xf32, #tpu.memory_space<vmem>>, vector<1x128xf32>
    %664 = vector.broadcast %663 : vector<1x128xf32> to vector<8x128xf32>
    %665 = arith.addf %662, %664 : vector<8x128xf32>
    %666 = arith.index_cast %c5_i32 : i32 to index
    %c0_301 = arith.constant 0 : index
    %c0_302 = arith.constant 0 : index
    %667 = vector.load %arg9[%666, %c0_301, %c0_302] : memref<8x8x128xf32, #tpu.memory_space<vmem>>, vector<1x8x128xf32>
    %668 = vector.shape_cast %667 : vector<1x8x128xf32> to vector<8x128xf32>
    %669 = vector.shape_cast %665 : vector<8x128xf32> to vector<1x8x128xf32>
    tpu.vector_store %arg9[%666, %c0_301, %c0_302], %669 {strides = array<i32>} : memref<8x8x128xf32, #tpu.memory_space<vmem>>, vector<1x8x128xf32>,
    %c6_i32 = arith.constant 6 : i32
    %cst_303 = arith.constant 0.000000e+00 : f32
    %670 = vector.broadcast %cst_303 : f32 to vector<8x128xf32>
    %c2_i32_304 = arith.constant 2 : i32
    %671 = arith.muli %c6_i32, %c2_i32_304 : i32
    %c0_i32_305 = arith.constant 0 : i32
    %672 = arith.addi %671, %c0_i32_305 : i32
    %673 = arith.index_cast %672 : i32 to index
    %674 = memref.load %arg0[%673] : memref<16xi32, #tpu.memory_space<smem>>
    %c0_i32_306 = arith.constant 0 : i32
    %675 = vector.broadcast %c0_i32_306 : i32 to vector<8x128xi32>
    %676 = arith.cmpi eq, %0, %675 : vector<8x128xi32>
    %677 = vector.broadcast %674 : i32 to vector<8x128xi32>
    %678 = arith.cmpi eq, %1, %677 : vector<8x128xi32>
    %679 = arith.andi %676, %678 : vector<8x128xi1>
    %cst_307 = arith.constant 1.000000e+00 : f32
    %cst_308 = arith.constant 0.000000e+00 : f32
    %680 = vector.broadcast %cst_307 : f32 to vector<8x128xf32>
    %681 = vector.broadcast %cst_308 : f32 to vector<8x128xf32>
    %682 = arith.select %679, %680, %681 : vector<8x128xi1>, vector<8x128xf32>
    %683 = arith.addf %670, %682 : vector<8x128xf32>
    %c2_i32_309 = arith.constant 2 : i32
    %684 = arith.muli %c6_i32, %c2_i32_309 : i32
    %c1_i32_310 = arith.constant 1 : i32
    %685 = arith.addi %684, %c1_i32_310 : i32
    %686 = arith.index_cast %685 : i32 to index
    %687 = memref.load %arg0[%686] : memref<16xi32, #tpu.memory_space<smem>>
    %c1_i32_311 = arith.constant 1 : i32
    %688 = vector.broadcast %c1_i32_311 : i32 to vector<8x128xi32>
    %689 = arith.cmpi eq, %0, %688 : vector<8x128xi32>
    %690 = vector.broadcast %687 : i32 to vector<8x128xi32>
    %691 = arith.cmpi eq, %1, %690 : vector<8x128xi32>
    %692 = arith.andi %689, %691 : vector<8x128xi1>
    %cst_312 = arith.constant 1.000000e+00 : f32
    %cst_313 = arith.constant 0.000000e+00 : f32
    %693 = vector.broadcast %cst_312 : f32 to vector<8x128xf32>
    %694 = vector.broadcast %cst_313 : f32 to vector<8x128xf32>
    %695 = arith.select %692, %693, %694 : vector<8x128xi1>, vector<8x128xf32>
    %696 = arith.addf %683, %695 : vector<8x128xf32>
    %c0_314 = arith.constant 0 : index
    %c0_315 = arith.constant 0 : index
    %697 = vector.load %arg1[%c0_314, %c0_315] : memref<128x32xf32, #tpu.memory_space<vmem>>, vector<128x32xf32>
    %cst_316 = arith.constant dense<0.000000e+00> : vector<8x32xf32>
    %698 = tpu.matmul %696, %697, %cst_316 {dimension_numbers = #tpu.dot_dimension_numbers<[1], [0], [0], [1], [0, 0, 1, 1], [], []>} : vector<8x128xf32>, vector<128x32xf32>, vector<8x32xf32> -> vector<8x32xf32>
    %c0_317 = arith.constant 0 : index
    %c0_318 = arith.constant 0 : index
    %c0_319 = arith.constant 0 : index
    %699 = vector.load %arg2[%c0_317, %c0_318, %c0_319] : memref<2x32x128xf32, #tpu.memory_space<vmem>>, vector<1x32x128xf32>
    %700 = vector.shape_cast %699 : vector<1x32x128xf32> to vector<32x128xf32>
    %cst_320 = arith.constant dense<0.000000e+00> : vector<8x128xf32>
    %701 = tpu.matmul %698, %700, %cst_320 {dimension_numbers = #tpu.dot_dimension_numbers<[1], [0], [0], [1], [0, 0, 1, 1], [], []>} : vector<8x32xf32>, vector<32x128xf32>, vector<8x128xf32> -> vector<8x128xf32>
    %c0_321 = arith.constant 0 : index
    %c0_322 = arith.constant 0 : index
    %c0_323 = arith.constant 0 : index
    %702 = vector.load %arg3[%c0_321, %c0_322, %c0_323] : memref<2x32x128xf32, #tpu.memory_space<vmem>>, vector<1x32x128xf32>
    %703 = vector.shape_cast %702 : vector<1x32x128xf32> to vector<32x128xf32>
    %cst_324 = arith.constant dense<0.000000e+00> : vector<8x128xf32>
    %704 = tpu.matmul %624, %703, %cst_324 {dimension_numbers = #tpu.dot_dimension_numbers<[1], [0], [0], [1], [0, 0, 1, 1], [], []>} : vector<8x32xf32>, vector<32x128xf32>, vector<8x128xf32> -> vector<8x128xf32>
    %705 = arith.addf %701, %704 : vector<8x128xf32>
    %c0_325 = arith.constant 0 : index
    %c0_326 = arith.constant 0 : index
    %c0_327 = arith.constant 0 : index
    %706 = vector.load %arg4[%c0_325, %c0_326, %c0_327] : memref<2x1x128xf32, #tpu.memory_space<vmem>>, vector<1x1x128xf32>
    %707 = vector.shape_cast %706 : vector<1x1x128xf32> to vector<1x128xf32>
    %708 = vector.broadcast %707 : vector<1x128xf32> to vector<8x128xf32>
    %709 = arith.addf %705, %708 : vector<8x128xf32>
    %710 = vector.extract_strided_slice %709 {offsets = [0, 0], sizes = [8, 32], strides = [1, 1]} : vector<8x128xf32> to vector<8x32xf32>
    %711 = arith.negf %710 : vector<8x32xf32>
    %712 = math.exp %711 : vector<8x32xf32>
    %cst_328 = arith.constant 1.000000e+00 : f32
    %713 = vector.broadcast %cst_328 : f32 to vector<8x32xf32>
    %714 = arith.addf %713, %712 : vector<8x32xf32>
    %715 = arith.divf %713, %714 : vector<8x32xf32>
    %716 = vector.extract_strided_slice %709 {offsets = [0, 32], sizes = [8, 32], strides = [1, 1]} : vector<8x128xf32> to vector<8x32xf32>
    %717 = arith.negf %716 : vector<8x32xf32>
    %718 = math.exp %717 : vector<8x32xf32>
    %cst_329 = arith.constant 1.000000e+00 : f32
    %719 = vector.broadcast %cst_329 : f32 to vector<8x32xf32>
    %720 = arith.addf %719, %718 : vector<8x32xf32>
    %721 = arith.divf %719, %720 : vector<8x32xf32>
    %722 = vector.extract_strided_slice %709 {offsets = [0, 64], sizes = [8, 32], strides = [1, 1]} : vector<8x128xf32> to vector<8x32xf32>
    %723 = math.tanh %722 : vector<8x32xf32>
    %724 = vector.extract_strided_slice %709 {offsets = [0, 96], sizes = [8, 32], strides = [1, 1]} : vector<8x128xf32> to vector<8x32xf32>
    %725 = arith.negf %724 : vector<8x32xf32>
    %726 = math.exp %725 : vector<8x32xf32>
    %cst_330 = arith.constant 1.000000e+00 : f32
    %727 = vector.broadcast %cst_330 : f32 to vector<8x32xf32>
    %728 = arith.addf %727, %726 : vector<8x32xf32>
    %729 = arith.divf %727, %728 : vector<8x32xf32>
    %730 = arith.mulf %721, %622 : vector<8x32xf32>
    %731 = arith.mulf %715, %723 : vector<8x32xf32>
    %732 = arith.addf %730, %731 : vector<8x32xf32>
    %733 = math.tanh %732 : vector<8x32xf32>
    %734 = arith.mulf %729, %733 : vector<8x32xf32>
    %c1_331 = arith.constant 1 : index
    %c0_332 = arith.constant 0 : index
    %c0_333 = arith.constant 0 : index
    %735 = vector.load %arg2[%c1_331, %c0_332, %c0_333] : memref<2x32x128xf32, #tpu.memory_space<vmem>>, vector<1x32x128xf32>
    %736 = vector.shape_cast %735 : vector<1x32x128xf32> to vector<32x128xf32>
    %cst_334 = arith.constant dense<0.000000e+00> : vector<8x128xf32>
    %737 = tpu.matmul %734, %736, %cst_334 {dimension_numbers = #tpu.dot_dimension_numbers<[1], [0], [0], [1], [0, 0, 1, 1], [], []>} : vector<8x32xf32>, vector<32x128xf32>, vector<8x128xf32> -> vector<8x128xf32>
    %c1_335 = arith.constant 1 : index
    %c0_336 = arith.constant 0 : index
    %c0_337 = arith.constant 0 : index
    %738 = vector.load %arg3[%c1_335, %c0_336, %c0_337] : memref<2x32x128xf32, #tpu.memory_space<vmem>>, vector<1x32x128xf32>
    %739 = vector.shape_cast %738 : vector<1x32x128xf32> to vector<32x128xf32>
    %cst_338 = arith.constant dense<0.000000e+00> : vector<8x128xf32>
    %740 = tpu.matmul %660, %739, %cst_338 {dimension_numbers = #tpu.dot_dimension_numbers<[1], [0], [0], [1], [0, 0, 1, 1], [], []>} : vector<8x32xf32>, vector<32x128xf32>, vector<8x128xf32> -> vector<8x128xf32>
    %741 = arith.addf %737, %740 : vector<8x128xf32>
    %c1_339 = arith.constant 1 : index
    %c0_340 = arith.constant 0 : index
    %c0_341 = arith.constant 0 : index
    %742 = vector.load %arg4[%c1_339, %c0_340, %c0_341] : memref<2x1x128xf32, #tpu.memory_space<vmem>>, vector<1x1x128xf32>
    %743 = vector.shape_cast %742 : vector<1x1x128xf32> to vector<1x128xf32>
    %744 = vector.broadcast %743 : vector<1x128xf32> to vector<8x128xf32>
    %745 = arith.addf %741, %744 : vector<8x128xf32>
    %746 = vector.extract_strided_slice %745 {offsets = [0, 0], sizes = [8, 32], strides = [1, 1]} : vector<8x128xf32> to vector<8x32xf32>
    %747 = arith.negf %746 : vector<8x32xf32>
    %748 = math.exp %747 : vector<8x32xf32>
    %cst_342 = arith.constant 1.000000e+00 : f32
    %749 = vector.broadcast %cst_342 : f32 to vector<8x32xf32>
    %750 = arith.addf %749, %748 : vector<8x32xf32>
    %751 = arith.divf %749, %750 : vector<8x32xf32>
    %752 = vector.extract_strided_slice %745 {offsets = [0, 32], sizes = [8, 32], strides = [1, 1]} : vector<8x128xf32> to vector<8x32xf32>
    %753 = arith.negf %752 : vector<8x32xf32>
    %754 = math.exp %753 : vector<8x32xf32>
    %cst_343 = arith.constant 1.000000e+00 : f32
    %755 = vector.broadcast %cst_343 : f32 to vector<8x32xf32>
    %756 = arith.addf %755, %754 : vector<8x32xf32>
    %757 = arith.divf %755, %756 : vector<8x32xf32>
    %758 = vector.extract_strided_slice %745 {offsets = [0, 64], sizes = [8, 32], strides = [1, 1]} : vector<8x128xf32> to vector<8x32xf32>
    %759 = math.tanh %758 : vector<8x32xf32>
    %760 = vector.extract_strided_slice %745 {offsets = [0, 96], sizes = [8, 32], strides = [1, 1]} : vector<8x128xf32> to vector<8x32xf32>
    %761 = arith.negf %760 : vector<8x32xf32>
    %762 = math.exp %761 : vector<8x32xf32>
    %cst_344 = arith.constant 1.000000e+00 : f32
    %763 = vector.broadcast %cst_344 : f32 to vector<8x32xf32>
    %764 = arith.addf %763, %762 : vector<8x32xf32>
    %765 = arith.divf %763, %764 : vector<8x32xf32>
    %766 = arith.mulf %757, %658 : vector<8x32xf32>
    %767 = arith.mulf %751, %759 : vector<8x32xf32>
    %768 = arith.addf %766, %767 : vector<8x32xf32>
    %769 = math.tanh %768 : vector<8x32xf32>
    %770 = arith.mulf %765, %769 : vector<8x32xf32>
    %c0_345 = arith.constant 0 : index
    %c0_346 = arith.constant 0 : index
    %771 = vector.load %arg5[%c0_345, %c0_346] : memref<32x128xf32, #tpu.memory_space<vmem>>, vector<32x128xf32>
    %cst_347 = arith.constant dense<0.000000e+00> : vector<8x128xf32>
    %772 = tpu.matmul %770, %771, %cst_347 {dimension_numbers = #tpu.dot_dimension_numbers<[1], [0], [0], [1], [0, 0, 1, 1], [], []>} : vector<8x32xf32>, vector<32x128xf32>, vector<8x128xf32> -> vector<8x128xf32>
    %c0_348 = arith.constant 0 : index
    %c0_349 = arith.constant 0 : index
    %773 = vector.load %arg6[%c0_348, %c0_349] : memref<1x128xf32, #tpu.memory_space<vmem>>, vector<1x128xf32>
    %774 = vector.broadcast %773 : vector<1x128xf32> to vector<8x128xf32>
    %775 = arith.addf %772, %774 : vector<8x128xf32>
    %776 = arith.index_cast %c6_i32 : i32 to index
    %c0_350 = arith.constant 0 : index
    %c0_351 = arith.constant 0 : index
    %777 = vector.load %arg9[%776, %c0_350, %c0_351] : memref<8x8x128xf32, #tpu.memory_space<vmem>>, vector<1x8x128xf32>
    %778 = vector.shape_cast %777 : vector<1x8x128xf32> to vector<8x128xf32>
    %779 = vector.shape_cast %775 : vector<8x128xf32> to vector<1x8x128xf32>
    tpu.vector_store %arg9[%776, %c0_350, %c0_351], %779 {strides = array<i32>} : memref<8x8x128xf32, #tpu.memory_space<vmem>>, vector<1x8x128xf32>,
    %c7_i32 = arith.constant 7 : i32
    %cst_352 = arith.constant 0.000000e+00 : f32
    %780 = vector.broadcast %cst_352 : f32 to vector<8x128xf32>
    %c2_i32_353 = arith.constant 2 : i32
    %781 = arith.muli %c7_i32, %c2_i32_353 : i32
    %c0_i32_354 = arith.constant 0 : i32
    %782 = arith.addi %781, %c0_i32_354 : i32
    %783 = arith.index_cast %782 : i32 to index
    %784 = memref.load %arg0[%783] : memref<16xi32, #tpu.memory_space<smem>>
    %c0_i32_355 = arith.constant 0 : i32
    %785 = vector.broadcast %c0_i32_355 : i32 to vector<8x128xi32>
    %786 = arith.cmpi eq, %0, %785 : vector<8x128xi32>
    %787 = vector.broadcast %784 : i32 to vector<8x128xi32>
    %788 = arith.cmpi eq, %1, %787 : vector<8x128xi32>
    %789 = arith.andi %786, %788 : vector<8x128xi1>
    %cst_356 = arith.constant 1.000000e+00 : f32
    %cst_357 = arith.constant 0.000000e+00 : f32
    %790 = vector.broadcast %cst_356 : f32 to vector<8x128xf32>
    %791 = vector.broadcast %cst_357 : f32 to vector<8x128xf32>
    %792 = arith.select %789, %790, %791 : vector<8x128xi1>, vector<8x128xf32>
    %793 = arith.addf %780, %792 : vector<8x128xf32>
    %c2_i32_358 = arith.constant 2 : i32
    %794 = arith.muli %c7_i32, %c2_i32_358 : i32
    %c1_i32_359 = arith.constant 1 : i32
    %795 = arith.addi %794, %c1_i32_359 : i32
    %796 = arith.index_cast %795 : i32 to index
    %797 = memref.load %arg0[%796] : memref<16xi32, #tpu.memory_space<smem>>
    %c1_i32_360 = arith.constant 1 : i32
    %798 = vector.broadcast %c1_i32_360 : i32 to vector<8x128xi32>
    %799 = arith.cmpi eq, %0, %798 : vector<8x128xi32>
    %800 = vector.broadcast %797 : i32 to vector<8x128xi32>
    %801 = arith.cmpi eq, %1, %800 : vector<8x128xi32>
    %802 = arith.andi %799, %801 : vector<8x128xi1>
    %cst_361 = arith.constant 1.000000e+00 : f32
    %cst_362 = arith.constant 0.000000e+00 : f32
    %803 = vector.broadcast %cst_361 : f32 to vector<8x128xf32>
    %804 = vector.broadcast %cst_362 : f32 to vector<8x128xf32>
    %805 = arith.select %802, %803, %804 : vector<8x128xi1>, vector<8x128xf32>
    %806 = arith.addf %793, %805 : vector<8x128xf32>
    %c0_363 = arith.constant 0 : index
    %c0_364 = arith.constant 0 : index
    %807 = vector.load %arg1[%c0_363, %c0_364] : memref<128x32xf32, #tpu.memory_space<vmem>>, vector<128x32xf32>
    %cst_365 = arith.constant dense<0.000000e+00> : vector<8x32xf32>
    %808 = tpu.matmul %806, %807, %cst_365 {dimension_numbers = #tpu.dot_dimension_numbers<[1], [0], [0], [1], [0, 0, 1, 1], [], []>} : vector<8x128xf32>, vector<128x32xf32>, vector<8x32xf32> -> vector<8x32xf32>
    %c0_366 = arith.constant 0 : index
    %c0_367 = arith.constant 0 : index
    %c0_368 = arith.constant 0 : index
    %809 = vector.load %arg2[%c0_366, %c0_367, %c0_368] : memref<2x32x128xf32, #tpu.memory_space<vmem>>, vector<1x32x128xf32>
    %810 = vector.shape_cast %809 : vector<1x32x128xf32> to vector<32x128xf32>
    %cst_369 = arith.constant dense<0.000000e+00> : vector<8x128xf32>
    %811 = tpu.matmul %808, %810, %cst_369 {dimension_numbers = #tpu.dot_dimension_numbers<[1], [0], [0], [1], [0, 0, 1, 1], [], []>} : vector<8x32xf32>, vector<32x128xf32>, vector<8x128xf32> -> vector<8x128xf32>
    %c0_370 = arith.constant 0 : index
    %c0_371 = arith.constant 0 : index
    %c0_372 = arith.constant 0 : index
    %812 = vector.load %arg3[%c0_370, %c0_371, %c0_372] : memref<2x32x128xf32, #tpu.memory_space<vmem>>, vector<1x32x128xf32>
    %813 = vector.shape_cast %812 : vector<1x32x128xf32> to vector<32x128xf32>
    %cst_373 = arith.constant dense<0.000000e+00> : vector<8x128xf32>
    %814 = tpu.matmul %734, %813, %cst_373 {dimension_numbers = #tpu.dot_dimension_numbers<[1], [0], [0], [1], [0, 0, 1, 1], [], []>} : vector<8x32xf32>, vector<32x128xf32>, vector<8x128xf32> -> vector<8x128xf32>
    %815 = arith.addf %811, %814 : vector<8x128xf32>
    %c0_374 = arith.constant 0 : index
    %c0_375 = arith.constant 0 : index
    %c0_376 = arith.constant 0 : index
    %816 = vector.load %arg4[%c0_374, %c0_375, %c0_376] : memref<2x1x128xf32, #tpu.memory_space<vmem>>, vector<1x1x128xf32>
    %817 = vector.shape_cast %816 : vector<1x1x128xf32> to vector<1x128xf32>
    %818 = vector.broadcast %817 : vector<1x128xf32> to vector<8x128xf32>
    %819 = arith.addf %815, %818 : vector<8x128xf32>
    %820 = vector.extract_strided_slice %819 {offsets = [0, 0], sizes = [8, 32], strides = [1, 1]} : vector<8x128xf32> to vector<8x32xf32>
    %821 = arith.negf %820 : vector<8x32xf32>
    %822 = math.exp %821 : vector<8x32xf32>
    %cst_377 = arith.constant 1.000000e+00 : f32
    %823 = vector.broadcast %cst_377 : f32 to vector<8x32xf32>
    %824 = arith.addf %823, %822 : vector<8x32xf32>
    %825 = arith.divf %823, %824 : vector<8x32xf32>
    %826 = vector.extract_strided_slice %819 {offsets = [0, 32], sizes = [8, 32], strides = [1, 1]} : vector<8x128xf32> to vector<8x32xf32>
    %827 = arith.negf %826 : vector<8x32xf32>
    %828 = math.exp %827 : vector<8x32xf32>
    %cst_378 = arith.constant 1.000000e+00 : f32
    %829 = vector.broadcast %cst_378 : f32 to vector<8x32xf32>
    %830 = arith.addf %829, %828 : vector<8x32xf32>
    %831 = arith.divf %829, %830 : vector<8x32xf32>
    %832 = vector.extract_strided_slice %819 {offsets = [0, 64], sizes = [8, 32], strides = [1, 1]} : vector<8x128xf32> to vector<8x32xf32>
    %833 = math.tanh %832 : vector<8x32xf32>
    %834 = vector.extract_strided_slice %819 {offsets = [0, 96], sizes = [8, 32], strides = [1, 1]} : vector<8x128xf32> to vector<8x32xf32>
    %835 = arith.negf %834 : vector<8x32xf32>
    %836 = math.exp %835 : vector<8x32xf32>
    %cst_379 = arith.constant 1.000000e+00 : f32
    %837 = vector.broadcast %cst_379 : f32 to vector<8x32xf32>
    %838 = arith.addf %837, %836 : vector<8x32xf32>
    %839 = arith.divf %837, %838 : vector<8x32xf32>
    %840 = arith.mulf %831, %732 : vector<8x32xf32>
    %841 = arith.mulf %825, %833 : vector<8x32xf32>
    %842 = arith.addf %840, %841 : vector<8x32xf32>
    %843 = math.tanh %842 : vector<8x32xf32>
    %844 = arith.mulf %839, %843 : vector<8x32xf32>
    %c1_380 = arith.constant 1 : index
    %c0_381 = arith.constant 0 : index
    %c0_382 = arith.constant 0 : index
    %845 = vector.load %arg2[%c1_380, %c0_381, %c0_382] : memref<2x32x128xf32, #tpu.memory_space<vmem>>, vector<1x32x128xf32>
    %846 = vector.shape_cast %845 : vector<1x32x128xf32> to vector<32x128xf32>
    %cst_383 = arith.constant dense<0.000000e+00> : vector<8x128xf32>
    %847 = tpu.matmul %844, %846, %cst_383 {dimension_numbers = #tpu.dot_dimension_numbers<[1], [0], [0], [1], [0, 0, 1, 1], [], []>} : vector<8x32xf32>, vector<32x128xf32>, vector<8x128xf32> -> vector<8x128xf32>
    %c1_384 = arith.constant 1 : index
    %c0_385 = arith.constant 0 : index
    %c0_386 = arith.constant 0 : index
    %848 = vector.load %arg3[%c1_384, %c0_385, %c0_386] : memref<2x32x128xf32, #tpu.memory_space<vmem>>, vector<1x32x128xf32>
    %849 = vector.shape_cast %848 : vector<1x32x128xf32> to vector<32x128xf32>
    %cst_387 = arith.constant dense<0.000000e+00> : vector<8x128xf32>
    %850 = tpu.matmul %770, %849, %cst_387 {dimension_numbers = #tpu.dot_dimension_numbers<[1], [0], [0], [1], [0, 0, 1, 1], [], []>} : vector<8x32xf32>, vector<32x128xf32>, vector<8x128xf32> -> vector<8x128xf32>
    %851 = arith.addf %847, %850 : vector<8x128xf32>
    %c1_388 = arith.constant 1 : index
    %c0_389 = arith.constant 0 : index
    %c0_390 = arith.constant 0 : index
    %852 = vector.load %arg4[%c1_388, %c0_389, %c0_390] : memref<2x1x128xf32, #tpu.memory_space<vmem>>, vector<1x1x128xf32>
    %853 = vector.shape_cast %852 : vector<1x1x128xf32> to vector<1x128xf32>
    %854 = vector.broadcast %853 : vector<1x128xf32> to vector<8x128xf32>
    %855 = arith.addf %851, %854 : vector<8x128xf32>
    %856 = vector.extract_strided_slice %855 {offsets = [0, 0], sizes = [8, 32], strides = [1, 1]} : vector<8x128xf32> to vector<8x32xf32>
    %857 = arith.negf %856 : vector<8x32xf32>
    %858 = math.exp %857 : vector<8x32xf32>
    %cst_391 = arith.constant 1.000000e+00 : f32
    %859 = vector.broadcast %cst_391 : f32 to vector<8x32xf32>
    %860 = arith.addf %859, %858 : vector<8x32xf32>
    %861 = arith.divf %859, %860 : vector<8x32xf32>
    %862 = vector.extract_strided_slice %855 {offsets = [0, 32], sizes = [8, 32], strides = [1, 1]} : vector<8x128xf32> to vector<8x32xf32>
    %863 = arith.negf %862 : vector<8x32xf32>
    %864 = math.exp %863 : vector<8x32xf32>
    %cst_392 = arith.constant 1.000000e+00 : f32
    %865 = vector.broadcast %cst_392 : f32 to vector<8x32xf32>
    %866 = arith.addf %865, %864 : vector<8x32xf32>
    %867 = arith.divf %865, %866 : vector<8x32xf32>
    %868 = vector.extract_strided_slice %855 {offsets = [0, 64], sizes = [8, 32], strides = [1, 1]} : vector<8x128xf32> to vector<8x32xf32>
    %869 = math.tanh %868 : vector<8x32xf32>
    %870 = vector.extract_strided_slice %855 {offsets = [0, 96], sizes = [8, 32], strides = [1, 1]} : vector<8x128xf32> to vector<8x32xf32>
    %871 = arith.negf %870 : vector<8x32xf32>
    %872 = math.exp %871 : vector<8x32xf32>
    %cst_393 = arith.constant 1.000000e+00 : f32
    %873 = vector.broadcast %cst_393 : f32 to vector<8x32xf32>
    %874 = arith.addf %873, %872 : vector<8x32xf32>
    %875 = arith.divf %873, %874 : vector<8x32xf32>
    %876 = arith.mulf %867, %768 : vector<8x32xf32>
    %877 = arith.mulf %861, %869 : vector<8x32xf32>
    %878 = arith.addf %876, %877 : vector<8x32xf32>
    %879 = math.tanh %878 : vector<8x32xf32>
    %880 = arith.mulf %875, %879 : vector<8x32xf32>
    %c0_394 = arith.constant 0 : index
    %c0_395 = arith.constant 0 : index
    %881 = vector.load %arg5[%c0_394, %c0_395] : memref<32x128xf32, #tpu.memory_space<vmem>>, vector<32x128xf32>
    %cst_396 = arith.constant dense<0.000000e+00> : vector<8x128xf32>
    %882 = tpu.matmul %880, %881, %cst_396 {dimension_numbers = #tpu.dot_dimension_numbers<[1], [0], [0], [1], [0, 0, 1, 1], [], []>} : vector<8x32xf32>, vector<32x128xf32>, vector<8x128xf32> -> vector<8x128xf32>
    %c0_397 = arith.constant 0 : index
    %c0_398 = arith.constant 0 : index
    %883 = vector.load %arg6[%c0_397, %c0_398] : memref<1x128xf32, #tpu.memory_space<vmem>>, vector<1x128xf32>
    %884 = vector.broadcast %883 : vector<1x128xf32> to vector<8x128xf32>
    %885 = arith.addf %882, %884 : vector<8x128xf32>
    %886 = arith.index_cast %c7_i32 : i32 to index
    %c0_399 = arith.constant 0 : index
    %c0_400 = arith.constant 0 : index
    %887 = vector.load %arg9[%886, %c0_399, %c0_400] : memref<8x8x128xf32, #tpu.memory_space<vmem>>, vector<1x8x128xf32>
    %888 = vector.shape_cast %887 : vector<1x8x128xf32> to vector<8x128xf32>
    %889 = vector.shape_cast %885 : vector<8x128xf32> to vector<1x8x128xf32>
    tpu.vector_store %arg9[%886, %c0_399, %c0_400], %889 {strides = array<i32>} : memref<8x8x128xf32, #tpu.memory_space<vmem>>, vector<1x8x128xf32>,
    %c8_i32 = arith.constant 8 : i32
    %c0_401 = arith.constant 0 : index
    %c0_402 = arith.constant 0 : index
    %c0_403 = arith.constant 0 : index
    %890 = vector.load %arg10[%c0_401, %c0_402, %c0_403] : memref<2x8x32xf32, #tpu.memory_space<vmem>>, vector<1x8x32xf32>
    %891 = vector.shape_cast %890 : vector<1x8x32xf32> to vector<8x32xf32>
    %892 = vector.shape_cast %844 : vector<8x32xf32> to vector<1x8x32xf32>
    tpu.vector_store %arg10[%c0_401, %c0_402, %c0_403], %892 {strides = array<i32>} : memref<2x8x32xf32, #tpu.memory_space<vmem>>, vector<1x8x32xf32>,
    %c0_404 = arith.constant 0 : index
    %c0_405 = arith.constant 0 : index
    %c0_406 = arith.constant 0 : index
    %893 = vector.load %arg11[%c0_404, %c0_405, %c0_406] : memref<2x8x32xf32, #tpu.memory_space<vmem>>, vector<1x8x32xf32>
    %894 = vector.shape_cast %893 : vector<1x8x32xf32> to vector<8x32xf32>
    %895 = vector.shape_cast %842 : vector<8x32xf32> to vector<1x8x32xf32>
    tpu.vector_store %arg11[%c0_404, %c0_405, %c0_406], %895 {strides = array<i32>} : memref<2x8x32xf32, #tpu.memory_space<vmem>>, vector<1x8x32xf32>,
    %c1_407 = arith.constant 1 : index
    %c0_408 = arith.constant 0 : index
    %c0_409 = arith.constant 0 : index
    %896 = vector.load %arg10[%c1_407, %c0_408, %c0_409] : memref<2x8x32xf32, #tpu.memory_space<vmem>>, vector<1x8x32xf32>
    %897 = vector.shape_cast %896 : vector<1x8x32xf32> to vector<8x32xf32>
    %898 = vector.shape_cast %880 : vector<8x32xf32> to vector<1x8x32xf32>
    tpu.vector_store %arg10[%c1_407, %c0_408, %c0_409], %898 {strides = array<i32>} : memref<2x8x32xf32, #tpu.memory_space<vmem>>, vector<1x8x32xf32>,
    %c1_410 = arith.constant 1 : index
    %c0_411 = arith.constant 0 : index
    %c0_412 = arith.constant 0 : index
    %899 = vector.load %arg11[%c1_410, %c0_411, %c0_412] : memref<2x8x32xf32, #tpu.memory_space<vmem>>, vector<1x8x32xf32>
    %900 = vector.shape_cast %899 : vector<1x8x32xf32> to vector<8x32xf32>
    %901 = vector.shape_cast %878 : vector<8x32xf32> to vector<1x8x32xf32>
    tpu.vector_store %arg11[%c1_410, %c0_411, %c0_412], %901 {strides = array<i32>} : memref<2x8x32xf32, #tpu.memory_space<vmem>>, vector<1x8x32xf32>,
    return
  }
}

</mosaic_0001>

<llo_original>
// kernel: tpu_custom_call.1
$region0: #{tpu_custom_call.1}
  #allocation0 [shape = 'u32[]', space=smem, size = 0x4, offset = 0x4, fixed_abs, tag = 'smem constant byte address 0x4 - core index']
  #allocation1 [shape = 'u32[144,128]{1,0:T(1,128)}', space=vmem, size = 0x12000, scoped, tag = 'internal scratch']
  %s0 = inlined_call_operand.hbm [shape: s32[16], index: 0, kind: input, shape index: {}]
  %s1 = inlined_call_operand.vmem [shape: f32[128,32], index: 1, kind: input, shape index: {}]
  %s2 = inlined_call_operand.vmem [shape: f32[2,32,128], index: 2, kind: input, shape index: {}]
  %s3 = inlined_call_operand.vmem [shape: f32[2,32,128], index: 3, kind: input, shape index: {}]
  %s4 = inlined_call_operand.vmem [shape: f32[2,1,128], index: 4, kind: input, shape index: {}]
  %s5 = inlined_call_operand.vmem [shape: f32[32,128], index: 5, kind: input, shape index: {}]
  %s6 = inlined_call_operand.vmem [shape: f32[1,128], index: 6, kind: input, shape index: {}]
  %s7 = inlined_call_operand.vmem [shape: f32[2,8,32], index: 7, kind: input, shape index: {}]
  %s8 = inlined_call_operand.hbm [shape: f32[2,8,32], index: 8, kind: input, shape index: {}]
  %s9 = inlined_call_operand.hbm [shape: f32[8,8,128], index: 9, kind: output, shape index: {0}]
  %s10 = inlined_call_operand.hbm [shape: f32[2,8,32], index: 10, kind: output, shape index: {1}]
  %s11 = inlined_call_operand.hbm [shape: f32[2,8,32], index: 11, kind: output, shape index: {2}]
  %12 = xla_tuple %s9, %s10, %s11
  %s13 = sld [smem:[#allocation0]]
  $region70: #{tpu_custom_call.1} parent=0
    _
  %s15 = ssub.s32 1, %s13
  %s16 = scalar_select 0, %s15, %s13
  $region1: #{tpu_custom_call.1} parent=0
    #allocation2 [shape = 'u8[512]{0}', space=smem, size = 0x200, scoped, tag = 'input window, operand 0, single buffered']
    #allocation3 [shape = 's32[1]{0}', space=sflag, size = 0x4, scoped, tag = 'scoped memory for tpu_custom_call.1']
    #allocation4 [shape = 's32[1]{0}', space=sflag, size = 0x4, scoped, tag = 'scoped memory for tpu_custom_call.1']
    #allocation5 [shape = 's32[1]{0}', space=sflag, size = 0x4, scoped, tag = 'scoped memory for tpu_custom_call.1']
    #allocation6 [shape = 'u8[8192]{0}', space=vmem, size = 0x2000, scoped, tag = 'input window, operand 8, single buffered']
    #allocation7 [shape = 'u8[32768]{0}', space=vmem, size = 0x8000, scoped, tag = 'output window, operand 0, single buffered']
    #allocation8 [shape = 'u8[8192]{0}', space=vmem, size = 0x2000, scoped, tag = 'output window, operand 1, single buffered']
    #allocation9 [shape = 's32[1]{0}', space=sflag, size = 0x4, scoped, tag = 'scoped memory for tpu_custom_call.1']
    #allocation10 [shape = 'u8[8192]{0}', space=vmem, size = 0x2000, scoped, tag = 'output window, operand 2, single buffered']
    %17 = vsyncpa [#allocation5], 0
    %18 = vsyncpa [#allocation3], 0
    %19 = vsyncpa [#allocation4], 0
    %20 = vsyncpa [#allocation9], 0
    // Predicated region
    $region2: #{tpu_custom_call.1} parent=1 // pred_check
      _
    $region3: #{tpu_custom_call.1} parent=1 // pred_check_branch
      %22 = sbr.rel (0) target = $region5
    $region4: #{tpu_custom_call.1} parent=1 // pred_region
      %s24 = ssub.s32 16, 16
      %25 = vsyncadd [#allocation5], %s24
      %28 = dma.hbm_to_smem %s0, 16, [#allocation2], [#allocation5]
    $region5: #{tpu_custom_call.1} parent=1 // pred_fallthru
      _
    // Predicated region
    $region6: #{tpu_custom_call.1} parent=1 // pred_check
      _
    $region7: #{tpu_custom_call.1} parent=1 // pred_check_branch
      %30 = sbr.rel (0) target = $region9
    $region8: #{tpu_custom_call.1} parent=1 // pred_region
      _
    $region9: #{tpu_custom_call.1} parent=1 // pred_fallthru
      _
    // Predicated region
    $region10: #{tpu_custom_call.1} parent=1 // pred_check
      _
    $region11: #{tpu_custom_call.1} parent=1 // pred_check_branch
      %32 = sbr.rel (0) target = $region13
    $region12: #{tpu_custom_call.1} parent=1 // pred_region
      _
    $region13: #{tpu_custom_call.1} parent=1 // pred_fallthru
      _
    // Predicated region
    $region14: #{tpu_custom_call.1} parent=1 // pred_check
      _
    $region15: #{tpu_custom_call.1} parent=1 // pred_check_branch
      %34 = sbr.rel (0) target = $region17
    $region16: #{tpu_custom_call.1} parent=1 // pred_region
      _
    $region17: #{tpu_custom_call.1} parent=1 // pred_fallthru
      _
    // Predicated region
    $region18: #{tpu_custom_call.1} parent=1 // pred_check
      _
    $region19: #{tpu_custom_call.1} parent=1 // pred_check_branch
      %36 = sbr.rel (0) target = $region21
    $region20: #{tpu_custom_call.1} parent=1 // pred_region
      _
    $region21: #{tpu_custom_call.1} parent=1 // pred_fallthru
      _
    // Predicated region
    $region22: #{tpu_custom_call.1} parent=1 // pred_check
      _
    $region23: #{tpu_custom_call.1} parent=1 // pred_check_branch
      %38 = sbr.rel (0) target = $region25
    $region24: #{tpu_custom_call.1} parent=1 // pred_region
      _
    $region25: #{tpu_custom_call.1} parent=1 // pred_fallthru
      _
    // Predicated region
    $region26: #{tpu_custom_call.1} parent=1 // pred_check
      _
    $region27: #{tpu_custom_call.1} parent=1 // pred_check_branch
      %40 = sbr.rel (0) target = $region29
    $region28: #{tpu_custom_call.1} parent=1 // pred_region
      _
    $region29: #{tpu_custom_call.1} parent=1 // pred_fallthru
      _
    // Predicated region
    $region30: #{tpu_custom_call.1} parent=1 // pred_check
      _
    $region31: #{tpu_custom_call.1} parent=1 // pred_check_branch
      %42 = sbr.rel (0) target = $region33
    $region32: #{tpu_custom_call.1} parent=1 // pred_region
      _
    $region33: #{tpu_custom_call.1} parent=1 // pred_fallthru
      _
    // Predicated region
    $region34: #{tpu_custom_call.1} parent=1 // pred_check
      _
    $region35: #{tpu_custom_call.1} parent=1 // pred_check_branch
      %44 = sbr.rel (0) target = $region37
    $region36: #{tpu_custom_call.1} parent=1 // pred_region
      %s46 = ssub.s32 256, 256
      %47 = vsyncadd [#allocation3], %s46
      %s48 = sshll.u32 [#allocation6], 4
      %s49 = int_to_ptr.vmem [resolvable:$true] %s48
      %54 = dma.hbm_to_vmem [thread:$0]  %s8, 256, %s49, [#allocation3], 128, 128, 8
    $region37: #{tpu_custom_call.1} parent=1 // pred_fallthru
      _
    // Predicated region
    $region38: #{tpu_custom_call.1} parent=1 // pred_check
      _
    $region39: #{tpu_custom_call.1} parent=1 // pred_check_branch
      %56 = sbr.rel (0) target = $region41
    $region40: #{tpu_custom_call.1} parent=1 // pred_region
      %57 = dma.done [#allocation5], 16
    $region41: #{tpu_custom_call.1} parent=1 // pred_fallthru
      _
    // Predicated region
    $region42: #{tpu_custom_call.1} parent=1 // pred_check
      _
    $region43: #{tpu_custom_call.1} parent=1 // pred_check_branch
      %59 = sbr.rel (0) target = $region45
    $region44: #{tpu_custom_call.1} parent=1 // pred_region
      %60 = dma.done [#allocation3], 256
    $region45: #{tpu_custom_call.1} parent=1 // pred_fallthru
      _
    %61 = sfence
    %v62 = vlaneseq
    %v63 = vshrl.u32 %v62, 7
    %v64 = vlaneseq
    %v65 = vand.u32 %v64, 127
    %v66 = vld [vmem:[%s7] sm:$0xff]
    %s67 = scalar_lea.vmem %s7, 8
    %v68 = vld [vmem:[%s67] sm:$0xff]
    %v69 = vld [vmem:[#allocation6] sm:$0xff]
    %s70 = scalar_lea.vmem [#allocation6], 8
    %v71 = vld [vmem:[%s70] sm:$0xff]
    %s72 = sld [smem:[#allocation2]]
    %vm73 = vcmp.eq.s32.totalorder %v63, 0
    %v74 = vstv %s72
    %vm75 = vcmp.eq.s32.totalorder %v65, %v74
    %vm76 = vmand %vm73, %vm75
    %v77 = vsel %vm76, 1.0, 0.0
    %v78 = vadd.f32 %v77, 0.0
    %s79 = sld [smem:[#allocation2 + $0x1]]
    %vm80 = vcmp.eq.s32.totalorder %v63, 1
    %v81 = vstv %s79
    %vm82 = vcmp.eq.s32.totalorder %v65, %v81
    %vm83 = vmand %vm80, %vm82
    %v84 = vsel %vm83, 1.0, 0.0
    %v85 = vadd.f32 %v78, %v84
    %v86 = vld [vmem:[%s1] sm:$0xff]
    %v87 = vld [vmem:[%s1 + $0x8] sm:$0xff]
    %v88 = vld [vmem:[%s1 + $0x10] sm:$0xff]
    %v89 = vld [vmem:[%s1 + $0x18] sm:$0xff]
    %v90 = vld [vmem:[%s1 + $0x20] sm:$0xff]
    %v91 = vld [vmem:[%s1 + $0x28] sm:$0xff]
    %v92 = vld [vmem:[%s1 + $0x30] sm:$0xff]
    %v93 = vld [vmem:[%s1 + $0x38] sm:$0xff]
    %v94 = vld [vmem:[%s1 + $0x40] sm:$0xff]
    %v95 = vld [vmem:[%s1 + $0x48] sm:$0xff]
    %v96 = vld [vmem:[%s1 + $0x50] sm:$0xff]
    %v97 = vld [vmem:[%s1 + $0x58] sm:$0xff]
    %v98 = vld [vmem:[%s1 + $0x60] sm:$0xff]
    %v99 = vld [vmem:[%s1 + $0x68] sm:$0xff]
    %v100 = vld [vmem:[%s1 + $0x70] sm:$0xff]
    %v101 = vld [vmem:[%s1 + $0x78] sm:$0xff]
    %102 = vmatprep.subr.mxu0 0.0
    %103 = vmatpush1.msra.mxu0 %v86
    %104 = vmatprep.subr.mxu0 0.0
    %105 = vmatpush1.msra.mxu0 %v87
    %106 = vmatprep.subr.mxu0 0.0
    %107 = vmatpush1.msra.mxu0 %v88
    %108 = vmatprep.subr.mxu0 0.0
    %109 = vmatpush1.msra.mxu0 %v89
    %110 = vmatprep.subr.mxu0 0.0
    %111 = vmatpush1.msra.mxu0 %v90
    %112 = vmatprep.subr.mxu0 0.0
    %113 = vmatpush1.msra.mxu0 %v91
    %114 = vmatprep.subr.mxu0 0.0
    %115 = vmatpush1.msra.mxu0 %v92
    %116 = vmatprep.subr.mxu0 0.0
    %117 = vmatpush1.msra.mxu0 %v93
    %118 = vmatprep.subr.mxu0 0.0
    %119 = vmatpush1.msra.mxu0 %v94
    %120 = vmatprep.subr.mxu0 0.0
    %121 = vmatpush1.msra.mxu0 %v95
    %122 = vmatprep.subr.mxu0 0.0
    %123 = vmatpush1.msra.mxu0 %v96
    %124 = vmatprep.subr.mxu0 0.0
    %125 = vmatpush1.msra.mxu0 %v97
    %126 = vmatprep.subr.mxu0 0.0
    %127 = vmatpush1.msra.mxu0 %v98
    %128 = vmatprep.subr.mxu0 0.0
    %129 = vmatpush1.msra.mxu0 %v99
    %130 = vmatprep.subr.mxu0 0.0
    %131 = vmatpush1.msra.mxu0 %v100
    %132 = vmatprep.subr.mxu0 0.0
    %133 = vmatpush1.msra.mxu0 %v101
    %134 = vmatprep.subr.mxu0 0.0
    %135 = vmatpush1.msra.mxu0 0.0
    %136 = vmatprep.subr.mxu0 0.0
    %137 = vmatpush1.msra.mxu0 0.0
    %138 = vmatprep.subr.mxu0 0.0
    %139 = vmatpush1.msra.mxu0 0.0
    %140 = vmatprep.subr.mxu0 0.0
    %141 = vmatpush1.msra.mxu0 0.0
    %142 = vmatprep.subr.mxu0 0.0
    %143 = vmatpush1.msra.mxu0 0.0
    %144 = vmatprep.subr.mxu0 0.0
    %145 = vmatpush1.msra.mxu0 0.0
    %146 = vmatprep.subr.mxu0 0.0
    %147 = vmatpush1.msra.mxu0 0.0
    %148 = vmatprep.subr.mxu0 0.0
    %149 = vmatpush1.msra.mxu0 0.0
    %150 = vmatprep.subr.mxu0 0.0
    %151 = vmatpush1.msra.mxu0 0.0
    %152 = vmatprep.subr.mxu0 0.0
    %153 = vmatpush1.msra.mxu0 0.0
    %154 = vmatprep.subr.mxu0 0.0
    %155 = vmatpush1.msra.mxu0 0.0
    %156 = vmatprep.subr.mxu0 0.0
    %157 = vmatpush1.msra.mxu0 0.0
    %158 = vmatprep.subr.mxu0 0.0
    %159 = vmatpush1.msra.mxu0 0.0
    %160 = vmatprep.subr.mxu0 0.0
    %161 = vmatpush1.msra.mxu0 0.0
    %162 = vmatprep.subr.mxu0 0.0
    %163 = vmatpush1.msra.mxu0 0.0
    %164 = vmatprep.subr.mxu0 0.0
    %165 = vmatpush1.msra.mxu0 0.0
    %166 = vmatprep.mubr.f32.mxu0 0.0
    %167 = vmatmul.mubr.f32.gmra.mrb[0].mxu0 %v85
    %v168 = vpop.f32.mrb[0].mxu0
    %v169 = vadd.f32 0.0, %v168
    %v170 = vpop.f32.mrb[0].mxu0
    %171 = vdwg.mxu0
    %v172 = vld [vmem:[%s2] sm:$0xff]
    %v173 = vld [vmem:[%s2 + $0x8] sm:$0xff]
    %v174 = vld [vmem:[%s2 + $0x10] sm:$0xff]
    %v175 = vld [vmem:[%s2 + $0x18] sm:$0xff]
    %v176 = vld [vmem:[%s3] sm:$0xff]
    %v177 = vld [vmem:[%s3 + $0x8] sm:$0xff]
    %v178 = vld [vmem:[%s3 + $0x10] sm:$0xff]
    %v179 = vld [vmem:[%s3 + $0x18] sm:$0xff]
    %vm180 = vcmask 261120
    %v182 = vsel %vm180, %v66, 0
    %184 = vmatprep.subr.mxu0 0.0
    %185 = vmatpush1.msra.mxu0 %v176
    %186 = vmatprep.subr.mxu0 0.0
    %187 = vmatpush1.msra.mxu0 %v177
    %188 = vmatprep.subr.mxu0 0.0
    %189 = vmatpush1.msra.mxu0 %v178
    %190 = vmatprep.subr.mxu0 0.0
    %191 = vmatpush1.msra.mxu0 %v179
    %192 = vmatprep.subr.mxu0 0.0
    %193 = vmatpush1.msra.mxu0 0.0
    %194 = vmatprep.subr.mxu0 0.0
    %195 = vmatpush1.msra.mxu0 0.0
    %196 = vmatprep.subr.mxu0 0.0
    %197 = vmatpush1.msra.mxu0 0.0
    %198 = vmatprep.subr.mxu0 0.0
    %199 = vmatpush1.msra.mxu0 0.0
    %200 = vmatprep.subr.mxu0 0.0
    %201 = vmatpush1.msra.mxu0 0.0
    %202 = vmatprep.subr.mxu0 0.0
    %203 = vmatpush1.msra.mxu0 0.0
    %204 = vmatprep.subr.mxu0 0.0
    %205 = vmatpush1.msra.mxu0 0.0
    %206 = vmatprep.subr.mxu0 0.0
    %207 = vmatpush1.msra.mxu0 0.0
    %208 = vmatprep.subr.mxu0 0.0
    %209 = vmatpush1.msra.mxu0 0.0
    %210 = vmatprep.subr.mxu0 0.0
    %211 = vmatpush1.msra.mxu0 0.0
    %212 = vmatprep.subr.mxu0 0.0
    %213 = vmatpush1.msra.mxu0 0.0
    %214 = vmatprep.subr.mxu0 0.0
    %215 = vmatpush1.msra.mxu0 0.0
    %216 = vmatprep.subr.mxu0 0.0
    %217 = vmatpush1.msra.mxu0 0.0
    %218 = vmatprep.subr.mxu0 0.0
    %219 = vmatpush1.msra.mxu0 0.0
    %220 = vmatprep.subr.mxu0 0.0
    %221 = vmatpush1.msra.mxu0 0.0
    %222 = vmatprep.subr.mxu0 0.0
    %223 = vmatpush1.msra.mxu0 0.0
    %224 = vmatprep.subr.mxu0 0.0
    %225 = vmatpush1.msra.mxu0 0.0
    %226 = vmatprep.subr.mxu0 0.0
    %227 = vmatpush1.msra.mxu0 0.0
    %228 = vmatprep.subr.mxu0 0.0
    %229 = vmatpush1.msra.mxu0 0.0
    %230 = vmatprep.subr.mxu0 0.0
    %231 = vmatpush1.msra.mxu0 0.0
    %232 = vmatprep.subr.mxu0 0.0
    %233 = vmatpush1.msra.mxu0 0.0
    %234 = vmatprep.subr.mxu0 0.0
    %235 = vmatpush1.msra.mxu0 0.0
    %236 = vmatprep.subr.mxu0 0.0
    %237 = vmatpush1.msra.mxu0 0.0
    %238 = vmatprep.subr.mxu0 0.0
    %239 = vmatpush1.msra.mxu0 0.0
    %240 = vmatprep.subr.mxu0 0.0
    %241 = vmatpush1.msra.mxu0 0.0
    %242 = vmatprep.subr.mxu0 0.0
    %243 = vmatpush1.msra.mxu0 0.0
    %244 = vmatprep.subr.mxu0 0.0
    %245 = vmatpush1.msra.mxu0 0.0
    %246 = vmatprep.subr.mxu0 0.0
    %247 = vmatpush1.msra.mxu0 0.0
    %248 = vmatprep.mubr.f32.mxu0 0.0
    %249 = vmatmul.mubr.f32.gmra.mrb[0].mxu0 %v182
    %v250 = vpop.f32.mrb[0].mxu0
    %v251 = vadd.f32 0.0, %v250
    %v252 = vpop.f32.mrb[0].mxu0
    %253 = vdwg.mxu0
    %v255 = vsel %vm180, %v169, 0
    %257 = vmatprep.subr.mxu0 0.0
    %258 = vmatpush1.msra.mxu0 %v172
    %259 = vmatprep.subr.mxu0 0.0
    %260 = vmatpush1.msra.mxu0 %v173
    %261 = vmatprep.subr.mxu0 0.0
    %262 = vmatpush1.msra.mxu0 %v174
    %263 = vmatprep.subr.mxu0 0.0
    %264 = vmatpush1.msra.mxu0 %v175
    %265 = vmatprep.subr.mxu0 0.0
    %266 = vmatpush1.msra.mxu0 0.0
    %267 = vmatprep.subr.mxu0 0.0
    %268 = vmatpush1.msra.mxu0 0.0
    %269 = vmatprep.subr.mxu0 0.0
    %270 = vmatpush1.msra.mxu0 0.0
    %271 = vmatprep.subr.mxu0 0.0
    %272 = vmatpush1.msra.mxu0 0.0
    %273 = vmatprep.subr.mxu0 0.0
    %274 = vmatpush1.msra.mxu0 0.0
    %275 = vmatprep.subr.mxu0 0.0
    %276 = vmatpush1.msra.mxu0 0.0
    %277 = vmatprep.subr.mxu0 0.0
    %278 = vmatpush1.msra.mxu0 0.0
    %279 = vmatprep.subr.mxu0 0.0
    %280 = vmatpush1.msra.mxu0 0.0
    %281 = vmatprep.subr.mxu0 0.0
    %282 = vmatpush1.msra.mxu0 0.0
    %283 = vmatprep.subr.mxu0 0.0
    %284 = vmatpush1.msra.mxu0 0.0
    %285 = vmatprep.subr.mxu0 0.0
    %286 = vmatpush1.msra.mxu0 0.0
    %287 = vmatprep.subr.mxu0 0.0
    %288 = vmatpush1.msra.mxu0 0.0
    %289 = vmatprep.subr.mxu0 0.0
    %290 = vmatpush1.msra.mxu0 0.0
    %291 = vmatprep.subr.mxu0 0.0
    %292 = vmatpush1.msra.mxu0 0.0
    %293 = vmatprep.subr.mxu0 0.0
    %294 = vmatpush1.msra.mxu0 0.0
    %295 = vmatprep.subr.mxu0 0.0
    %296 = vmatpush1.msra.mxu0 0.0
    %297 = vmatprep.subr.mxu0 0.0
    %298 = vmatpush1.msra.mxu0 0.0
    %299 = vmatprep.subr.mxu0 0.0
    %300 = vmatpush1.msra.mxu0 0.0
    %301 = vmatprep.subr.mxu0 0.0
    %302 = vmatpush1.msra.mxu0 0.0
    %303 = vmatprep.subr.mxu0 0.0
    %304 = vmatpush1.msra.mxu0 0.0
    %305 = vmatprep.subr.mxu0 0.0
    %306 = vmatpush1.msra.mxu0 0.0
    %307 = vmatprep.subr.mxu0 0.0
    %308 = vmatpush1.msra.mxu0 0.0
    %309 = vmatprep.subr.mxu0 0.0
    %310 = vmatpush1.msra.mxu0 0.0
    %311 = vmatprep.subr.mxu0 0.0
    %312 = vmatpush1.msra.mxu0 0.0
    %313 = vmatprep.subr.mxu0 0.0
    %314 = vmatpush1.msra.mxu0 0.0
    %315 = vmatprep.subr.mxu0 0.0
    %316 = vmatpush1.msra.mxu0 0.0
    %317 = vmatprep.subr.mxu0 0.0
    %318 = vmatpush1.msra.mxu0 0.0
    %319 = vmatprep.subr.mxu0 0.0
    %320 = vmatpush1.msra.mxu0 0.0
    %321 = vmatprep.mubr.f32.mxu0 0.0
    %322 = vmatmul.mubr.f32.gmra.mrb[0].mxu0 %v255
    %v323 = vpop.f32.mrb[0].mxu0
    %v324 = vadd.f32 %v251, %v323
    %v325 = vpop.f32.mrb[0].mxu0
    %326 = vdwg.mxu0
    %v327 = vld [vmem:[%s4] sm:$0x1]
    %v329 = vlaneseq
    %v330 = vshrl.u32 %v329, 7
    %v331 = vsub.s32 0, %v330
    %v332 = vrot.slane %v327, %v331
    %v334 = vadd.f32 %v324, %v332
    %v335 = vxor.u32 %v334, 2147483648
    %v336 = vmul.f32 %v335, 1.442695
    %v337 = vpow.pop %v336
    %v338 = vadd.f32 %v337, 1.0
    %v339 = vrcp.pop %v338
    %v340 = vmul.f32 1.0, %v339
    %v341 = vtanh.pop %v334
    %343 = vrot.lane.b32.xlu0 %v69, 32
    %v344 = vpop.permute.xlu0 %343
    %v346 = vmul.f32 %v340, %v344
    %348 = vrot.lane.b32.xlu0 %v341, 64
    %v349 = vpop.permute.xlu0 %348
    %v351 = vmul.f32 %v340, %v349
    %353 = vrot.lane.b32.xlu0 %v351, 32
    %v354 = vpop.permute.xlu0 %353
    %v356 = vadd.f32 %v346, %v354
    %v357 = vtanh.pop %v356
    %359 = vrot.lane.b32.xlu0 %v357, 64
    %v360 = vpop.permute.xlu0 %359
    %v362 = vmul.f32 %v340, %v360
    %s363 = scalar_lea.vmem %s2, 32
    %v364 = vld [vmem:[%s363] sm:$0xff]
    %v365 = vld [vmem:[%s363 + $0x8] sm:$0xff]
    %v366 = vld [vmem:[%s363 + $0x10] sm:$0xff]
    %v367 = vld [vmem:[%s363 + $0x18] sm:$0xff]
    %s368 = scalar_lea.vmem %s3, 32
    %v369 = vld [vmem:[%s368] sm:$0xff]
    %v370 = vld [vmem:[%s368 + $0x8] sm:$0xff]
    %v371 = vld [vmem:[%s368 + $0x10] sm:$0xff]
    %v372 = vld [vmem:[%s368 + $0x18] sm:$0xff]
    %v374 = vsel %vm180, %v68, 0
    %376 = vmatprep.subr.mxu0 0.0
    %377 = vmatpush1.msra.mxu0 %v369
    %378 = vmatprep.subr.mxu0 0.0
    %379 = vmatpush1.msra.mxu0 %v370
    %380 = vmatprep.subr.mxu0 0.0
    %381 = vmatpush1.msra.mxu0 %v371
    %382 = vmatprep.subr.mxu0 0.0
    %383 = vmatpush1.msra.mxu0 %v372
    %384 = vmatprep.subr.mxu0 0.0
    %385 = vmatpush1.msra.mxu0 0.0
    %386 = vmatprep.subr.mxu0 0.0
    %387 = vmatpush1.msra.mxu0 0.0
    %388 = vmatprep.subr.mxu0 0.0
    %389 = vmatpush1.msra.mxu0 0.0
    %390 = vmatprep.subr.mxu0 0.0
    %391 = vmatpush1.msra.mxu0 0.0
    %392 = vmatprep.subr.mxu0 0.0
    %393 = vmatpush1.msra.mxu0 0.0
    %394 = vmatprep.subr.mxu0 0.0
    %395 = vmatpush1.msra.mxu0 0.0
    %396 = vmatprep.subr.mxu0 0.0
    %397 = vmatpush1.msra.mxu0 0.0
    %398 = vmatprep.subr.mxu0 0.0
    %399 = vmatpush1.msra.mxu0 0.0
    %400 = vmatprep.subr.mxu0 0.0
    %401 = vmatpush1.msra.mxu0 0.0
    %402 = vmatprep.subr.mxu0 0.0
    %403 = vmatpush1.msra.mxu0 0.0
    %404 = vmatprep.subr.mxu0 0.0
    %405 = vmatpush1.msra.mxu0 0.0
    %406 = vmatprep.subr.mxu0 0.0
    %407 = vmatpush1.msra.mxu0 0.0
    %408 = vmatprep.subr.mxu0 0.0
    %409 = vmatpush1.msra.mxu0 0.0
    %410 = vmatprep.subr.mxu0 0.0
    %411 = vmatpush1.msra.mxu0 0.0
    %412 = vmatprep.subr.mxu0 0.0
    %413 = vmatpush1.msra.mxu0 0.0
    %414 = vmatprep.subr.mxu0 0.0
    %415 = vmatpush1.msra.mxu0 0.0
    %416 = vmatprep.subr.mxu0 0.0
    %417 = vmatpush1.msra.mxu0 0.0
    %418 = vmatprep.subr.mxu0 0.0
    %419 = vmatpush1.msra.mxu0 0.0
    %420 = vmatprep.subr.mxu0 0.0
    %421 = vmatpush1.msra.mxu0 0.0
    %422 = vmatprep.subr.mxu0 0.0
    %423 = vmatpush1.msra.mxu0 0.0
    %424 = vmatprep.subr.mxu0 0.0
    %425 = vmatpush1.msra.mxu0 0.0
    %426 = vmatprep.subr.mxu0 0.0
    %427 = vmatpush1.msra.mxu0 0.0
    %428 = vmatprep.subr.mxu0 0.0
    %429 = vmatpush1.msra.mxu0 0.0
    %430 = vmatprep.subr.mxu0 0.0
    %431 = vmatpush1.msra.mxu0 0.0
    %432 = vmatprep.subr.mxu0 0.0
    %433 = vmatpush1.msra.mxu0 0.0
    %434 = vmatprep.subr.mxu0 0.0
    %435 = vmatpush1.msra.mxu0 0.0
    %436 = vmatprep.subr.mxu0 0.0
    %437 = vmatpush1.msra.mxu0 0.0
    %438 = vmatprep.subr.mxu0 0.0
    %439 = vmatpush1.msra.mxu0 0.0
    %440 = vmatprep.mubr.f32.mxu0 0.0
    %441 = vmatmul.mubr.f32.gmra.mrb[0].mxu0 %v374
    %v442 = vpop.f32.mrb[0].mxu0
    %v443 = vadd.f32 0.0, %v442
    %v444 = vpop.f32.mrb[0].mxu0
    %445 = vdwg.mxu0
    %447 = vrot.lane.b32.xlu0 %v362, 32
    %v448 = vpop.permute.xlu0 %447
    %v449 = vsel %vm180, %v448, 0
    %451 = vmatprep.subr.mxu0 0.0
    %452 = vmatpush1.msra.mxu0 %v364
    %453 = vmatprep.subr.mxu0 0.0
    %454 = vmatpush1.msra.mxu0 %v365
    %455 = vmatprep.subr.mxu0 0.0
    %456 = vmatpush1.msra.mxu0 %v366
    %457 = vmatprep.subr.mxu0 0.0
    %458 = vmatpush1.msra.mxu0 %v367
    %459 = vmatprep.subr.mxu0 0.0
    %460 = vmatpush1.msra.mxu0 0.0
    %461 = vmatprep.subr.mxu0 0.0
    %462 = vmatpush1.msra.mxu0 0.0
    %463 = vmatprep.subr.mxu0 0.0
    %464 = vmatpush1.msra.mxu0 0.0
    %465 = vmatprep.subr.mxu0 0.0
    %466 = vmatpush1.msra.mxu0 0.0
    %467 = vmatprep.subr.mxu0 0.0
    %468 = vmatpush1.msra.mxu0 0.0
    %469 = vmatprep.subr.mxu0 0.0
    %470 = vmatpush1.msra.mxu0 0.0
    %471 = vmatprep.subr.mxu0 0.0
    %472 = vmatpush1.msra.mxu0 0.0
    %473 = vmatprep.subr.mxu0 0.0
    %474 = vmatpush1.msra.mxu0 0.0
    %475 = vmatprep.subr.mxu0 0.0
    %476 = vmatpush1.msra.mxu0 0.0
    %477 = vmatprep.subr.mxu0 0.0
    %478 = vmatpush1.msra.mxu0 0.0
    %479 = vmatprep.subr.mxu0 0.0
    %480 = vmatpush1.msra.mxu0 0.0
    %481 = vmatprep.subr.mxu0 0.0
    %482 = vmatpush1.msra.mxu0 0.0
    %483 = vmatprep.subr.mxu0 0.0
    %484 = vmatpush1.msra.mxu0 0.0
    %485 = vmatprep.subr.mxu0 0.0
    %486 = vmatpush1.msra.mxu0 0.0
    %487 = vmatprep.subr.mxu0 0.0
    %488 = vmatpush1.msra.mxu0 0.0
    %489 = vmatprep.subr.mxu0 0.0
    %490 = vmatpush1.msra.mxu0 0.0
    %491 = vmatprep.subr.mxu0 0.0
    %492 = vmatpush1.msra.mxu0 0.0
    %493 = vmatprep.subr.mxu0 0.0
    %494 = vmatpush1.msra.mxu0 0.0
    %495 = vmatprep.subr.mxu0 0.0
    %496 = vmatpush1.msra.mxu0 0.0
    %497 = vmatprep.subr.mxu0 0.0
    %498 = vmatpush1.msra.mxu0 0.0
    %499 = vmatprep.subr.mxu0 0.0
    %500 = vmatpush1.msra.mxu0 0.0
    %501 = vmatprep.subr.mxu0 0.0
    %502 = vmatpush1.msra.mxu0 0.0
    %503 = vmatprep.subr.mxu0 0.0
    %504 = vmatpush1.msra.mxu0 0.0
    %505 = vmatprep.subr.mxu0 0.0
    %506 = vmatpush1.msra.mxu0 0.0
    %507 = vmatprep.subr.mxu0 0.0
    %508 = vmatpush1.msra.mxu0 0.0
    %509 = vmatprep.subr.mxu0 0.0
    %510 = vmatpush1.msra.mxu0 0.0
    %511 = vmatprep.subr.mxu0 0.0
    %512 = vmatpush1.msra.mxu0 0.0
    %513 = vmatprep.subr.mxu0 0.0
    %514 = vmatpush1.msra.mxu0 0.0
    %515 = vmatprep.mubr.f32.mxu0 0.0
    %516 = vmatmul.mubr.f32.gmra.mrb[0].mxu0 %v449
    %v517 = vpop.f32.mrb[0].mxu0
    %v518 = vadd.f32 %v443, %v517
    %v519 = vpop.f32.mrb[0].mxu0
    %520 = vdwg.mxu0
    %s521 = scalar_lea.vmem %s4, 1
    %v522 = vld [vmem:[%s521] sm:$0x1]
    %v524 = vlaneseq
    %v525 = vshrl.u32 %v524, 7
    %v526 = vsub.s32 0, %v525
    %v527 = vrot.slane %v522, %v526
    %v529 = vadd.f32 %v518, %v527
    %v530 = vxor.u32 %v529, 2147483648
    %v531 = vmul.f32 %v530, 1.442695
    %v532 = vpow.pop %v531
    %v533 = vadd.f32 %v532, 1.0
    %v534 = vrcp.pop %v533
    %v535 = vmul.f32 1.0, %v534
    %v536 = vtanh.pop %v529
    %538 = vrot.lane.b32.xlu0 %v71, 32
    %v539 = vpop.permute.xlu0 %538
    %v541 = vmul.f32 %v535, %v539
    %543 = vrot.lane.b32.xlu0 %v536, 64
    %v544 = vpop.permute.xlu0 %543
    %v546 = vmul.f32 %v535, %v544
    %548 = vrot.lane.b32.xlu0 %v546, 32
    %v549 = vpop.permute.xlu0 %548
    %v551 = vadd.f32 %v541, %v549
    %v552 = vtanh.pop %v551
    %554 = vrot.lane.b32.xlu0 %v552, 64
    %v555 = vpop.permute.xlu0 %554
    %v557 = vmul.f32 %v535, %v555
    %v558 = vld [vmem:[%s5] sm:$0xff]
    %v559 = vld [vmem:[%s5 + $0x8] sm:$0xff]
    %v560 = vld [vmem:[%s5 + $0x10] sm:$0xff]
    %v561 = vld [vmem:[%s5 + $0x18] sm:$0xff]
    %v562 = vld [vmem:[%s6] sm:$0x1]
    %v564 = vlaneseq
    %v565 = vshrl.u32 %v564, 7
    %v566 = vsub.s32 0, %v565
    %v567 = vrot.slane %v562, %v566
    %570 = vrot.lane.b32.xlu0 %v557, 32
    %v571 = vpop.permute.xlu0 %570
    %v572 = vsel %vm180, %v571, 0
    %574 = vmatprep.subr.mxu0 0.0
    %575 = vmatpush1.msra.mxu0 %v558
    %576 = vmatprep.subr.mxu0 0.0
    %577 = vmatpush1.msra.mxu0 %v559
    %578 = vmatprep.subr.mxu0 0.0
    %579 = vmatpush1.msra.mxu0 %v560
    %580 = vmatprep.subr.mxu0 0.0
    %581 = vmatpush1.msra.mxu0 %v561
    %582 = vmatprep.subr.mxu0 0.0
    %583 = vmatpush1.msra.mxu0 0.0
    %584 = vmatprep.subr.mxu0 0.0
    %585 = vmatpush1.msra.mxu0 0.0
    %586 = vmatprep.subr.mxu0 0.0
    %587 = vmatpush1.msra.mxu0 0.0
    %588 = vmatprep.subr.mxu0 0.0
    %589 = vmatpush1.msra.mxu0 0.0
    %590 = vmatprep.subr.mxu0 0.0
    %591 = vmatpush1.msra.mxu0 0.0
    %592 = vmatprep.subr.mxu0 0.0
    %593 = vmatpush1.msra.mxu0 0.0
    %594 = vmatprep.subr.mxu0 0.0
    %595 = vmatpush1.msra.mxu0 0.0
    %596 = vmatprep.subr.mxu0 0.0
    %597 = vmatpush1.msra.mxu0 0.0
    %598 = vmatprep.subr.mxu0 0.0
    %599 = vmatpush1.msra.mxu0 0.0
    %600 = vmatprep.subr.mxu0 0.0
    %601 = vmatpush1.msra.mxu0 0.0
    %602 = vmatprep.subr.mxu0 0.0
    %603 = vmatpush1.msra.mxu0 0.0
    %604 = vmatprep.subr.mxu0 0.0
    %605 = vmatpush1.msra.mxu0 0.0
    %606 = vmatprep.subr.mxu0 0.0
    %607 = vmatpush1.msra.mxu0 0.0
    %608 = vmatprep.subr.mxu0 0.0
    %609 = vmatpush1.msra.mxu0 0.0
    %610 = vmatprep.subr.mxu0 0.0
    %611 = vmatpush1.msra.mxu0 0.0
    %612 = vmatprep.subr.mxu0 0.0
    %613 = vmatpush1.msra.mxu0 0.0
    %614 = vmatprep.subr.mxu0 0.0
    %615 = vmatpush1.msra.mxu0 0.0
    %616 = vmatprep.subr.mxu0 0.0
    %617 = vmatpush1.msra.mxu0 0.0
    %618 = vmatprep.subr.mxu0 0.0
    %619 = vmatpush1.msra.mxu0 0.0
    %620 = vmatprep.subr.mxu0 0.0
    %621 = vmatpush1.msra.mxu0 0.0
    %622 = vmatprep.subr.mxu0 0.0
    %623 = vmatpush1.msra.mxu0 0.0
    %624 = vmatprep.subr.mxu0 0.0
    %625 = vmatpush1.msra.mxu0 0.0
    %626 = vmatprep.subr.mxu0 0.0
    %627 = vmatpush1.msra.mxu0 0.0
    %628 = vmatprep.subr.mxu0 0.0
    %629 = vmatpush1.msra.mxu0 0.0
    %630 = vmatprep.subr.mxu0 0.0
    %631 = vmatpush1.msra.mxu0 0.0
    %632 = vmatprep.subr.mxu0 0.0
    %633 = vmatpush1.msra.mxu0 0.0
    %634 = vmatprep.subr.mxu0 0.0
    %635 = vmatpush1.msra.mxu0 0.0
    %636 = vmatprep.subr.mxu0 0.0
    %637 = vmatpush1.msra.mxu0 0.0
    %638 = vmatprep.mubr.f32.mxu0 0.0
    %639 = vmatmul.mubr.f32.gmra.mrb[0].mxu0 %v572
    %v640 = vpop.f32.mrb[0].mxu0
    %v641 = vadd.f32 %v567, %v640
    %v642 = vpop.f32.mrb[0].mxu0
    %643 = vdwg.mxu0
    %644 = vst [vmem:[#allocation7] sm:$0xff] %v641
    %s645 = sld [smem:[#allocation2 + $0x2]]
    %v646 = vstv %s645
    %vm647 = vcmp.eq.s32.totalorder %v65, %v646
    %vm648 = vmand %vm73, %vm647
    %v649 = vsel %vm648, 1.0, 0.0
    %v650 = vadd.f32 %v649, 0.0
    %s651 = sld [smem:[#allocation2 + $0x3]]
    %v652 = vstv %s651
    %vm653 = vcmp.eq.s32.totalorder %v65, %v652
    %vm654 = vmand %vm80, %vm653
    %v655 = vsel %vm654, 1.0, 0.0
    %v656 = vadd.f32 %v650, %v655
    %v657 = vld [vmem:[%s1] sm:$0xff]
    %v658 = vld [vmem:[%s1 + $0x8] sm:$0xff]
    %v659 = vld [vmem:[%s1 + $0x10] sm:$0xff]
    %v660 = vld [vmem:[%s1 + $0x18] sm:$0xff]
    %v661 = vld [vmem:[%s1 + $0x20] sm:$0xff]
    %v662 = vld [vmem:[%s1 + $0x28] sm:$0xff]
    %v663 = vld [vmem:[%s1 + $0x30] sm:$0xff]
    %v664 = vld [vmem:[%s1 + $0x38] sm:$0xff]
    %v665 = vld [vmem:[%s1 + $0x40] sm:$0xff]
    %v666 = vld [vmem:[%s1 + $0x48] sm:$0xff]
    %v667 = vld [vmem:[%s1 + $0x50] sm:$0xff]
    %v668 = vld [vmem:[%s1 + $0x58] sm:$0xff]
    %v669 = vld [vmem:[%s1 + $0x60] sm:$0xff]
    %v670 = vld [vmem:[%s1 + $0x68] sm:$0xff]
    %v671 = vld [vmem:[%s1 + $0x70] sm:$0xff]
    %v672 = vld [vmem:[%s1 + $0x78] sm:$0xff]
    %673 = vmatprep.subr.mxu0 0.0
    %674 = vmatpush1.msra.mxu0 %v657
    %675 = vmatprep.subr.mxu0 0.0
    %676 = vmatpush1.msra.mxu0 %v658
    %677 = vmatprep.subr.mxu0 0.0
    %678 = vmatpush1.msra.mxu0 %v659
    %679 = vmatprep.subr.mxu0 0.0
    %680 = vmatpush1.msra.mxu0 %v660
    %681 = vmatprep.subr.mxu0 0.0
    %682 = vmatpush1.msra.mxu0 %v661
    %683 = vmatprep.subr.mxu0 0.0
    %684 = vmatpush1.msra.mxu0 %v662
    %685 = vmatprep.subr.mxu0 0.0
    %686 = vmatpush1.msra.mxu0 %v663
    %687 = vmatprep.subr.mxu0 0.0
    %688 = vmatpush1.msra.mxu0 %v664
    %689 = vmatprep.subr.mxu0 0.0
    %690 = vmatpush1.msra.mxu0 %v665
    %691 = vmatprep.subr.mxu0 0.0
    %692 = vmatpush1.msra.mxu0 %v666
    %693 = vmatprep.subr.mxu0 0.0
    %694 = vmatpush1.msra.mxu0 %v667
    %695 = vmatprep.subr.mxu0 0.0
    %696 = vmatpush1.msra.mxu0 %v668
    %697 = vmatprep.subr.mxu0 0.0
    %698 = vmatpush1.msra.mxu0 %v669
    %699 = vmatprep.subr.mxu0 0.0
    %700 = vmatpush1.msra.mxu0 %v670
    %701 = vmatprep.subr.mxu0 0.0
    %702 = vmatpush1.msra.mxu0 %v671
    %703 = vmatprep.subr.mxu0 0.0
    %704 = vmatpush1.msra.mxu0 %v672
    %705 = vmatprep.subr.mxu0 0.0
    %706 = vmatpush1.msra.mxu0 0.0
    %707 = vmatprep.subr.mxu0 0.0
    %708 = vmatpush1.msra.mxu0 0.0
    %709 = vmatprep.subr.mxu0 0.0
    %710 = vmatpush1.msra.mxu0 0.0
    %711 = vmatprep.subr.mxu0 0.0
    %712 = vmatpush1.msra.mxu0 0.0
    %713 = vmatprep.subr.mxu0 0.0
    %714 = vmatpush1.msra.mxu0 0.0
    %715 = vmatprep.subr.mxu0 0.0
    %716 = vmatpush1.msra.mxu0 0.0
    %717 = vmatprep.subr.mxu0 0.0
    %718 = vmatpush1.msra.mxu0 0.0
    %719 = vmatprep.subr.mxu0 0.0
    %720 = vmatpush1.msra.mxu0 0.0
    %721 = vmatprep.subr.mxu0 0.0
    %722 = vmatpush1.msra.mxu0 0.0
    %723 = vmatprep.subr.mxu0 0.0
    %724 = vmatpush1.msra.mxu0 0.0
    %725 = vmatprep.subr.mxu0 0.0
    %726 = vmatpush1.msra.mxu0 0.0
    %727 = vmatprep.subr.mxu0 0.0
    %728 = vmatpush1.msra.mxu0 0.0
    %729 = vmatprep.subr.mxu0 0.0
    %730 = vmatpush1.msra.mxu0 0.0
    %731 = vmatprep.subr.mxu0 0.0
    %732 = vmatpush1.msra.mxu0 0.0
    %733 = vmatprep.subr.mxu0 0.0
    %734 = vmatpush1.msra.mxu0 0.0
    %735 = vmatprep.subr.mxu0 0.0
    %736 = vmatpush1.msra.mxu0 0.0
    %737 = vmatprep.mubr.f32.mxu0 0.0
    %738 = vmatmul.mubr.f32.gmra.mrb[0].mxu0 %v656
    %v739 = vpop.f32.mrb[0].mxu0
    %v740 = vadd.f32 0.0, %v739
    %v741 = vpop.f32.mrb[0].mxu0
    %742 = vdwg.mxu0
    %v743 = vld [vmem:[%s2] sm:$0xff]
    %v744 = vld [vmem:[%s2 + $0x8] sm:$0xff]
    %v745 = vld [vmem:[%s2 + $0x10] sm:$0xff]
    %v746 = vld [vmem:[%s2 + $0x18] sm:$0xff]
    %v747 = vld [vmem:[%s3] sm:$0xff]
    %v748 = vld [vmem:[%s3 + $0x8] sm:$0xff]
    %v749 = vld [vmem:[%s3 + $0x10] sm:$0xff]
    %v750 = vld [vmem:[%s3 + $0x18] sm:$0xff]
    %751 = vmatprep.subr.mxu0 0.0
    %752 = vmatpush1.msra.mxu0 %v747
    %753 = vmatprep.subr.mxu0 0.0
    %754 = vmatpush1.msra.mxu0 %v748
    %755 = vmatprep.subr.mxu0 0.0
    %756 = vmatpush1.msra.mxu0 %v749
    %757 = vmatprep.subr.mxu0 0.0
    %758 = vmatpush1.msra.mxu0 %v750
    %759 = vmatprep.subr.mxu0 0.0
    %760 = vmatpush1.msra.mxu0 0.0
    %761 = vmatprep.subr.mxu0 0.0
    %762 = vmatpush1.msra.mxu0 0.0
    %763 = vmatprep.subr.mxu0 0.0
    %764 = vmatpush1.msra.mxu0 0.0
    %765 = vmatprep.subr.mxu0 0.0
    %766 = vmatpush1.msra.mxu0 0.0
    %767 = vmatprep.subr.mxu0 0.0
    %768 = vmatpush1.msra.mxu0 0.0
    %769 = vmatprep.subr.mxu0 0.0
    %770 = vmatpush1.msra.mxu0 0.0
    %771 = vmatprep.subr.mxu0 0.0
    %772 = vmatpush1.msra.mxu0 0.0
    %773 = vmatprep.subr.mxu0 0.0
    %774 = vmatpush1.msra.mxu0 0.0
    %775 = vmatprep.subr.mxu0 0.0
    %776 = vmatpush1.msra.mxu0 0.0
    %777 = vmatprep.subr.mxu0 0.0
    %778 = vmatpush1.msra.mxu0 0.0
    %779 = vmatprep.subr.mxu0 0.0
    %780 = vmatpush1.msra.mxu0 0.0
    %781 = vmatprep.subr.mxu0 0.0
    %782 = vmatpush1.msra.mxu0 0.0
    %783 = vmatprep.subr.mxu0 0.0
    %784 = vmatpush1.msra.mxu0 0.0
    %785 = vmatprep.subr.mxu0 0.0
    %786 = vmatpush1.msra.mxu0 0.0
    %787 = vmatprep.subr.mxu0 0.0
    %788 = vmatpush1.msra.mxu0 0.0
    %789 = vmatprep.subr.mxu0 0.0
    %790 = vmatpush1.msra.mxu0 0.0
    %791 = vmatprep.subr.mxu0 0.0
    %792 = vmatpush1.msra.mxu0 0.0
    %793 = vmatprep.subr.mxu0 0.0
    %794 = vmatpush1.msra.mxu0 0.0
    %795 = vmatprep.subr.mxu0 0.0
    %796 = vmatpush1.msra.mxu0 0.0
    %797 = vmatprep.subr.mxu0 0.0
    %798 = vmatpush1.msra.mxu0 0.0
    %799 = vmatprep.subr.mxu0 0.0
    %800 = vmatpush1.msra.mxu0 0.0
    %801 = vmatprep.subr.mxu0 0.0
    %802 = vmatpush1.msra.mxu0 0.0
    %803 = vmatprep.subr.mxu0 0.0
    %804 = vmatpush1.msra.mxu0 0.0
    %805 = vmatprep.subr.mxu0 0.0
    %806 = vmatpush1.msra.mxu0 0.0
    %807 = vmatprep.subr.mxu0 0.0
    %808 = vmatpush1.msra.mxu0 0.0
    %809 = vmatprep.subr.mxu0 0.0
    %810 = vmatpush1.msra.mxu0 0.0
    %811 = vmatprep.subr.mxu0 0.0
    %812 = vmatpush1.msra.mxu0 0.0
    %813 = vmatprep.subr.mxu0 0.0
    %814 = vmatpush1.msra.mxu0 0.0
    %815 = vmatprep.mubr.f32.mxu0 0.0
    %816 = vmatmul.mubr.f32.gmra.mrb[0].mxu0 %v449
    %v817 = vpop.f32.mrb[0].mxu0
    %v818 = vadd.f32 0.0, %v817
    %v819 = vpop.f32.mrb[0].mxu0
    %820 = vdwg.mxu0
    %v822 = vsel %vm180, %v740, 0
    %824 = vmatprep.subr.mxu0 0.0
    %825 = vmatpush1.msra.mxu0 %v743
    %826 = vmatprep.subr.mxu0 0.0
    %827 = vmatpush1.msra.mxu0 %v744
    %828 = vmatprep.subr.mxu0 0.0
    %829 = vmatpush1.msra.mxu0 %v745
    %830 = vmatprep.subr.mxu0 0.0
    %831 = vmatpush1.msra.mxu0 %v746
    %832 = vmatprep.subr.mxu0 0.0
    %833 = vmatpush1.msra.mxu0 0.0
    %834 = vmatprep.subr.mxu0 0.0
    %835 = vmatpush1.msra.mxu0 0.0
    %836 = vmatprep.subr.mxu0 0.0
    %837 = vmatpush1.msra.mxu0 0.0
    %838 = vmatprep.subr.mxu0 0.0
    %839 = vmatpush1.msra.mxu0 0.0
    %840 = vmatprep.subr.mxu0 0.0
    %841 = vmatpush1.msra.mxu0 0.0
    %842 = vmatprep.subr.mxu0 0.0
    %843 = vmatpush1.msra.mxu0 0.0
    %844 = vmatprep.subr.mxu0 0.0
    %845 = vmatpush1.msra.mxu0 0.0
    %846 = vmatprep.subr.mxu0 0.0
    %847 = vmatpush1.msra.mxu0 0.0
    %848 = vmatprep.subr.mxu0 0.0
    %849 = vmatpush1.msra.mxu0 0.0
    %850 = vmatprep.subr.mxu0 0.0
    %851 = vmatpush1.msra.mxu0 0.0
    %852 = vmatprep.subr.mxu0 0.0
    %853 = vmatpush1.msra.mxu0 0.0
    %854 = vmatprep.subr.mxu0 0.0
    %855 = vmatpush1.msra.mxu0 0.0
    %856 = vmatprep.subr.mxu0 0.0
    %857 = vmatpush1.msra.mxu0 0.0
    %858 = vmatprep.subr.mxu0 0.0
    %859 = vmatpush1.msra.mxu0 0.0
    %860 = vmatprep.subr.mxu0 0.0
    %861 = vmatpush1.msra.mxu0 0.0
    %862 = vmatprep.subr.mxu0 0.0
    %863 = vmatpush1.msra.mxu0 0.0
    %864 = vmatprep.subr.mxu0 0.0
    %865 = vmatpush1.msra.mxu0 0.0
    %866 = vmatprep.subr.mxu0 0.0
    %867 = vmatpush1.msra.mxu0 0.0
    %868 = vmatprep.subr.mxu0 0.0
    %869 = vmatpush1.msra.mxu0 0.0
    %870 = vmatprep.subr.mxu0 0.0
    %871 = vmatpush1.msra.mxu0 0.0
    %872 = vmatprep.subr.mxu0 0.0
    %873 = vmatpush1.msra.mxu0 0.0
    %874 = vmatprep.subr.mxu0 0.0
    %875 = vmatpush1.msra.mxu0 0.0
    %876 = vmatprep.subr.mxu0 0.0
    %877 = vmatpush1.msra.mxu0 0.0
    %878 = vmatprep.subr.mxu0 0.0
    %879 = vmatpush1.msra.mxu0 0.0
    %880 = vmatprep.subr.mxu0 0.0
    %881 = vmatpush1.msra.mxu0 0.0
    %882 = vmatprep.subr.mxu0 0.0
    %883 = vmatpush1.msra.mxu0 0.0
    %884 = vmatprep.subr.mxu0 0.0
    %885 = vmatpush1.msra.mxu0 0.0
    %886 = vmatprep.subr.mxu0 0.0
    %887 = vmatpush1.msra.mxu0 0.0
    %888 = vmatprep.mubr.f32.mxu0 0.0
    %889 = vmatmul.mubr.f32.gmra.mrb[0].mxu0 %v822
    %v890 = vpop.f32.mrb[0].mxu0
    %v891 = vadd.f32 %v818, %v890
    %v892 = vpop.f32.mrb[0].mxu0
    %893 = vdwg.mxu0
    %v894 = vld [vmem:[%s4] sm:$0x1]
    %v896 = vlaneseq
    %v897 = vshrl.u32 %v896, 7
    %v898 = vsub.s32 0, %v897
    %v899 = vrot.slane %v894, %v898
    %v901 = vadd.f32 %v891, %v899
    %v902 = vxor.u32 %v901, 2147483648
    %v903 = vmul.f32 %v902, 1.442695
    %v904 = vpow.pop %v903
    %v905 = vadd.f32 %v904, 1.0
    %v906 = vrcp.pop %v905
    %v907 = vmul.f32 1.0, %v906
    %v908 = vtanh.pop %v901
    %v909 = vmul.f32 %v907, %v356
    %911 = vrot.lane.b32.xlu0 %v908, 64
    %v912 = vpop.permute.xlu0 %911
    %v914 = vmul.f32 %v907, %v912
    %916 = vrot.lane.b32.xlu0 %v914, 32
    %v917 = vpop.permute.xlu0 %916
    %v919 = vadd.f32 %v909, %v917
    %v920 = vtanh.pop %v919
    %922 = vrot.lane.b32.xlu0 %v920, 64
    %v923 = vpop.permute.xlu0 %922
    %v925 = vmul.f32 %v907, %v923
    %v926 = vld [vmem:[%s363] sm:$0xff]
    %v927 = vld [vmem:[%s363 + $0x8] sm:$0xff]
    %v928 = vld [vmem:[%s363 + $0x10] sm:$0xff]
    %v929 = vld [vmem:[%s363 + $0x18] sm:$0xff]
    %v930 = vld [vmem:[%s368] sm:$0xff]
    %v931 = vld [vmem:[%s368 + $0x8] sm:$0xff]
    %v932 = vld [vmem:[%s368 + $0x10] sm:$0xff]
    %v933 = vld [vmem:[%s368 + $0x18] sm:$0xff]
    %934 = vmatprep.subr.mxu0 0.0
    %935 = vmatpush1.msra.mxu0 %v930
    %936 = vmatprep.subr.mxu0 0.0
    %937 = vmatpush1.msra.mxu0 %v931
    %938 = vmatprep.subr.mxu0 0.0
    %939 = vmatpush1.msra.mxu0 %v932
    %940 = vmatprep.subr.mxu0 0.0
    %941 = vmatpush1.msra.mxu0 %v933
    %942 = vmatprep.subr.mxu0 0.0
    %943 = vmatpush1.msra.mxu0 0.0
    %944 = vmatprep.subr.mxu0 0.0
    %945 = vmatpush1.msra.mxu0 0.0
    %946 = vmatprep.subr.mxu0 0.0
    %947 = vmatpush1.msra.mxu0 0.0
    %948 = vmatprep.subr.mxu0 0.0
    %949 = vmatpush1.msra.mxu0 0.0
    %950 = vmatprep.subr.mxu0 0.0
    %951 = vmatpush1.msra.mxu0 0.0
    %952 = vmatprep.subr.mxu0 0.0
    %953 = vmatpush1.msra.mxu0 0.0
    %954 = vmatprep.subr.mxu0 0.0
    %955 = vmatpush1.msra.mxu0 0.0
    %956 = vmatprep.subr.mxu0 0.0
    %957 = vmatpush1.msra.mxu0 0.0
    %958 = vmatprep.subr.mxu0 0.0
    %959 = vmatpush1.msra.mxu0 0.0
    %960 = vmatprep.subr.mxu0 0.0
    %961 = vmatpush1.msra.mxu0 0.0
    %962 = vmatprep.subr.mxu0 0.0
    %963 = vmatpush1.msra.mxu0 0.0
    %964 = vmatprep.subr.mxu0 0.0
    %965 = vmatpush1.msra.mxu0 0.0
    %966 = vmatprep.subr.mxu0 0.0
    %967 = vmatpush1.msra.mxu0 0.0
    %968 = vmatprep.subr.mxu0 0.0
    %969 = vmatpush1.msra.mxu0 0.0
    %970 = vmatprep.subr.mxu0 0.0
    %971 = vmatpush1.msra.mxu0 0.0
    %972 = vmatprep.subr.mxu0 0.0
    %973 = vmatpush1.msra.mxu0 0.0
    %974 = vmatprep.subr.mxu0 0.0
    %975 = vmatpush1.msra.mxu0 0.0
    %976 = vmatprep.subr.mxu0 0.0
    %977 = vmatpush1.msra.mxu0 0.0
    %978 = vmatprep.subr.mxu0 0.0
    %979 = vmatpush1.msra.mxu0 0.0
    %980 = vmatprep.subr.mxu0 0.0
    %981 = vmatpush1.msra.mxu0 0.0
    %982 = vmatprep.subr.mxu0 0.0
    %983 = vmatpush1.msra.mxu0 0.0
    %984 = vmatprep.subr.mxu0 0.0
    %985 = vmatpush1.msra.mxu0 0.0
    %986 = vmatprep.subr.mxu0 0.0
    %987 = vmatpush1.msra.mxu0 0.0
    %988 = vmatprep.subr.mxu0 0.0
    %989 = vmatpush1.msra.mxu0 0.0
    %990 = vmatprep.subr.mxu0 0.0
    %991 = vmatpush1.msra.mxu0 0.0
    %992 = vmatprep.subr.mxu0 0.0
    %993 = vmatpush1.msra.mxu0 0.0
    %994 = vmatprep.subr.mxu0 0.0
    %995 = vmatpush1.msra.mxu0 0.0
    %996 = vmatprep.subr.mxu0 0.0
    %997 = vmatpush1.msra.mxu0 0.0
    %998 = vmatprep.mubr.f32.mxu0 0.0
    %999 = vmatmul.mubr.f32.gmra.mrb[0].mxu0 %v572
    %v1000 = vpop.f32.mrb[0].mxu0
    %v1001 = vadd.f32 0.0, %v1000
    %v1002 = vpop.f32.mrb[0].mxu0
    %1003 = vdwg.mxu0
    %1005 = vrot.lane.b32.xlu0 %v925, 32
    %v1006 = vpop.permute.xlu0 %1005
    %v1007 = vsel %vm180, %v1006, 0
    %1009 = vmatprep.subr.mxu0 0.0
    %1010 = vmatpush1.msra.mxu0 %v926
    %1011 = vmatprep.subr.mxu0 0.0
    %1012 = vmatpush1.msra.mxu0 %v927
    %1013 = vmatprep.subr.mxu0 0.0
    %1014 = vmatpush1.msra.mxu0 %v928
    %1015 = vmatprep.subr.mxu0 0.0
    %1016 = vmatpush1.msra.mxu0 %v929
    %1017 = vmatprep.subr.mxu0 0.0
    %1018 = vmatpush1.msra.mxu0 0.0
    %1019 = vmatprep.subr.mxu0 0.0
    %1020 = vmatpush1.msra.mxu0 0.0
    %1021 = vmatprep.subr.mxu0 0.0
    %1022 = vmatpush1.msra.mxu0 0.0
    %1023 = vmatprep.subr.mxu0 0.0
    %1024 = vmatpush1.msra.mxu0 0.0
    %1025 = vmatprep.subr.mxu0 0.0
    %1026 = vmatpush1.msra.mxu0 0.0
    %1027 = vmatprep.subr.mxu0 0.0
    %1028 = vmatpush1.msra.mxu0 0.0
    %1029 = vmatprep.subr.mxu0 0.0
    %1030 = vmatpush1.msra.mxu0 0.0
    %1031 = vmatprep.subr.mxu0 0.0
    %1032 = vmatpush1.msra.mxu0 0.0
    %1033 = vmatprep.subr.mxu0 0.0
    %1034 = vmatpush1.msra.mxu0 0.0
    %1035 = vmatprep.subr.mxu0 0.0
    %1036 = vmatpush1.msra.mxu0 0.0
    %1037 = vmatprep.subr.mxu0 0.0
    %1038 = vmatpush1.msra.mxu0 0.0
    %1039 = vmatprep.subr.mxu0 0.0
    %1040 = vmatpush1.msra.mxu0 0.0
    %1041 = vmatprep.subr.mxu0 0.0
    %1042 = vmatpush1.msra.mxu0 0.0
    %1043 = vmatprep.subr.mxu0 0.0
    %1044 = vmatpush1.msra.mxu0 0.0
    %1045 = vmatprep.subr.mxu0 0.0
    %1046 = vmatpush1.msra.mxu0 0.0
    %1047 = vmatprep.subr.mxu0 0.0
    %1048 = vmatpush1.msra.mxu0 0.0
    %1049 = vmatprep.subr.mxu0 0.0
    %1050 = vmatpush1.msra.mxu0 0.0
    %1051 = vmatprep.subr.mxu0 0.0
    %1052 = vmatpush1.msra.mxu0 0.0
    %1053 = vmatprep.subr.mxu0 0.0
    %1054 = vmatpush1.msra.mxu0 0.0
    %1055 = vmatprep.subr.mxu0 0.0
    %1056 = vmatpush1.msra.mxu0 0.0
    %1057 = vmatprep.subr.mxu0 0.0
    %1058 = vmatpush1.msra.mxu0 0.0
    %1059 = vmatprep.subr.mxu0 0.0
    %1060 = vmatpush1.msra.mxu0 0.0
    %1061 = vmatprep.subr.mxu0 0.0
    %1062 = vmatpush1.msra.mxu0 0.0
    %1063 = vmatprep.subr.mxu0 0.0
    %1064 = vmatpush1.msra.mxu0 0.0
    %1065 = vmatprep.subr.mxu0 0.0
    %1066 = vmatpush1.msra.mxu0 0.0
    %1067 = vmatprep.subr.mxu0 0.0
    %1068 = vmatpush1.msra.mxu0 0.0
    %1069 = vmatprep.subr.mxu0 0.0
    %1070 = vmatpush1.msra.mxu0 0.0
    %1071 = vmatprep.subr.mxu0 0.0
    %1072 = vmatpush1.msra.mxu0 0.0
    %1073 = vmatprep.mubr.f32.mxu0 0.0
    %1074 = vmatmul.mubr.f32.gmra.mrb[0].mxu0 %v1007
    %v1075 = vpop.f32.mrb[0].mxu0
    %v1076 = vadd.f32 %v1001, %v1075
    %v1077 = vpop.f32.mrb[0].mxu0
    %1078 = vdwg.mxu0
    %v1079 = vld [vmem:[%s521] sm:$0x1]
    %v1081 = vlaneseq
    %v1082 = vshrl.u32 %v1081, 7
    %v1083 = vsub.s32 0, %v1082
    %v1084 = vrot.slane %v1079, %v1083
    %v1086 = vadd.f32 %v1076, %v1084
    %v1087 = vxor.u32 %v1086, 2147483648
    %v1088 = vmul.f32 %v1087, 1.442695
    %v1089 = vpow.pop %v1088
    %v1090 = vadd.f32 %v1089, 1.0
    %v1091 = vrcp.pop %v1090
    %v1092 = vmul.f32 1.0, %v1091
    %v1093 = vtanh.pop %v1086
    %v1094 = vmul.f32 %v1092, %v551
    %1096 = vrot.lane.b32.xlu0 %v1093, 64
    %v1097 = vpop.permute.xlu0 %1096
    %v1099 = vmul.f32 %v1092, %v1097
    %1101 = vrot.lane.b32.xlu0 %v1099, 32
    %v1102 = vpop.permute.xlu0 %1101
    %v1104 = vadd.f32 %v1094, %v1102
    %v1105 = vtanh.pop %v1104
    %1107 = vrot.lane.b32.xlu0 %v1105, 64
    %v1108 = vpop.permute.xlu0 %1107
    %v1110 = vmul.f32 %v1092, %v1108
    %v1111 = vld [vmem:[%s5] sm:$0xff]
    %v1112 = vld [vmem:[%s5 + $0x8] sm:$0xff]
    %v1113 = vld [vmem:[%s5 + $0x10] sm:$0xff]
    %v1114 = vld [vmem:[%s5 + $0x18] sm:$0xff]
    %v1115 = vld [vmem:[%s6] sm:$0x1]
    %v1117 = vlaneseq
    %v1118 = vshrl.u32 %v1117, 7
    %v1119 = vsub.s32 0, %v1118
    %v1120 = vrot.slane %v1115, %v1119
    %1123 = vrot.lane.b32.xlu0 %v1110, 32
    %v1124 = vpop.permute.xlu0 %1123
    %v1125 = vsel %vm180, %v1124, 0
    %1127 = vmatprep.subr.mxu0 0.0
    %1128 = vmatpush1.msra.mxu0 %v1111
    %1129 = vmatprep.subr.mxu0 0.0
    %1130 = vmatpush1.msra.mxu0 %v1112
    %1131 = vmatprep.subr.mxu0 0.0
    %1132 = vmatpush1.msra.mxu0 %v1113
    %1133 = vmatprep.subr.mxu0 0.0
    %1134 = vmatpush1.msra.mxu0 %v1114
    %1135 = vmatprep.subr.mxu0 0.0
    %1136 = vmatpush1.msra.mxu0 0.0
    %1137 = vmatprep.subr.mxu0 0.0
    %1138 = vmatpush1.msra.mxu0 0.0
    %1139 = vmatprep.subr.mxu0 0.0
    %1140 = vmatpush1.msra.mxu0 0.0
    %1141 = vmatprep.subr.mxu0 0.0
    %1142 = vmatpush1.msra.mxu0 0.0
    %1143 = vmatprep.subr.mxu0 0.0
    %1144 = vmatpush1.msra.mxu0 0.0
    %1145 = vmatprep.subr.mxu0 0.0
    %1146 = vmatpush1.msra.mxu0 0.0
    %1147 = vmatprep.subr.mxu0 0.0
    %1148 = vmatpush1.msra.mxu0 0.0
    %1149 = vmatprep.subr.mxu0 0.0
    %1150 = vmatpush1.msra.mxu0 0.0
    %1151 = vmatprep.subr.mxu0 0.0
    %1152 = vmatpush1.msra.mxu0 0.0
    %1153 = vmatprep.subr.mxu0 0.0
    %1154 = vmatpush1.msra.mxu0 0.0
    %1155 = vmatprep.subr.mxu0 0.0
    %1156 = vmatpush1.msra.mxu0 0.0
    %1157 = vmatprep.subr.mxu0 0.0
    %1158 = vmatpush1.msra.mxu0 0.0
    %1159 = vmatprep.subr.mxu0 0.0
    %1160 = vmatpush1.msra.mxu0 0.0
    %1161 = vmatprep.subr.mxu0 0.0
    %1162 = vmatpush1.msra.mxu0 0.0
    %1163 = vmatprep.subr.mxu0 0.0
    %1164 = vmatpush1.msra.mxu0 0.0
    %1165 = vmatprep.subr.mxu0 0.0
    %1166 = vmatpush1.msra.mxu0 0.0
    %1167 = vmatprep.subr.mxu0 0.0
    %1168 = vmatpush1.msra.mxu0 0.0
    %1169 = vmatprep.subr.mxu0 0.0
    %1170 = vmatpush1.msra.mxu0 0.0
    %1171 = vmatprep.subr.mxu0 0.0
    %1172 = vmatpush1.msra.mxu0 0.0
    %1173 = vmatprep.subr.mxu0 0.0
    %1174 = vmatpush1.msra.mxu0 0.0
    %1175 = vmatprep.subr.mxu0 0.0
    %1176 = vmatpush1.msra.mxu0 0.0
    %1177 = vmatprep.subr.mxu0 0.0
    %1178 = vmatpush1.msra.mxu0 0.0
    %1179 = vmatprep.subr.mxu0 0.0
    %1180 = vmatpush1.msra.mxu0 0.0
    %1181 = vmatprep.subr.mxu0 0.0
    %1182 = vmatpush1.msra.mxu0 0.0
    %1183 = vmatprep.subr.mxu0 0.0
    %1184 = vmatpush1.msra.mxu0 0.0
    %1185 = vmatprep.subr.mxu0 0.0
    %1186 = vmatpush1.msra.mxu0 0.0
    %1187 = vmatprep.subr.mxu0 0.0
    %1188 = vmatpush1.msra.mxu0 0.0
    %1189 = vmatprep.subr.mxu0 0.0
    %1190 = vmatpush1.msra.mxu0 0.0
    %1191 = vmatprep.mubr.f32.mxu0 0.0
    %1192 = vmatmul.mubr.f32.gmra.mrb[0].mxu0 %v1125
    %v1193 = vpop.f32.mrb[0].mxu0
    %v1194 = vadd.f32 %v1120, %v1193
    %v1195 = vpop.f32.mrb[0].mxu0
    %1196 = vdwg.mxu0
    %s1197 = scalar_lea.vmem [#allocation7], 8
    %1198 = vst [vmem:[%s1197] sm:$0xff] %v1194
    %s1199 = sld [smem:[#allocation2 + $0x4]]
    %v1200 = vstv %s1199
    %vm1201 = vcmp.eq.s32.totalorder %v65, %v1200
    %vm1202 = vmand %vm73, %vm1201
    %v1203 = vsel %vm1202, 1.0, 0.0
    %v1204 = vadd.f32 %v1203, 0.0
    %s1205 = sld [smem:[#allocation2 + $0x5]]
    %v1206 = vstv %s1205
    %vm1207 = vcmp.eq.s32.totalorder %v65, %v1206
    %vm1208 = vmand %vm80, %vm1207
    %v1209 = vsel %vm1208, 1.0, 0.0
    %v1210 = vadd.f32 %v1204, %v1209
    %v1211 = vld [vmem:[%s1] sm:$0xff]
    %v1212 = vld [vmem:[%s1 + $0x8] sm:$0xff]
    %v1213 = vld [vmem:[%s1 + $0x10] sm:$0xff]
    %v1214 = vld [vmem:[%s1 + $0x18] sm:$0xff]
    %v1215 = vld [vmem:[%s1 + $0x20] sm:$0xff]
    %v1216 = vld [vmem:[%s1 + $0x28] sm:$0xff]
    %v1217 = vld [vmem:[%s1 + $0x30] sm:$0xff]
    %v1218 = vld [vmem:[%s1 + $0x38] sm:$0xff]
    %v1219 = vld [vmem:[%s1 + $0x40] sm:$0xff]
    %v1220 = vld [vmem:[%s1 + $0x48] sm:$0xff]
    %v1221 = vld [vmem:[%s1 + $0x50] sm:$0xff]
    %v1222 = vld [vmem:[%s1 + $0x58] sm:$0xff]
    %v1223 = vld [vmem:[%s1 + $0x60] sm:$0xff]
    %v1224 = vld [vmem:[%s1 + $0x68] sm:$0xff]
    %v1225 = vld [vmem:[%s1 + $0x70] sm:$0xff]
    %v1226 = vld [vmem:[%s1 + $0x78] sm:$0xff]
    %1227 = vmatprep.subr.mxu0 0.0
    %1228 = vmatpush1.msra.mxu0 %v1211
    %1229 = vmatprep.subr.mxu0 0.0
    %1230 = vmatpush1.msra.mxu0 %v1212
    %1231 = vmatprep.subr.mxu0 0.0
    %1232 = vmatpush1.msra.mxu0 %v1213
    %1233 = vmatprep.subr.mxu0 0.0
    %1234 = vmatpush1.msra.mxu0 %v1214
    %1235 = vmatprep.subr.mxu0 0.0
    %1236 = vmatpush1.msra.mxu0 %v1215
    %1237 = vmatprep.subr.mxu0 0.0
    %1238 = vmatpush1.msra.mxu0 %v1216
    %1239 = vmatprep.subr.mxu0 0.0
    %1240 = vmatpush1.msra.mxu0 %v1217
    %1241 = vmatprep.subr.mxu0 0.0
    %1242 = vmatpush1.msra.mxu0 %v1218
    %1243 = vmatprep.subr.mxu0 0.0
    %1244 = vmatpush1.msra.mxu0 %v1219
    %1245 = vmatprep.subr.mxu0 0.0
    %1246 = vmatpush1.msra.mxu0 %v1220
    %1247 = vmatprep.subr.mxu0 0.0
    %1248 = vmatpush1.msra.mxu0 %v1221
    %1249 = vmatprep.subr.mxu0 0.0
    %1250 = vmatpush1.msra.mxu0 %v1222
    %1251 = vmatprep.subr.mxu0 0.0
    %1252 = vmatpush1.msra.mxu0 %v1223
    %1253 = vmatprep.subr.mxu0 0.0
    %1254 = vmatpush1.msra.mxu0 %v1224
    %1255 = vmatprep.subr.mxu0 0.0
    %1256 = vmatpush1.msra.mxu0 %v1225
    %1257 = vmatprep.subr.mxu0 0.0
    %1258 = vmatpush1.msra.mxu0 %v1226
    %1259 = vmatprep.subr.mxu0 0.0
    %1260 = vmatpush1.msra.mxu0 0.0
    %1261 = vmatprep.subr.mxu0 0.0
    %1262 = vmatpush1.msra.mxu0 0.0
    %1263 = vmatprep.subr.mxu0 0.0
    %1264 = vmatpush1.msra.mxu0 0.0
    %1265 = vmatprep.subr.mxu0 0.0
    %1266 = vmatpush1.msra.mxu0 0.0
    %1267 = vmatprep.subr.mxu0 0.0
    %1268 = vmatpush1.msra.mxu0 0.0
    %1269 = vmatprep.subr.mxu0 0.0
    %1270 = vmatpush1.msra.mxu0 0.0
    %1271 = vmatprep.subr.mxu0 0.0
    %1272 = vmatpush1.msra.mxu0 0.0
    %1273 = vmatprep.subr.mxu0 0.0
    %1274 = vmatpush1.msra.mxu0 0.0
    %1275 = vmatprep.subr.mxu0 0.0
    %1276 = vmatpush1.msra.mxu0 0.0
    %1277 = vmatprep.subr.mxu0 0.0
    %1278 = vmatpush1.msra.mxu0 0.0
    %1279 = vmatprep.subr.mxu0 0.0
    %1280 = vmatpush1.msra.mxu0 0.0
    %1281 = vmatprep.subr.mxu0 0.0
    %1282 = vmatpush1.msra.mxu0 0.0
    %1283 = vmatprep.subr.mxu0 0.0
    %1284 = vmatpush1.msra.mxu0 0.0
    %1285 = vmatprep.subr.mxu0 0.0
    %1286 = vmatpush1.msra.mxu0 0.0
    %1287 = vmatprep.subr.mxu0 0.0
    %1288 = vmatpush1.msra.mxu0 0.0
    %1289 = vmatprep.subr.mxu0 0.0
    %1290 = vmatpush1.msra.mxu0 0.0
    %1291 = vmatprep.mubr.f32.mxu0 0.0
    %1292 = vmatmul.mubr.f32.gmra.mrb[0].mxu0 %v1210
    %v1293 = vpop.f32.mrb[0].mxu0
    %v1294 = vadd.f32 0.0, %v1293
    %v1295 = vpop.f32.mrb[0].mxu0
    %1296 = vdwg.mxu0
    %v1297 = vld [vmem:[%s2] sm:$0xff]
    %v1298 = vld [vmem:[%s2 + $0x8] sm:$0xff]
    %v1299 = vld [vmem:[%s2 + $0x10] sm:$0xff]
    %v1300 = vld [vmem:[%s2 + $0x18] sm:$0xff]
    %v1301 = vld [vmem:[%s3] sm:$0xff]
    %v1302 = vld [vmem:[%s3 + $0x8] sm:$0xff]
    %v1303 = vld [vmem:[%s3 + $0x10] sm:$0xff]
    %v1304 = vld [vmem:[%s3 + $0x18] sm:$0xff]
    %1305 = vmatprep.subr.mxu0 0.0
    %1306 = vmatpush1.msra.mxu0 %v1301
    %1307 = vmatprep.subr.mxu0 0.0
    %1308 = vmatpush1.msra.mxu0 %v1302
    %1309 = vmatprep.subr.mxu0 0.0
    %1310 = vmatpush1.msra.mxu0 %v1303
    %1311 = vmatprep.subr.mxu0 0.0
    %1312 = vmatpush1.msra.mxu0 %v1304
    %1313 = vmatprep.subr.mxu0 0.0
    %1314 = vmatpush1.msra.mxu0 0.0
    %1315 = vmatprep.subr.mxu0 0.0
    %1316 = vmatpush1.msra.mxu0 0.0
    %1317 = vmatprep.subr.mxu0 0.0
    %1318 = vmatpush1.msra.mxu0 0.0
    %1319 = vmatprep.subr.mxu0 0.0
    %1320 = vmatpush1.msra.mxu0 0.0
    %1321 = vmatprep.subr.mxu0 0.0
    %1322 = vmatpush1.msra.mxu0 0.0
    %1323 = vmatprep.subr.mxu0 0.0
    %1324 = vmatpush1.msra.mxu0 0.0
    %1325 = vmatprep.subr.mxu0 0.0
    %1326 = vmatpush1.msra.mxu0 0.0
    %1327 = vmatprep.subr.mxu0 0.0
    %1328 = vmatpush1.msra.mxu0 0.0
    %1329 = vmatprep.subr.mxu0 0.0
    %1330 = vmatpush1.msra.mxu0 0.0
    %1331 = vmatprep.subr.mxu0 0.0
    %1332 = vmatpush1.msra.mxu0 0.0
    %1333 = vmatprep.subr.mxu0 0.0
    %1334 = vmatpush1.msra.mxu0 0.0
    %1335 = vmatprep.subr.mxu0 0.0
    %1336 = vmatpush1.msra.mxu0 0.0
    %1337 = vmatprep.subr.mxu0 0.0
    %1338 = vmatpush1.msra.mxu0 0.0
    %1339 = vmatprep.subr.mxu0 0.0
    %1340 = vmatpush1.msra.mxu0 0.0
    %1341 = vmatprep.subr.mxu0 0.0
    %1342 = vmatpush1.msra.mxu0 0.0
    %1343 = vmatprep.subr.mxu0 0.0
    %1344 = vmatpush1.msra.mxu0 0.0
    %1345 = vmatprep.subr.mxu0 0.0
    %1346 = vmatpush1.msra.mxu0 0.0
    %1347 = vmatprep.subr.mxu0 0.0
    %1348 = vmatpush1.msra.mxu0 0.0
    %1349 = vmatprep.subr.mxu0 0.0
    %1350 = vmatpush1.msra.mxu0 0.0
    %1351 = vmatprep.subr.mxu0 0.0
    %1352 = vmatpush1.msra.mxu0 0.0
    %1353 = vmatprep.subr.mxu0 0.0
    %1354 = vmatpush1.msra.mxu0 0.0
    %1355 = vmatprep.subr.mxu0 0.0
    %1356 = vmatpush1.msra.mxu0 0.0
    %1357 = vmatprep.subr.mxu0 0.0
    %1358 = vmatpush1.msra.mxu0 0.0
    %1359 = vmatprep.subr.mxu0 0.0
    %1360 = vmatpush1.msra.mxu0 0.0
    %1361 = vmatprep.subr.mxu0 0.0
    %1362 = vmatpush1.msra.mxu0 0.0
    %1363 = vmatprep.subr.mxu0 0.0
    %1364 = vmatpush1.msra.mxu0 0.0
    %1365 = vmatprep.subr.mxu0 0.0
    %1366 = vmatpush1.msra.mxu0 0.0
    %1367 = vmatprep.subr.mxu0 0.0
    %1368 = vmatpush1.msra.mxu0 0.0
    %1369 = vmatprep.mubr.f32.mxu0 0.0
    %1370 = vmatmul.mubr.f32.gmra.mrb[0].mxu0 %v1007
    %v1371 = vpop.f32.mrb[0].mxu0
    %v1372 = vadd.f32 0.0, %v1371
    %v1373 = vpop.f32.mrb[0].mxu0
    %1374 = vdwg.mxu0
    %v1376 = vsel %vm180, %v1294, 0
    %1378 = vmatprep.subr.mxu0 0.0
    %1379 = vmatpush1.msra.mxu0 %v1297
    %1380 = vmatprep.subr.mxu0 0.0
    %1381 = vmatpush1.msra.mxu0 %v1298
    %1382 = vmatprep.subr.mxu0 0.0
    %1383 = vmatpush1.msra.mxu0 %v1299
    %1384 = vmatprep.subr.mxu0 0.0
    %1385 = vmatpush1.msra.mxu0 %v1300
    %1386 = vmatprep.subr.mxu0 0.0
    %1387 = vmatpush1.msra.mxu0 0.0
    %1388 = vmatprep.subr.mxu0 0.0
    %1389 = vmatpush1.msra.mxu0 0.0
    %1390 = vmatprep.subr.mxu0 0.0
    %1391 = vmatpush1.msra.mxu0 0.0
    %1392 = vmatprep.subr.mxu0 0.0
    %1393 = vmatpush1.msra.mxu0 0.0
    %1394 = vmatprep.subr.mxu0 0.0
    %1395 = vmatpush1.msra.mxu0 0.0
    %1396 = vmatprep.subr.mxu0 0.0
    %1397 = vmatpush1.msra.mxu0 0.0
    %1398 = vmatprep.subr.mxu0 0.0
    %1399 = vmatpush1.msra.mxu0 0.0
    %1400 = vmatprep.subr.mxu0 0.0
    %1401 = vmatpush1.msra.mxu0 0.0
    %1402 = vmatprep.subr.mxu0 0.0
    %1403 = vmatpush1.msra.mxu0 0.0
    %1404 = vmatprep.subr.mxu0 0.0
    %1405 = vmatpush1.msra.mxu0 0.0
    %1406 = vmatprep.subr.mxu0 0.0
    %1407 = vmatpush1.msra.mxu0 0.0
    %1408 = vmatprep.subr.mxu0 0.0
    %1409 = vmatpush1.msra.mxu0 0.0
    %1410 = vmatprep.subr.mxu0 0.0
    %1411 = vmatpush1.msra.mxu0 0.0
    %1412 = vmatprep.subr.mxu0 0.0
    %1413 = vmatpush1.msra.mxu0 0.0
    %1414 = vmatprep.subr.mxu0 0.0
    %1415 = vmatpush1.msra.mxu0 0.0
    %1416 = vmatprep.subr.mxu0 0.0
    %1417 = vmatpush1.msra.mxu0 0.0
    %1418 = vmatprep.subr.mxu0 0.0
    %1419 = vmatpush1.msra.mxu0 0.0
    %1420 = vmatprep.subr.mxu0 0.0
    %1421 = vmatpush1.msra.mxu0 0.0
    %1422 = vmatprep.subr.mxu0 0.0
    %1423 = vmatpush1.msra.mxu0 0.0
    %1424 = vmatprep.subr.mxu0 0.0
    %1425 = vmatpush1.msra.mxu0 0.0
    %1426 = vmatprep.subr.mxu0 0.0
    %1427 = vmatpush1.msra.mxu0 0.0
    %1428 = vmatprep.subr.mxu0 0.0
    %1429 = vmatpush1.msra.mxu0 0.0
    %1430 = vmatprep.subr.mxu0 0.0
    %1431 = vmatpush1.msra.mxu0 0.0
    %1432 = vmatprep.subr.mxu0 0.0
    %1433 = vmatpush1.msra.mxu0 0.0
    %1434 = vmatprep.subr.mxu0 0.0
    %1435 = vmatpush1.msra.mxu0 0.0
    %1436 = vmatprep.subr.mxu0 0.0
    %1437 = vmatpush1.msra.mxu0 0.0
    %1438 = vmatprep.subr.mxu0 0.0
    %1439 = vmatpush1.msra.mxu0 0.0
    %1440 = vmatprep.subr.mxu0 0.0
    %1441 = vmatpush1.msra.mxu0 0.0
    %1442 = vmatprep.mubr.f32.mxu0 0.0
    %1443 = vmatmul.mubr.f32.gmra.mrb[0].mxu0 %v1376
    %v1444 = vpop.f32.mrb[0].mxu0
    %v1445 = vadd.f32 %v1372, %v1444
    %v1446 = vpop.f32.mrb[0].mxu0
    %1447 = vdwg.mxu0
    %v1448 = vld [vmem:[%s4] sm:$0x1]
    %v1450 = vlaneseq
    %v1451 = vshrl.u32 %v1450, 7
    %v1452 = vsub.s32 0, %v1451
    %v1453 = vrot.slane %v1448, %v1452
    %v1455 = vadd.f32 %v1445, %v1453
    %v1456 = vxor.u32 %v1455, 2147483648
    %v1457 = vmul.f32 %v1456, 1.442695
    %v1458 = vpow.pop %v1457
    %v1459 = vadd.f32 %v1458, 1.0
    %v1460 = vrcp.pop %v1459
    %v1461 = vmul.f32 1.0, %v1460
    %v1462 = vtanh.pop %v1455
    %v1463 = vmul.f32 %v1461, %v919
    %1465 = vrot.lane.b32.xlu0 %v1462, 64
    %v1466 = vpop.permute.xlu0 %1465
    %v1468 = vmul.f32 %v1461, %v1466
    %1470 = vrot.lane.b32.xlu0 %v1468, 32
    %v1471 = vpop.permute.xlu0 %1470
    %v1473 = vadd.f32 %v1463, %v1471
    %v1474 = vtanh.pop %v1473
    %1476 = vrot.lane.b32.xlu0 %v1474, 64
    %v1477 = vpop.permute.xlu0 %1476
    %v1479 = vmul.f32 %v1461, %v1477
    %v1480 = vld [vmem:[%s363] sm:$0xff]
    %v1481 = vld [vmem:[%s363 + $0x8] sm:$0xff]
    %v1482 = vld [vmem:[%s363 + $0x10] sm:$0xff]
    %v1483 = vld [vmem:[%s363 + $0x18] sm:$0xff]
    %v1484 = vld [vmem:[%s368] sm:$0xff]
    %v1485 = vld [vmem:[%s368 + $0x8] sm:$0xff]
    %v1486 = vld [vmem:[%s368 + $0x10] sm:$0xff]
    %v1487 = vld [vmem:[%s368 + $0x18] sm:$0xff]
    %1488 = vmatprep.subr.mxu0 0.0
    %1489 = vmatpush1.msra.mxu0 %v1484
    %1490 = vmatprep.subr.mxu0 0.0
    %1491 = vmatpush1.msra.mxu0 %v1485
    %1492 = vmatprep.subr.mxu0 0.0
    %1493 = vmatpush1.msra.mxu0 %v1486
    %1494 = vmatprep.subr.mxu0 0.0
    %1495 = vmatpush1.msra.mxu0 %v1487
    %1496 = vmatprep.subr.mxu0 0.0
    %1497 = vmatpush1.msra.mxu0 0.0
    %1498 = vmatprep.subr.mxu0 0.0
    %1499 = vmatpush1.msra.mxu0 0.0
    %1500 = vmatprep.subr.mxu0 0.0
    %1501 = vmatpush1.msra.mxu0 0.0
    %1502 = vmatprep.subr.mxu0 0.0
    %1503 = vmatpush1.msra.mxu0 0.0
    %1504 = vmatprep.subr.mxu0 0.0
    %1505 = vmatpush1.msra.mxu0 0.0
    %1506 = vmatprep.subr.mxu0 0.0
    %1507 = vmatpush1.msra.mxu0 0.0
    %1508 = vmatprep.subr.mxu0 0.0
    %1509 = vmatpush1.msra.mxu0 0.0
    %1510 = vmatprep.subr.mxu0 0.0
    %1511 = vmatpush1.msra.mxu0 0.0
    %1512 = vmatprep.subr.mxu0 0.0
    %1513 = vmatpush1.msra.mxu0 0.0
    %1514 = vmatprep.subr.mxu0 0.0
    %1515 = vmatpush1.msra.mxu0 0.0
    %1516 = vmatprep.subr.mxu0 0.0
    %1517 = vmatpush1.msra.mxu0 0.0
    %1518 = vmatprep.subr.mxu0 0.0
    %1519 = vmatpush1.msra.mxu0 0.0
    %1520 = vmatprep.subr.mxu0 0.0
    %1521 = vmatpush1.msra.mxu0 0.0
    %1522 = vmatprep.subr.mxu0 0.0
    %1523 = vmatpush1.msra.mxu0 0.0
    %1524 = vmatprep.subr.mxu0 0.0
    %1525 = vmatpush1.msra.mxu0 0.0
    %1526 = vmatprep.subr.mxu0 0.0
    %1527 = vmatpush1.msra.mxu0 0.0
    %1528 = vmatprep.subr.mxu0 0.0
    %1529 = vmatpush1.msra.mxu0 0.0
    %1530 = vmatprep.subr.mxu0 0.0
    %1531 = vmatpush1.msra.mxu0 0.0
    %1532 = vmatprep.subr.mxu0 0.0
    %1533 = vmatpush1.msra.mxu0 0.0
    %1534 = vmatprep.subr.mxu0 0.0
    %1535 = vmatpush1.msra.mxu0 0.0
    %1536 = vmatprep.subr.mxu0 0.0
    %1537 = vmatpush1.msra.mxu0 0.0
    %1538 = vmatprep.subr.mxu0 0.0
    %1539 = vmatpush1.msra.mxu0 0.0
    %1540 = vmatprep.subr.mxu0 0.0
    %1541 = vmatpush1.msra.mxu0 0.0
    %1542 = vmatprep.subr.mxu0 0.0
    %1543 = vmatpush1.msra.mxu0 0.0
    %1544 = vmatprep.subr.mxu0 0.0
    %1545 = vmatpush1.msra.mxu0 0.0
    %1546 = vmatprep.subr.mxu0 0.0
    %1547 = vmatpush1.msra.mxu0 0.0
    %1548 = vmatprep.subr.mxu0 0.0
    %1549 = vmatpush1.msra.mxu0 0.0
    %1550 = vmatprep.subr.mxu0 0.0
    %1551 = vmatpush1.msra.mxu0 0.0
    %1552 = vmatprep.mubr.f32.mxu0 0.0
    %1553 = vmatmul.mubr.f32.gmra.mrb[0].mxu0 %v1125
    %v1554 = vpop.f32.mrb[0].mxu0
    %v1555 = vadd.f32 0.0, %v1554
    %v1556 = vpop.f32.mrb[0].mxu0
    %1557 = vdwg.mxu0
    %1559 = vrot.lane.b32.xlu0 %v1479, 32
    %v1560 = vpop.permute.xlu0 %1559
    %v1561 = vsel %vm180, %v1560, 0
    %1563 = vmatprep.subr.mxu0 0.0
    %1564 = vmatpush1.msra.mxu0 %v1480
    %1565 = vmatprep.subr.mxu0 0.0
    %1566 = vmatpush1.msra.mxu0 %v1481
    %1567 = vmatprep.subr.mxu0 0.0
    %1568 = vmatpush1.msra.mxu0 %v1482
    %1569 = vmatprep.subr.mxu0 0.0
    %1570 = vmatpush1.msra.mxu0 %v1483
    %1571 = vmatprep.subr.mxu0 0.0
    %1572 = vmatpush1.msra.mxu0 0.0
    %1573 = vmatprep.subr.mxu0 0.0
    %1574 = vmatpush1.msra.mxu0 0.0
    %1575 = vmatprep.subr.mxu0 0.0
    %1576 = vmatpush1.msra.mxu0 0.0
    %1577 = vmatprep.subr.mxu0 0.0
    %1578 = vmatpush1.msra.mxu0 0.0
    %1579 = vmatprep.subr.mxu0 0.0
    %1580 = vmatpush1.msra.mxu0 0.0
    %1581 = vmatprep.subr.mxu0 0.0
    %1582 = vmatpush1.msra.mxu0 0.0
    %1583 = vmatprep.subr.mxu0 0.0
    %1584 = vmatpush1.msra.mxu0 0.0
    %1585 = vmatprep.subr.mxu0 0.0
    %1586 = vmatpush1.msra.mxu0 0.0
    %1587 = vmatprep.subr.mxu0 0.0
    %1588 = vmatpush1.msra.mxu0 0.0
    %1589 = vmatprep.subr.mxu0 0.0
    %1590 = vmatpush1.msra.mxu0 0.0
    %1591 = vmatprep.subr.mxu0 0.0
    %1592 = vmatpush1.msra.mxu0 0.0
    %1593 = vmatprep.subr.mxu0 0.0
    %1594 = vmatpush1.msra.mxu0 0.0
    %1595 = vmatprep.subr.mxu0 0.0
    %1596 = vmatpush1.msra.mxu0 0.0
    %1597 = vmatprep.subr.mxu0 0.0
    %1598 = vmatpush1.msra.mxu0 0.0
    %1599 = vmatprep.subr.mxu0 0.0
    %1600 = vmatpush1.msra.mxu0 0.0
    %1601 = vmatprep.subr.mxu0 0.0
    %1602 = vmatpush1.msra.mxu0 0.0
    %1603 = vmatprep.subr.mxu0 0.0
    %1604 = vmatpush1.msra.mxu0 0.0
    %1605 = vmatprep.subr.mxu0 0.0
    %1606 = vmatpush1.msra.mxu0 0.0
    %1607 = vmatprep.subr.mxu0 0.0
    %1608 = vmatpush1.msra.mxu0 0.0
    %1609 = vmatprep.subr.mxu0 0.0
    %1610 = vmatpush1.msra.mxu0 0.0
    %1611 = vmatprep.subr.mxu0 0.0
    %1612 = vmatpush1.msra.mxu0 0.0
    %1613 = vmatprep.subr.mxu0 0.0
    %1614 = vmatpush1.msra.mxu0 0.0
    %1615 = vmatprep.subr.mxu0 0.0
    %1616 = vmatpush1.msra.mxu0 0.0
    %1617 = vmatprep.subr.mxu0 0.0
    %1618 = vmatpush1.msra.mxu0 0.0
    %1619 = vmatprep.subr.mxu0 0.0
    %1620 = vmatpush1.msra.mxu0 0.0
    %1621 = vmatprep.subr.mxu0 0.0
    %1622 = vmatpush1.msra.mxu0 0.0
    %1623 = vmatprep.subr.mxu0 0.0
    %1624 = vmatpush1.msra.mxu0 0.0
    %1625 = vmatprep.subr.mxu0 0.0
    %1626 = vmatpush1.msra.mxu0 0.0
    %1627 = vmatprep.mubr.f32.mxu0 0.0
    %1628 = vmatmul.mubr.f32.gmra.mrb[0].mxu0 %v1561
    %v1629 = vpop.f32.mrb[0].mxu0
    %v1630 = vadd.f32 %v1555, %v1629
    %v1631 = vpop.f32.mrb[0].mxu0
    %1632 = vdwg.mxu0
    %v1633 = vld [vmem:[%s521] sm:$0x1]
    %v1635 = vlaneseq
    %v1636 = vshrl.u32 %v1635, 7
    %v1637 = vsub.s32 0, %v1636
    %v1638 = vrot.slane %v1633, %v1637
    %v1640 = vadd.f32 %v1630, %v1638
    %v1641 = vxor.u32 %v1640, 2147483648
    %v1642 = vmul.f32 %v1641, 1.442695
    %v1643 = vpow.pop %v1642
    %v1644 = vadd.f32 %v1643, 1.0
    %v1645 = vrcp.pop %v1644
    %v1646 = vmul.f32 1.0, %v1645
    %v1647 = vtanh.pop %v1640
    %v1648 = vmul.f32 %v1646, %v1104
    %1650 = vrot.lane.b32.xlu0 %v1647, 64
    %v1651 = vpop.permute.xlu0 %1650
    %v1653 = vmul.f32 %v1646, %v1651
    %1655 = vrot.lane.b32.xlu0 %v1653, 32
    %v1656 = vpop.permute.xlu0 %1655
    %v1658 = vadd.f32 %v1648, %v1656
    %v1659 = vtanh.pop %v1658
    %1661 = vrot.lane.b32.xlu0 %v1659, 64
    %v1662 = vpop.permute.xlu0 %1661
    %v1664 = vmul.f32 %v1646, %v1662
    %v1665 = vld [vmem:[%s5] sm:$0xff]
    %v1666 = vld [vmem:[%s5 + $0x8] sm:$0xff]
    %v1667 = vld [vmem:[%s5 + $0x10] sm:$0xff]
    %v1668 = vld [vmem:[%s5 + $0x18] sm:$0xff]
    %v1669 = vld [vmem:[%s6] sm:$0x1]
    %v1671 = vlaneseq
    %v1672 = vshrl.u32 %v1671, 7
    %v1673 = vsub.s32 0, %v1672
    %v1674 = vrot.slane %v1669, %v1673
    %1677 = vrot.lane.b32.xlu0 %v1664, 32
    %v1678 = vpop.permute.xlu0 %1677
    %v1679 = vsel %vm180, %v1678, 0
    %1681 = vmatprep.subr.mxu0 0.0
    %1682 = vmatpush1.msra.mxu0 %v1665
    %1683 = vmatprep.subr.mxu0 0.0
    %1684 = vmatpush1.msra.mxu0 %v1666
    %1685 = vmatprep.subr.mxu0 0.0
    %1686 = vmatpush1.msra.mxu0 %v1667
    %1687 = vmatprep.subr.mxu0 0.0
    %1688 = vmatpush1.msra.mxu0 %v1668
    %1689 = vmatprep.subr.mxu0 0.0
    %1690 = vmatpush1.msra.mxu0 0.0
    %1691 = vmatprep.subr.mxu0 0.0
    %1692 = vmatpush1.msra.mxu0 0.0
    %1693 = vmatprep.subr.mxu0 0.0
    %1694 = vmatpush1.msra.mxu0 0.0
    %1695 = vmatprep.subr.mxu0 0.0
    %1696 = vmatpush1.msra.mxu0 0.0
    %1697 = vmatprep.subr.mxu0 0.0
    %1698 = vmatpush1.msra.mxu0 0.0
    %1699 = vmatprep.subr.mxu0 0.0
    %1700 = vmatpush1.msra.mxu0 0.0
    %1701 = vmatprep.subr.mxu0 0.0
    %1702 = vmatpush1.msra.mxu0 0.0
    %1703 = vmatprep.subr.mxu0 0.0
    %1704 = vmatpush1.msra.mxu0 0.0
    %1705 = vmatprep.subr.mxu0 0.0
    %1706 = vmatpush1.msra.mxu0 0.0
    %1707 = vmatprep.subr.mxu0 0.0
    %1708 = vmatpush1.msra.mxu0 0.0
    %1709 = vmatprep.subr.mxu0 0.0
    %1710 = vmatpush1.msra.mxu0 0.0
    %1711 = vmatprep.subr.mxu0 0.0
    %1712 = vmatpush1.msra.mxu0 0.0
    %1713 = vmatprep.subr.mxu0 0.0
    %1714 = vmatpush1.msra.mxu0 0.0
    %1715 = vmatprep.subr.mxu0 0.0
    %1716 = vmatpush1.msra.mxu0 0.0
    %1717 = vmatprep.subr.mxu0 0.0
    %1718 = vmatpush1.msra.mxu0 0.0
    %1719 = vmatprep.subr.mxu0 0.0
    %1720 = vmatpush1.msra.mxu0 0.0
    %1721 = vmatprep.subr.mxu0 0.0
    %1722 = vmatpush1.msra.mxu0 0.0
    %1723 = vmatprep.subr.mxu0 0.0
    %1724 = vmatpush1.msra.mxu0 0.0
    %1725 = vmatprep.subr.mxu0 0.0
    %1726 = vmatpush1.msra.mxu0 0.0
    %1727 = vmatprep.subr.mxu0 0.0
    %1728 = vmatpush1.msra.mxu0 0.0
    %1729 = vmatprep.subr.mxu0 0.0
    %1730 = vmatpush1.msra.mxu0 0.0
    %1731 = vmatprep.subr.mxu0 0.0
    %1732 = vmatpush1.msra.mxu0 0.0
    %1733 = vmatprep.subr.mxu0 0.0
    %1734 = vmatpush1.msra.mxu0 0.0
    %1735 = vmatprep.subr.mxu0 0.0
    %1736 = vmatpush1.msra.mxu0 0.0
    %1737 = vmatprep.subr.mxu0 0.0
    %1738 = vmatpush1.msra.mxu0 0.0
    %1739 = vmatprep.subr.mxu0 0.0
    %1740 = vmatpush1.msra.mxu0 0.0
    %1741 = vmatprep.subr.mxu0 0.0
    %1742 = vmatpush1.msra.mxu0 0.0
    %1743 = vmatprep.subr.mxu0 0.0
    %1744 = vmatpush1.msra.mxu0 0.0
    %1745 = vmatprep.mubr.f32.mxu0 0.0
    %1746 = vmatmul.mubr.f32.gmra.mrb[0].mxu0 %v1679
    %v1747 = vpop.f32.mrb[0].mxu0
    %v1748 = vadd.f32 %v1674, %v1747
    %v1749 = vpop.f32.mrb[0].mxu0
    %1750 = vdwg.mxu0
    %s1751 = scalar_lea.vmem [#allocation7], 16
    %1752 = vst [vmem:[%s1751] sm:$0xff] %v1748
    %s1753 = sld [smem:[#allocation2 + $0x6]]
    %v1754 = vstv %s1753
    %vm1755 = vcmp.eq.s32.totalorder %v65, %v1754
    %vm1756 = vmand %vm73, %vm1755
    %v1757 = vsel %vm1756, 1.0, 0.0
    %v1758 = vadd.f32 %v1757, 0.0
    %s1759 = sld [smem:[#allocation2 + $0x7]]
    %v1760 = vstv %s1759
    %vm1761 = vcmp.eq.s32.totalorder %v65, %v1760
    %vm1762 = vmand %vm80, %vm1761
    %v1763 = vsel %vm1762, 1.0, 0.0
    %v1764 = vadd.f32 %v1758, %v1763
    %v1765 = vld [vmem:[%s1] sm:$0xff]
    %v1766 = vld [vmem:[%s1 + $0x8] sm:$0xff]
    %v1767 = vld [vmem:[%s1 + $0x10] sm:$0xff]
    %v1768 = vld [vmem:[%s1 + $0x18] sm:$0xff]
    %v1769 = vld [vmem:[%s1 + $0x20] sm:$0xff]
    %v1770 = vld [vmem:[%s1 + $0x28] sm:$0xff]
    %v1771 = vld [vmem:[%s1 + $0x30] sm:$0xff]
    %v1772 = vld [vmem:[%s1 + $0x38] sm:$0xff]
    %v1773 = vld [vmem:[%s1 + $0x40] sm:$0xff]
    %v1774 = vld [vmem:[%s1 + $0x48] sm:$0xff]
    %v1775 = vld [vmem:[%s1 + $0x50] sm:$0xff]
    %v1776 = vld [vmem:[%s1 + $0x58] sm:$0xff]
    %v1777 = vld [vmem:[%s1 + $0x60] sm:$0xff]
    %v1778 = vld [vmem:[%s1 + $0x68] sm:$0xff]
    %v1779 = vld [vmem:[%s1 + $0x70] sm:$0xff]
    %v1780 = vld [vmem:[%s1 + $0x78] sm:$0xff]
    %1781 = vmatprep.subr.mxu0 0.0
    %1782 = vmatpush1.msra.mxu0 %v1765
    %1783 = vmatprep.subr.mxu0 0.0
    %1784 = vmatpush1.msra.mxu0 %v1766
    %1785 = vmatprep.subr.mxu0 0.0
    %1786 = vmatpush1.msra.mxu0 %v1767
    %1787 = vmatprep.subr.mxu0 0.0
    %1788 = vmatpush1.msra.mxu0 %v1768
    %1789 = vmatprep.subr.mxu0 0.0
    %1790 = vmatpush1.msra.mxu0 %v1769
    %1791 = vmatprep.subr.mxu0 0.0
    %1792 = vmatpush1.msra.mxu0 %v1770
    %1793 = vmatprep.subr.mxu0 0.0
    %1794 = vmatpush1.msra.mxu0 %v1771
    %1795 = vmatprep.subr.mxu0 0.0
    %1796 = vmatpush1.msra.mxu0 %v1772
    %1797 = vmatprep.subr.mxu0 0.0
    %1798 = vmatpush1.msra.mxu0 %v1773
    %1799 = vmatprep.subr.mxu0 0.0
    %1800 = vmatpush1.msra.mxu0 %v1774
    %1801 = vmatprep.subr.mxu0 0.0
    %1802 = vmatpush1.msra.mxu0 %v1775
    %1803 = vmatprep.subr.mxu0 0.0
    %1804 = vmatpush1.msra.mxu0 %v1776
    %1805 = vmatprep.subr.mxu0 0.0
    %1806 = vmatpush1.msra.mxu0 %v1777
    %1807 = vmatprep.subr.mxu0 0.0
    %1808 = vmatpush1.msra.mxu0 %v1778
    %1809 = vmatprep.subr.mxu0 0.0
    %1810 = vmatpush1.msra.mxu0 %v1779
    %1811 = vmatprep.subr.mxu0 0.0
    %1812 = vmatpush1.msra.mxu0 %v1780
    %1813 = vmatprep.subr.mxu0 0.0
    %1814 = vmatpush1.msra.mxu0 0.0
    %1815 = vmatprep.subr.mxu0 0.0
    %1816 = vmatpush1.msra.mxu0 0.0
    %1817 = vmatprep.subr.mxu0 0.0
    %1818 = vmatpush1.msra.mxu0 0.0
    %1819 = vmatprep.subr.mxu0 0.0
    %1820 = vmatpush1.msra.mxu0 0.0
    %1821 = vmatprep.subr.mxu0 0.0
    %1822 = vmatpush1.msra.mxu0 0.0
    %1823 = vmatprep.subr.mxu0 0.0
    %1824 = vmatpush1.msra.mxu0 0.0
    %1825 = vmatprep.subr.mxu0 0.0
    %1826 = vmatpush1.msra.mxu0 0.0
    %1827 = vmatprep.subr.mxu0 0.0
    %1828 = vmatpush1.msra.mxu0 0.0
    %1829 = vmatprep.subr.mxu0 0.0
    %1830 = vmatpush1.msra.mxu0 0.0
    %1831 = vmatprep.subr.mxu0 0.0
    %1832 = vmatpush1.msra.mxu0 0.0
    %1833 = vmatprep.subr.mxu0 0.0
    %1834 = vmatpush1.msra.mxu0 0.0
    %1835 = vmatprep.subr.mxu0 0.0
    %1836 = vmatpush1.msra.mxu0 0.0
    %1837 = vmatprep.subr.mxu0 0.0
    %1838 = vmatpush1.msra.mxu0 0.0
    %1839 = vmatprep.subr.mxu0 0.0
    %1840 = vmatpush1.msra.mxu0 0.0
    %1841 = vmatprep.subr.mxu0 0.0
    %1842 = vmatpush1.msra.mxu0 0.0
    %1843 = vmatprep.subr.mxu0 0.0
    %1844 = vmatpush1.msra.mxu0 0.0
    %1845 = vmatprep.mubr.f32.mxu0 0.0
    %1846 = vmatmul.mubr.f32.gmra.mrb[0].mxu0 %v1764
    %v1847 = vpop.f32.mrb[0].mxu0
    %v1848 = vadd.f32 0.0, %v1847
    %v1849 = vpop.f32.mrb[0].mxu0
    %1850 = vdwg.mxu0
    %v1851 = vld [vmem:[%s2] sm:$0xff]
    %v1852 = vld [vmem:[%s2 + $0x8] sm:$0xff]
    %v1853 = vld [vmem:[%s2 + $0x10] sm:$0xff]
    %v1854 = vld [vmem:[%s2 + $0x18] sm:$0xff]
    %v1855 = vld [vmem:[%s3] sm:$0xff]
    %v1856 = vld [vmem:[%s3 + $0x8] sm:$0xff]
    %v1857 = vld [vmem:[%s3 + $0x10] sm:$0xff]
    %v1858 = vld [vmem:[%s3 + $0x18] sm:$0xff]
    %1859 = vmatprep.subr.mxu0 0.0
    %1860 = vmatpush1.msra.mxu0 %v1855
    %1861 = vmatprep.subr.mxu0 0.0
    %1862 = vmatpush1.msra.mxu0 %v1856
    %1863 = vmatprep.subr.mxu0 0.0
    %1864 = vmatpush1.msra.mxu0 %v1857
    %1865 = vmatprep.subr.mxu0 0.0
    %1866 = vmatpush1.msra.mxu0 %v1858
    %1867 = vmatprep.subr.mxu0 0.0
    %1868 = vmatpush1.msra.mxu0 0.0
    %1869 = vmatprep.subr.mxu0 0.0
    %1870 = vmatpush1.msra.mxu0 0.0
    %1871 = vmatprep.subr.mxu0 0.0
    %1872 = vmatpush1.msra.mxu0 0.0
    %1873 = vmatprep.subr.mxu0 0.0
    %1874 = vmatpush1.msra.mxu0 0.0
    %1875 = vmatprep.subr.mxu0 0.0
    %1876 = vmatpush1.msra.mxu0 0.0
    %1877 = vmatprep.subr.mxu0 0.0
    %1878 = vmatpush1.msra.mxu0 0.0
    %1879 = vmatprep.subr.mxu0 0.0
    %1880 = vmatpush1.msra.mxu0 0.0
    %1881 = vmatprep.subr.mxu0 0.0
    %1882 = vmatpush1.msra.mxu0 0.0
    %1883 = vmatprep.subr.mxu0 0.0
    %1884 = vmatpush1.msra.mxu0 0.0
    %1885 = vmatprep.subr.mxu0 0.0
    %1886 = vmatpush1.msra.mxu0 0.0
    %1887 = vmatprep.subr.mxu0 0.0
    %1888 = vmatpush1.msra.mxu0 0.0
    %1889 = vmatprep.subr.mxu0 0.0
    %1890 = vmatpush1.msra.mxu0 0.0
    %1891 = vmatprep.subr.mxu0 0.0
    %1892 = vmatpush1.msra.mxu0 0.0
    %1893 = vmatprep.subr.mxu0 0.0
    %1894 = vmatpush1.msra.mxu0 0.0
    %1895 = vmatprep.subr.mxu0 0.0
    %1896 = vmatpush1.msra.mxu0 0.0
    %1897 = vmatprep.subr.mxu0 0.0
    %1898 = vmatpush1.msra.mxu0 0.0
    %1899 = vmatprep.subr.mxu0 0.0
    %1900 = vmatpush1.msra.mxu0 0.0
    %1901 = vmatprep.subr.mxu0 0.0
    %1902 = vmatpush1.msra.mxu0 0.0
    %1903 = vmatprep.subr.mxu0 0.0
    %1904 = vmatpush1.msra.mxu0 0.0
    %1905 = vmatprep.subr.mxu0 0.0
    %1906 = vmatpush1.msra.mxu0 0.0
    %1907 = vmatprep.subr.mxu0 0.0
    %1908 = vmatpush1.msra.mxu0 0.0
    %1909 = vmatprep.subr.mxu0 0.0
    %1910 = vmatpush1.msra.mxu0 0.0
    %1911 = vmatprep.subr.mxu0 0.0
    %1912 = vmatpush1.msra.mxu0 0.0
    %1913 = vmatprep.subr.mxu0 0.0
    %1914 = vmatpush1.msra.mxu0 0.0
    %1915 = vmatprep.subr.mxu0 0.0
    %1916 = vmatpush1.msra.mxu0 0.0
    %1917 = vmatprep.subr.mxu0 0.0
    %1918 = vmatpush1.msra.mxu0 0.0
    %1919 = vmatprep.subr.mxu0 0.0
    %1920 = vmatpush1.msra.mxu0 0.0
    %1921 = vmatprep.subr.mxu0 0.0
    %1922 = vmatpush1.msra.mxu0 0.0
    %1923 = vmatprep.mubr.f32.mxu0 0.0
    %1924 = vmatmul.mubr.f32.gmra.mrb[0].mxu0 %v1561
    %v1925 = vpop.f32.mrb[0].mxu0
    %v1926 = vadd.f32 0.0, %v1925
    %v1927 = vpop.f32.mrb[0].mxu0
    %1928 = vdwg.mxu0
    %v1930 = vsel %vm180, %v1848, 0
    %1932 = vmatprep.subr.mxu0 0.0
    %1933 = vmatpush1.msra.mxu0 %v1851
    %1934 = vmatprep.subr.mxu0 0.0
    %1935 = vmatpush1.msra.mxu0 %v1852
    %1936 = vmatprep.subr.mxu0 0.0
    %1937 = vmatpush1.msra.mxu0 %v1853
    %1938 = vmatprep.subr.mxu0 0.0
    %1939 = vmatpush1.msra.mxu0 %v1854
    %1940 = vmatprep.subr.mxu0 0.0
    %1941 = vmatpush1.msra.mxu0 0.0
    %1942 = vmatprep.subr.mxu0 0.0
    %1943 = vmatpush1.msra.mxu0 0.0
    %1944 = vmatprep.subr.mxu0 0.0
    %1945 = vmatpush1.msra.mxu0 0.0
    %1946 = vmatprep.subr.mxu0 0.0
    %1947 = vmatpush1.msra.mxu0 0.0
    %1948 = vmatprep.subr.mxu0 0.0
    %1949 = vmatpush1.msra.mxu0 0.0
    %1950 = vmatprep.subr.mxu0 0.0
    %1951 = vmatpush1.msra.mxu0 0.0
    %1952 = vmatprep.subr.mxu0 0.0
    %1953 = vmatpush1.msra.mxu0 0.0
    %1954 = vmatprep.subr.mxu0 0.0
    %1955 = vmatpush1.msra.mxu0 0.0
    %1956 = vmatprep.subr.mxu0 0.0
    %1957 = vmatpush1.msra.mxu0 0.0
    %1958 = vmatprep.subr.mxu0 0.0
    %1959 = vmatpush1.msra.mxu0 0.0
    %1960 = vmatprep.subr.mxu0 0.0
    %1961 = vmatpush1.msra.mxu0 0.0
    %1962 = vmatprep.subr.mxu0 0.0
    %1963 = vmatpush1.msra.mxu0 0.0
    %1964 = vmatprep.subr.mxu0 0.0
    %1965 = vmatpush1.msra.mxu0 0.0
    %1966 = vmatprep.subr.mxu0 0.0
    %1967 = vmatpush1.msra.mxu0 0.0
    %1968 = vmatprep.subr.mxu0 0.0
    %1969 = vmatpush1.msra.mxu0 0.0
    %1970 = vmatprep.subr.mxu0 0.0
    %1971 = vmatpush1.msra.mxu0 0.0
    %1972 = vmatprep.subr.mxu0 0.0
    %1973 = vmatpush1.msra.mxu0 0.0
    %1974 = vmatprep.subr.mxu0 0.0
    %1975 = vmatpush1.msra.mxu0 0.0
    %1976 = vmatprep.subr.mxu0 0.0
    %1977 = vmatpush1.msra.mxu0 0.0
    %1978 = vmatprep.subr.mxu0 0.0
    %1979 = vmatpush1.msra.mxu0 0.0
    %1980 = vmatprep.subr.mxu0 0.0
    %1981 = vmatpush1.msra.mxu0 0.0
    %1982 = vmatprep.subr.mxu0 0.0
    %1983 = vmatpush1.msra.mxu0 0.0
    %1984 = vmatprep.subr.mxu0 0.0
    %1985 = vmatpush1.msra.mxu0 0.0
    %1986 = vmatprep.subr.mxu0 0.0
    %1987 = vmatpush1.msra.mxu0 0.0
    %1988 = vmatprep.subr.mxu0 0.0
    %1989 = vmatpush1.msra.mxu0 0.0
    %1990 = vmatprep.subr.mxu0 0.0
    %1991 = vmatpush1.msra.mxu0 0.0
    %1992 = vmatprep.subr.mxu0 0.0
    %1993 = vmatpush1.msra.mxu0 0.0
    %1994 = vmatprep.subr.mxu0 0.0
    %1995 = vmatpush1.msra.mxu0 0.0
    %1996 = vmatprep.mubr.f32.mxu0 0.0
    %1997 = vmatmul.mubr.f32.gmra.mrb[0].mxu0 %v1930
    %v1998 = vpop.f32.mrb[0].mxu0
    %v1999 = vadd.f32 %v1926, %v1998
    %v2000 = vpop.f32.mrb[0].mxu0
    %2001 = vdwg.mxu0
    %v2002 = vld [vmem:[%s4] sm:$0x1]
    %v2004 = vlaneseq
    %v2005 = vshrl.u32 %v2004, 7
    %v2006 = vsub.s32 0, %v2005
    %v2007 = vrot.slane %v2002, %v2006
    %v2009 = vadd.f32 %v1999, %v2007
    %v2010 = vxor.u32 %v2009, 2147483648
    %v2011 = vmul.f32 %v2010, 1.442695
    %v2012 = vpow.pop %v2011
    %v2013 = vadd.f32 %v2012, 1.0
    %v2014 = vrcp.pop %v2013
    %v2015 = vmul.f32 1.0, %v2014
    %v2016 = vtanh.pop %v2009
    %v2017 = vmul.f32 %v2015, %v1473
    %2019 = vrot.lane.b32.xlu0 %v2016, 64
    %v2020 = vpop.permute.xlu0 %2019
    %v2022 = vmul.f32 %v2015, %v2020
    %2024 = vrot.lane.b32.xlu0 %v2022, 32
    %v2025 = vpop.permute.xlu0 %2024
    %v2027 = vadd.f32 %v2017, %v2025
    %v2028 = vtanh.pop %v2027
    %2030 = vrot.lane.b32.xlu0 %v2028, 64
    %v2031 = vpop.permute.xlu0 %2030
    %v2033 = vmul.f32 %v2015, %v2031
    %v2034 = vld [vmem:[%s363] sm:$0xff]
    %v2035 = vld [vmem:[%s363 + $0x8] sm:$0xff]
    %v2036 = vld [vmem:[%s363 + $0x10] sm:$0xff]
    %v2037 = vld [vmem:[%s363 + $0x18] sm:$0xff]
    %v2038 = vld [vmem:[%s368] sm:$0xff]
    %v2039 = vld [vmem:[%s368 + $0x8] sm:$0xff]
    %v2040 = vld [vmem:[%s368 + $0x10] sm:$0xff]
    %v2041 = vld [vmem:[%s368 + $0x18] sm:$0xff]
    %2042 = vmatprep.subr.mxu0 0.0
    %2043 = vmatpush1.msra.mxu0 %v2038
    %2044 = vmatprep.subr.mxu0 0.0
    %2045 = vmatpush1.msra.mxu0 %v2039
    %2046 = vmatprep.subr.mxu0 0.0
    %2047 = vmatpush1.msra.mxu0 %v2040
    %2048 = vmatprep.subr.mxu0 0.0
    %2049 = vmatpush1.msra.mxu0 %v2041
    %2050 = vmatprep.subr.mxu0 0.0
    %2051 = vmatpush1.msra.mxu0 0.0
    %2052 = vmatprep.subr.mxu0 0.0
    %2053 = vmatpush1.msra.mxu0 0.0
    %2054 = vmatprep.subr.mxu0 0.0
    %2055 = vmatpush1.msra.mxu0 0.0
    %2056 = vmatprep.subr.mxu0 0.0
    %2057 = vmatpush1.msra.mxu0 0.0
    %2058 = vmatprep.subr.mxu0 0.0
    %2059 = vmatpush1.msra.mxu0 0.0
    %2060 = vmatprep.subr.mxu0 0.0
    %2061 = vmatpush1.msra.mxu0 0.0
    %2062 = vmatprep.subr.mxu0 0.0
    %2063 = vmatpush1.msra.mxu0 0.0
    %2064 = vmatprep.subr.mxu0 0.0
    %2065 = vmatpush1.msra.mxu0 0.0
    %2066 = vmatprep.subr.mxu0 0.0
    %2067 = vmatpush1.msra.mxu0 0.0
    %2068 = vmatprep.subr.mxu0 0.0
    %2069 = vmatpush1.msra.mxu0 0.0
    %2070 = vmatprep.subr.mxu0 0.0
    %2071 = vmatpush1.msra.mxu0 0.0
    %2072 = vmatprep.subr.mxu0 0.0
    %2073 = vmatpush1.msra.mxu0 0.0
    %2074 = vmatprep.subr.mxu0 0.0
    %2075 = vmatpush1.msra.mxu0 0.0
    %2076 = vmatprep.subr.mxu0 0.0
    %2077 = vmatpush1.msra.mxu0 0.0
    %2078 = vmatprep.subr.mxu0 0.0
    %2079 = vmatpush1.msra.mxu0 0.0
    %2080 = vmatprep.subr.mxu0 0.0
    %2081 = vmatpush1.msra.mxu0 0.0
    %2082 = vmatprep.subr.mxu0 0.0
    %2083 = vmatpush1.msra.mxu0 0.0
    %2084 = vmatprep.subr.mxu0 0.0
    %2085 = vmatpush1.msra.mxu0 0.0
    %2086 = vmatprep.subr.mxu0 0.0
    %2087 = vmatpush1.msra.mxu0 0.0
    %2088 = vmatprep.subr.mxu0 0.0
    %2089 = vmatpush1.msra.mxu0 0.0
    %2090 = vmatprep.subr.mxu0 0.0
    %2091 = vmatpush1.msra.mxu0 0.0
    %2092 = vmatprep.subr.mxu0 0.0
    %2093 = vmatpush1.msra.mxu0 0.0
    %2094 = vmatprep.subr.mxu0 0.0
    %2095 = vmatpush1.msra.mxu0 0.0
    %2096 = vmatprep.subr.mxu0 0.0
    %2097 = vmatpush1.msra.mxu0 0.0
    %2098 = vmatprep.subr.mxu0 0.0
    %2099 = vmatpush1.msra.mxu0 0.0
    %2100 = vmatprep.subr.mxu0 0.0
    %2101 = vmatpush1.msra.mxu0 0.0
    %2102 = vmatprep.subr.mxu0 0.0
    %2103 = vmatpush1.msra.mxu0 0.0
    %2104 = vmatprep.subr.mxu0 0.0
    %2105 = vmatpush1.msra.mxu0 0.0
    %2106 = vmatprep.mubr.f32.mxu0 0.0
    %2107 = vmatmul.mubr.f32.gmra.mrb[0].mxu0 %v1679
    %v2108 = vpop.f32.mrb[0].mxu0
    %v2109 = vadd.f32 0.0, %v2108
    %v2110 = vpop.f32.mrb[0].mxu0
    %2111 = vdwg.mxu0
    %2113 = vrot.lane.b32.xlu0 %v2033, 32
    %v2114 = vpop.permute.xlu0 %2113
    %v2115 = vsel %vm180, %v2114, 0
    %2117 = vmatprep.subr.mxu0 0.0
    %2118 = vmatpush1.msra.mxu0 %v2034
    %2119 = vmatprep.subr.mxu0 0.0
    %2120 = vmatpush1.msra.mxu0 %v2035
    %2121 = vmatprep.subr.mxu0 0.0
    %2122 = vmatpush1.msra.mxu0 %v2036
    %2123 = vmatprep.subr.mxu0 0.0
    %2124 = vmatpush1.msra.mxu0 %v2037
    %2125 = vmatprep.subr.mxu0 0.0
    %2126 = vmatpush1.msra.mxu0 0.0
    %2127 = vmatprep.subr.mxu0 0.0
    %2128 = vmatpush1.msra.mxu0 0.0
    %2129 = vmatprep.subr.mxu0 0.0
    %2130 = vmatpush1.msra.mxu0 0.0
    %2131 = vmatprep.subr.mxu0 0.0
    %2132 = vmatpush1.msra.mxu0 0.0
    %2133 = vmatprep.subr.mxu0 0.0
    %2134 = vmatpush1.msra.mxu0 0.0
    %2135 = vmatprep.subr.mxu0 0.0
    %2136 = vmatpush1.msra.mxu0 0.0
    %2137 = vmatprep.subr.mxu0 0.0
    %2138 = vmatpush1.msra.mxu0 0.0
    %2139 = vmatprep.subr.mxu0 0.0
    %2140 = vmatpush1.msra.mxu0 0.0
    %2141 = vmatprep.subr.mxu0 0.0
    %2142 = vmatpush1.msra.mxu0 0.0
    %2143 = vmatprep.subr.mxu0 0.0
    %2144 = vmatpush1.msra.mxu0 0.0
    %2145 = vmatprep.subr.mxu0 0.0
    %2146 = vmatpush1.msra.mxu0 0.0
    %2147 = vmatprep.subr.mxu0 0.0
    %2148 = vmatpush1.msra.mxu0 0.0
    %2149 = vmatprep.subr.mxu0 0.0
    %2150 = vmatpush1.msra.mxu0 0.0
    %2151 = vmatprep.subr.mxu0 0.0
    %2152 = vmatpush1.msra.mxu0 0.0
    %2153 = vmatprep.subr.mxu0 0.0
    %2154 = vmatpush1.msra.mxu0 0.0
    %2155 = vmatprep.subr.mxu0 0.0
    %2156 = vmatpush1.msra.mxu0 0.0
    %2157 = vmatprep.subr.mxu0 0.0
    %2158 = vmatpush1.msra.mxu0 0.0
    %2159 = vmatprep.subr.mxu0 0.0
    %2160 = vmatpush1.msra.mxu0 0.0
    %2161 = vmatprep.subr.mxu0 0.0
    %2162 = vmatpush1.msra.mxu0 0.0
    %2163 = vmatprep.subr.mxu0 0.0
    %2164 = vmatpush1.msra.mxu0 0.0
    %2165 = vmatprep.subr.mxu0 0.0
    %2166 = vmatpush1.msra.mxu0 0.0
    %2167 = vmatprep.subr.mxu0 0.0
    %2168 = vmatpush1.msra.mxu0 0.0
    %2169 = vmatprep.subr.mxu0 0.0
    %2170 = vmatpush1.msra.mxu0 0.0
    %2171 = vmatprep.subr.mxu0 0.0
    %2172 = vmatpush1.msra.mxu0 0.0
    %2173 = vmatprep.subr.mxu0 0.0
    %2174 = vmatpush1.msra.mxu0 0.0
    %2175 = vmatprep.subr.mxu0 0.0
    %2176 = vmatpush1.msra.mxu0 0.0
    %2177 = vmatprep.subr.mxu0 0.0
    %2178 = vmatpush1.msra.mxu0 0.0
    %2179 = vmatprep.subr.mxu0 0.0
    %2180 = vmatpush1.msra.mxu0 0.0
    %2181 = vmatprep.mubr.f32.mxu0 0.0
    %2182 = vmatmul.mubr.f32.gmra.mrb[0].mxu0 %v2115
    %v2183 = vpop.f32.mrb[0].mxu0
    %v2184 = vadd.f32 %v2109, %v2183
    %v2185 = vpop.f32.mrb[0].mxu0
    %2186 = vdwg.mxu0
    %v2187 = vld [vmem:[%s521] sm:$0x1]
    %v2189 = vlaneseq
    %v2190 = vshrl.u32 %v2189, 7
    %v2191 = vsub.s32 0, %v2190
    %v2192 = vrot.slane %v2187, %v2191
    %v2194 = vadd.f32 %v2184, %v2192
    %v2195 = vxor.u32 %v2194, 2147483648
    %v2196 = vmul.f32 %v2195, 1.442695
    %v2197 = vpow.pop %v2196
    %v2198 = vadd.f32 %v2197, 1.0
    %v2199 = vrcp.pop %v2198
    %v2200 = vmul.f32 1.0, %v2199
    %v2201 = vtanh.pop %v2194
    %v2202 = vmul.f32 %v2200, %v1658
    %2204 = vrot.lane.b32.xlu0 %v2201, 64
    %v2205 = vpop.permute.xlu0 %2204
    %v2207 = vmul.f32 %v2200, %v2205
    %2209 = vrot.lane.b32.xlu0 %v2207, 32
    %v2210 = vpop.permute.xlu0 %2209
    %v2212 = vadd.f32 %v2202, %v2210
    %v2213 = vtanh.pop %v2212
    %2215 = vrot.lane.b32.xlu0 %v2213, 64
    %v2216 = vpop.permute.xlu0 %2215
    %v2218 = vmul.f32 %v2200, %v2216
    %v2219 = vld [vmem:[%s5] sm:$0xff]
    %v2220 = vld [vmem:[%s5 + $0x8] sm:$0xff]
    %v2221 = vld [vmem:[%s5 + $0x10] sm:$0xff]
    %v2222 = vld [vmem:[%s5 + $0x18] sm:$0xff]
    %v2223 = vld [vmem:[%s6] sm:$0x1]
    %v2225 = vlaneseq
    %v2226 = vshrl.u32 %v2225, 7
    %v2227 = vsub.s32 0, %v2226
    %v2228 = vrot.slane %v2223, %v2227
    %2231 = vrot.lane.b32.xlu0 %v2218, 32
    %v2232 = vpop.permute.xlu0 %2231
    %v2233 = vsel %vm180, %v2232, 0
    %2235 = vmatprep.subr.mxu0 0.0
    %2236 = vmatpush1.msra.mxu0 %v2219
    %2237 = vmatprep.subr.mxu0 0.0
    %2238 = vmatpush1.msra.mxu0 %v2220
    %2239 = vmatprep.subr.mxu0 0.0
    %2240 = vmatpush1.msra.mxu0 %v2221
    %2241 = vmatprep.subr.mxu0 0.0
    %2242 = vmatpush1.msra.mxu0 %v2222
    %2243 = vmatprep.subr.mxu0 0.0
    %2244 = vmatpush1.msra.mxu0 0.0
    %2245 = vmatprep.subr.mxu0 0.0
    %2246 = vmatpush1.msra.mxu0 0.0
    %2247 = vmatprep.subr.mxu0 0.0
    %2248 = vmatpush1.msra.mxu0 0.0
    %2249 = vmatprep.subr.mxu0 0.0
    %2250 = vmatpush1.msra.mxu0 0.0
    %2251 = vmatprep.subr.mxu0 0.0
    %2252 = vmatpush1.msra.mxu0 0.0
    %2253 = vmatprep.subr.mxu0 0.0
    %2254 = vmatpush1.msra.mxu0 0.0
    %2255 = vmatprep.subr.mxu0 0.0
    %2256 = vmatpush1.msra.mxu0 0.0
    %2257 = vmatprep.subr.mxu0 0.0
    %2258 = vmatpush1.msra.mxu0 0.0
    %2259 = vmatprep.subr.mxu0 0.0
    %2260 = vmatpush1.msra.mxu0 0.0
    %2261 = vmatprep.subr.mxu0 0.0
    %2262 = vmatpush1.msra.mxu0 0.0
    %2263 = vmatprep.subr.mxu0 0.0
    %2264 = vmatpush1.msra.mxu0 0.0
    %2265 = vmatprep.subr.mxu0 0.0
    %2266 = vmatpush1.msra.mxu0 0.0
    %2267 = vmatprep.subr.mxu0 0.0
    %2268 = vmatpush1.msra.mxu0 0.0
    %2269 = vmatprep.subr.mxu0 0.0
    %2270 = vmatpush1.msra.mxu0 0.0
    %2271 = vmatprep.subr.mxu0 0.0
    %2272 = vmatpush1.msra.mxu0 0.0
    %2273 = vmatprep.subr.mxu0 0.0
    %2274 = vmatpush1.msra.mxu0 0.0
    %2275 = vmatprep.subr.mxu0 0.0
    %2276 = vmatpush1.msra.mxu0 0.0
    %2277 = vmatprep.subr.mxu0 0.0
    %2278 = vmatpush1.msra.mxu0 0.0
    %2279 = vmatprep.subr.mxu0 0.0
    %2280 = vmatpush1.msra.mxu0 0.0
    %2281 = vmatprep.subr.mxu0 0.0
    %2282 = vmatpush1.msra.mxu0 0.0
    %2283 = vmatprep.subr.mxu0 0.0
    %2284 = vmatpush1.msra.mxu0 0.0
    %2285 = vmatprep.subr.mxu0 0.0
    %2286 = vmatpush1.msra.mxu0 0.0
    %2287 = vmatprep.subr.mxu0 0.0
    %2288 = vmatpush1.msra.mxu0 0.0
    %2289 = vmatprep.subr.mxu0 0.0
    %2290 = vmatpush1.msra.mxu0 0.0
    %2291 = vmatprep.subr.mxu0 0.0
    %2292 = vmatpush1.msra.mxu0 0.0
    %2293 = vmatprep.subr.mxu0 0.0
    %2294 = vmatpush1.msra.mxu0 0.0
    %2295 = vmatprep.subr.mxu0 0.0
    %2296 = vmatpush1.msra.mxu0 0.0
    %2297 = vmatprep.subr.mxu0 0.0
    %2298 = vmatpush1.msra.mxu0 0.0
    %2299 = vmatprep.mubr.f32.mxu0 0.0
    %2300 = vmatmul.mubr.f32.gmra.mrb[0].mxu0 %v2233
    %v2301 = vpop.f32.mrb[0].mxu0
    %v2302 = vadd.f32 %v2228, %v2301
    %v2303 = vpop.f32.mrb[0].mxu0
    %2304 = vdwg.mxu0
    %s2305 = scalar_lea.vmem [#allocation7], 24
    %2306 = vst [vmem:[%s2305] sm:$0xff] %v2302
    %s2307 = sld [smem:[#allocation2 + $0x8]]
    %v2308 = vstv %s2307
    %vm2309 = vcmp.eq.s32.totalorder %v65, %v2308
    %vm2310 = vmand %vm73, %vm2309
    %v2311 = vsel %vm2310, 1.0, 0.0
    %v2312 = vadd.f32 %v2311, 0.0
    %s2313 = sld [smem:[#allocation2 + $0x9]]
    %v2314 = vstv %s2313
    %vm2315 = vcmp.eq.s32.totalorder %v65, %v2314
    %vm2316 = vmand %vm80, %vm2315
    %v2317 = vsel %vm2316, 1.0, 0.0
    %v2318 = vadd.f32 %v2312, %v2317
    %v2319 = vld [vmem:[%s1] sm:$0xff]
    %v2320 = vld [vmem:[%s1 + $0x8] sm:$0xff]
    %v2321 = vld [vmem:[%s1 + $0x10] sm:$0xff]
    %v2322 = vld [vmem:[%s1 + $0x18] sm:$0xff]
    %v2323 = vld [vmem:[%s1 + $0x20] sm:$0xff]
    %v2324 = vld [vmem:[%s1 + $0x28] sm:$0xff]
    %v2325 = vld [vmem:[%s1 + $0x30] sm:$0xff]
    %v2326 = vld [vmem:[%s1 + $0x38] sm:$0xff]
    %v2327 = vld [vmem:[%s1 + $0x40] sm:$0xff]
    %v2328 = vld [vmem:[%s1 + $0x48] sm:$0xff]
    %v2329 = vld [vmem:[%s1 + $0x50] sm:$0xff]
    %v2330 = vld [vmem:[%s1 + $0x58] sm:$0xff]
    %v2331 = vld [vmem:[%s1 + $0x60] sm:$0xff]
    %v2332 = vld [vmem:[%s1 + $0x68] sm:$0xff]
    %v2333 = vld [vmem:[%s1 + $0x70] sm:$0xff]
    %v2334 = vld [vmem:[%s1 + $0x78] sm:$0xff]
    %2335 = vmatprep.subr.mxu0 0.0
    %2336 = vmatpush1.msra.mxu0 %v2319
    %2337 = vmatprep.subr.mxu0 0.0
    %2338 = vmatpush1.msra.mxu0 %v2320
    %2339 = vmatprep.subr.mxu0 0.0
    %2340 = vmatpush1.msra.mxu0 %v2321
    %2341 = vmatprep.subr.mxu0 0.0
    %2342 = vmatpush1.msra.mxu0 %v2322
    %2343 = vmatprep.subr.mxu0 0.0
    %2344 = vmatpush1.msra.mxu0 %v2323
    %2345 = vmatprep.subr.mxu0 0.0
    %2346 = vmatpush1.msra.mxu0 %v2324
    %2347 = vmatprep.subr.mxu0 0.0
    %2348 = vmatpush1.msra.mxu0 %v2325
    %2349 = vmatprep.subr.mxu0 0.0
    %2350 = vmatpush1.msra.mxu0 %v2326
    %2351 = vmatprep.subr.mxu0 0.0
    %2352 = vmatpush1.msra.mxu0 %v2327
    %2353 = vmatprep.subr.mxu0 0.0
    %2354 = vmatpush1.msra.mxu0 %v2328
    %2355 = vmatprep.subr.mxu0 0.0
    %2356 = vmatpush1.msra.mxu0 %v2329
    %2357 = vmatprep.subr.mxu0 0.0
    %2358 = vmatpush1.msra.mxu0 %v2330
    %2359 = vmatprep.subr.mxu0 0.0
    %2360 = vmatpush1.msra.mxu0 %v2331
    %2361 = vmatprep.subr.mxu0 0.0
    %2362 = vmatpush1.msra.mxu0 %v2332
    %2363 = vmatprep.subr.mxu0 0.0
    %2364 = vmatpush1.msra.mxu0 %v2333
    %2365 = vmatprep.subr.mxu0 0.0
    %2366 = vmatpush1.msra.mxu0 %v2334
    %2367 = vmatprep.subr.mxu0 0.0
    %2368 = vmatpush1.msra.mxu0 0.0
    %2369 = vmatprep.subr.mxu0 0.0
    %2370 = vmatpush1.msra.mxu0 0.0
    %2371 = vmatprep.subr.mxu0 0.0
    %2372 = vmatpush1.msra.mxu0 0.0
    %2373 = vmatprep.subr.mxu0 0.0
    %2374 = vmatpush1.msra.mxu0 0.0
    %2375 = vmatprep.subr.mxu0 0.0
    %2376 = vmatpush1.msra.mxu0 0.0
    %2377 = vmatprep.subr.mxu0 0.0
    %2378 = vmatpush1.msra.mxu0 0.0
    %2379 = vmatprep.subr.mxu0 0.0
    %2380 = vmatpush1.msra.mxu0 0.0
    %2381 = vmatprep.subr.mxu0 0.0
    %2382 = vmatpush1.msra.mxu0 0.0
    %2383 = vmatprep.subr.mxu0 0.0
    %2384 = vmatpush1.msra.mxu0 0.0
    %2385 = vmatprep.subr.mxu0 0.0
    %2386 = vmatpush1.msra.mxu0 0.0
    %2387 = vmatprep.subr.mxu0 0.0
    %2388 = vmatpush1.msra.mxu0 0.0
    %2389 = vmatprep.subr.mxu0 0.0
    %2390 = vmatpush1.msra.mxu0 0.0
    %2391 = vmatprep.subr.mxu0 0.0
    %2392 = vmatpush1.msra.mxu0 0.0
    %2393 = vmatprep.subr.mxu0 0.0
    %2394 = vmatpush1.msra.mxu0 0.0
    %2395 = vmatprep.subr.mxu0 0.0
    %2396 = vmatpush1.msra.mxu0 0.0
    %2397 = vmatprep.subr.mxu0 0.0
    %2398 = vmatpush1.msra.mxu0 0.0
    %2399 = vmatprep.mubr.f32.mxu0 0.0
    %2400 = vmatmul.mubr.f32.gmra.mrb[0].mxu0 %v2318
    %v2401 = vpop.f32.mrb[0].mxu0
    %v2402 = vadd.f32 0.0, %v2401
    %v2403 = vpop.f32.mrb[0].mxu0
    %2404 = vdwg.mxu0
    %v2405 = vld [vmem:[%s2] sm:$0xff]
    %v2406 = vld [vmem:[%s2 + $0x8] sm:$0xff]
    %v2407 = vld [vmem:[%s2 + $0x10] sm:$0xff]
    %v2408 = vld [vmem:[%s2 + $0x18] sm:$0xff]
    %v2409 = vld [vmem:[%s3] sm:$0xff]
    %v2410 = vld [vmem:[%s3 + $0x8] sm:$0xff]
    %v2411 = vld [vmem:[%s3 + $0x10] sm:$0xff]
    %v2412 = vld [vmem:[%s3 + $0x18] sm:$0xff]
    %2413 = vmatprep.subr.mxu0 0.0
    %2414 = vmatpush1.msra.mxu0 %v2409
    %2415 = vmatprep.subr.mxu0 0.0
    %2416 = vmatpush1.msra.mxu0 %v2410
    %2417 = vmatprep.subr.mxu0 0.0
    %2418 = vmatpush1.msra.mxu0 %v2411
    %2419 = vmatprep.subr.mxu0 0.0
    %2420 = vmatpush1.msra.mxu0 %v2412
    %2421 = vmatprep.subr.mxu0 0.0
    %2422 = vmatpush1.msra.mxu0 0.0
    %2423 = vmatprep.subr.mxu0 0.0
    %2424 = vmatpush1.msra.mxu0 0.0
    %2425 = vmatprep.subr.mxu0 0.0
    %2426 = vmatpush1.msra.mxu0 0.0
    %2427 = vmatprep.subr.mxu0 0.0
    %2428 = vmatpush1.msra.mxu0 0.0
    %2429 = vmatprep.subr.mxu0 0.0
    %2430 = vmatpush1.msra.mxu0 0.0
    %2431 = vmatprep.subr.mxu0 0.0
    %2432 = vmatpush1.msra.mxu0 0.0
    %2433 = vmatprep.subr.mxu0 0.0
    %2434 = vmatpush1.msra.mxu0 0.0
    %2435 = vmatprep.subr.mxu0 0.0
    %2436 = vmatpush1.msra.mxu0 0.0
    %2437 = vmatprep.subr.mxu0 0.0
    %2438 = vmatpush1.msra.mxu0 0.0
    %2439 = vmatprep.subr.mxu0 0.0
    %2440 = vmatpush1.msra.mxu0 0.0
    %2441 = vmatprep.subr.mxu0 0.0
    %2442 = vmatpush1.msra.mxu0 0.0
    %2443 = vmatprep.subr.mxu0 0.0
    %2444 = vmatpush1.msra.mxu0 0.0
    %2445 = vmatprep.subr.mxu0 0.0
    %2446 = vmatpush1.msra.mxu0 0.0
    %2447 = vmatprep.subr.mxu0 0.0
    %2448 = vmatpush1.msra.mxu0 0.0
    %2449 = vmatprep.subr.mxu0 0.0
    %2450 = vmatpush1.msra.mxu0 0.0
    %2451 = vmatprep.subr.mxu0 0.0
    %2452 = vmatpush1.msra.mxu0 0.0
    %2453 = vmatprep.subr.mxu0 0.0
    %2454 = vmatpush1.msra.mxu0 0.0
    %2455 = vmatprep.subr.mxu0 0.0
    %2456 = vmatpush1.msra.mxu0 0.0
    %2457 = vmatprep.subr.mxu0 0.0
    %2458 = vmatpush1.msra.mxu0 0.0
    %2459 = vmatprep.subr.mxu0 0.0
    %2460 = vmatpush1.msra.mxu0 0.0
    %2461 = vmatprep.subr.mxu0 0.0
    %2462 = vmatpush1.msra.mxu0 0.0
    %2463 = vmatprep.subr.mxu0 0.0
    %2464 = vmatpush1.msra.mxu0 0.0
    %2465 = vmatprep.subr.mxu0 0.0
    %2466 = vmatpush1.msra.mxu0 0.0
    %2467 = vmatprep.subr.mxu0 0.0
    %2468 = vmatpush1.msra.mxu0 0.0
    %2469 = vmatprep.subr.mxu0 0.0
    %2470 = vmatpush1.msra.mxu0 0.0
    %2471 = vmatprep.subr.mxu0 0.0
    %2472 = vmatpush1.msra.mxu0 0.0
    %2473 = vmatprep.subr.mxu0 0.0
    %2474 = vmatpush1.msra.mxu0 0.0
    %2475 = vmatprep.subr.mxu0 0.0
    %2476 = vmatpush1.msra.mxu0 0.0
    %2477 = vmatprep.mubr.f32.mxu0 0.0
    %2478 = vmatmul.mubr.f32.gmra.mrb[0].mxu0 %v2115
    %v2479 = vpop.f32.mrb[0].mxu0
    %v2480 = vadd.f32 0.0, %v2479
    %v2481 = vpop.f32.mrb[0].mxu0
    %2482 = vdwg.mxu0
    %v2484 = vsel %vm180, %v2402, 0
    %2486 = vmatprep.subr.mxu0 0.0
    %2487 = vmatpush1.msra.mxu0 %v2405
    %2488 = vmatprep.subr.mxu0 0.0
    %2489 = vmatpush1.msra.mxu0 %v2406
    %2490 = vmatprep.subr.mxu0 0.0
    %2491 = vmatpush1.msra.mxu0 %v2407
    %2492 = vmatprep.subr.mxu0 0.0
    %2493 = vmatpush1.msra.mxu0 %v2408
    %2494 = vmatprep.subr.mxu0 0.0
    %2495 = vmatpush1.msra.mxu0 0.0
    %2496 = vmatprep.subr.mxu0 0.0
    %2497 = vmatpush1.msra.mxu0 0.0
    %2498 = vmatprep.subr.mxu0 0.0
    %2499 = vmatpush1.msra.mxu0 0.0
    %2500 = vmatprep.subr.mxu0 0.0
    %2501 = vmatpush1.msra.mxu0 0.0
    %2502 = vmatprep.subr.mxu0 0.0
    %2503 = vmatpush1.msra.mxu0 0.0
    %2504 = vmatprep.subr.mxu0 0.0
    %2505 = vmatpush1.msra.mxu0 0.0
    %2506 = vmatprep.subr.mxu0 0.0
    %2507 = vmatpush1.msra.mxu0 0.0
    %2508 = vmatprep.subr.mxu0 0.0
    %2509 = vmatpush1.msra.mxu0 0.0
    %2510 = vmatprep.subr.mxu0 0.0
    %2511 = vmatpush1.msra.mxu0 0.0
    %2512 = vmatprep.subr.mxu0 0.0
    %2513 = vmatpush1.msra.mxu0 0.0
    %2514 = vmatprep.subr.mxu0 0.0
    %2515 = vmatpush1.msra.mxu0 0.0
    %2516 = vmatprep.subr.mxu0 0.0
    %2517 = vmatpush1.msra.mxu0 0.0
    %2518 = vmatprep.subr.mxu0 0.0
    %2519 = vmatpush1.msra.mxu0 0.0
    %2520 = vmatprep.subr.mxu0 0.0
    %2521 = vmatpush1.msra.mxu0 0.0
    %2522 = vmatprep.subr.mxu0 0.0
    %2523 = vmatpush1.msra.mxu0 0.0
    %2524 = vmatprep.subr.mxu0 0.0
    %2525 = vmatpush1.msra.mxu0 0.0
    %2526 = vmatprep.subr.mxu0 0.0
    %2527 = vmatpush1.msra.mxu0 0.0
    %2528 = vmatprep.subr.mxu0 0.0
    %2529 = vmatpush1.msra.mxu0 0.0
    %2530 = vmatprep.subr.mxu0 0.0
    %2531 = vmatpush1.msra.mxu0 0.0
    %2532 = vmatprep.subr.mxu0 0.0
    %2533 = vmatpush1.msra.mxu0 0.0
    %2534 = vmatprep.subr.mxu0 0.0
    %2535 = vmatpush1.msra.mxu0 0.0
    %2536 = vmatprep.subr.mxu0 0.0
    %2537 = vmatpush1.msra.mxu0 0.0
    %2538 = vmatprep.subr.mxu0 0.0
    %2539 = vmatpush1.msra.mxu0 0.0
    %2540 = vmatprep.subr.mxu0 0.0
    %2541 = vmatpush1.msra.mxu0 0.0
    %2542 = vmatprep.subr.mxu0 0.0
    %2543 = vmatpush1.msra.mxu0 0.0
    %2544 = vmatprep.subr.mxu0 0.0
    %2545 = vmatpush1.msra.mxu0 0.0
    %2546 = vmatprep.subr.mxu0 0.0
    %2547 = vmatpush1.msra.mxu0 0.0
    %2548 = vmatprep.subr.mxu0 0.0
    %2549 = vmatpush1.msra.mxu0 0.0
    %2550 = vmatprep.mubr.f32.mxu0 0.0
    %2551 = vmatmul.mubr.f32.gmra.mrb[0].mxu0 %v2484
    %v2552 = vpop.f32.mrb[0].mxu0
    %v2553 = vadd.f32 %v2480, %v2552
    %v2554 = vpop.f32.mrb[0].mxu0
    %2555 = vdwg.mxu0
    %v2556 = vld [vmem:[%s4] sm:$0x1]
    %v2558 = vlaneseq
    %v2559 = vshrl.u32 %v2558, 7
    %v2560 = vsub.s32 0, %v2559
    %v2561 = vrot.slane %v2556, %v2560
    %v2563 = vadd.f32 %v2553, %v2561
    %v2564 = vxor.u32 %v2563, 2147483648
    %v2565 = vmul.f32 %v2564, 1.442695
    %v2566 = vpow.pop %v2565
    %v2567 = vadd.f32 %v2566, 1.0
    %v2568 = vrcp.pop %v2567
    %v2569 = vmul.f32 1.0, %v2568
    %v2570 = vtanh.pop %v2563
    %v2571 = vmul.f32 %v2569, %v2027
    %2573 = vrot.lane.b32.xlu0 %v2570, 64
    %v2574 = vpop.permute.xlu0 %2573
    %v2576 = vmul.f32 %v2569, %v2574
    %2578 = vrot.lane.b32.xlu0 %v2576, 32
    %v2579 = vpop.permute.xlu0 %2578
    %v2581 = vadd.f32 %v2571, %v2579
    %v2582 = vtanh.pop %v2581
    %2584 = vrot.lane.b32.xlu0 %v2582, 64
    %v2585 = vpop.permute.xlu0 %2584
    %v2587 = vmul.f32 %v2569, %v2585
    %v2588 = vld [vmem:[%s363] sm:$0xff]
    %v2589 = vld [vmem:[%s363 + $0x8] sm:$0xff]
    %v2590 = vld [vmem:[%s363 + $0x10] sm:$0xff]
    %v2591 = vld [vmem:[%s363 + $0x18] sm:$0xff]
    %v2592 = vld [vmem:[%s368] sm:$0xff]
    %v2593 = vld [vmem:[%s368 + $0x8] sm:$0xff]
    %v2594 = vld [vmem:[%s368 + $0x10] sm:$0xff]
    %v2595 = vld [vmem:[%s368 + $0x18] sm:$0xff]
    %2596 = vmatprep.subr.mxu0 0.0
    %2597 = vmatpush1.msra.mxu0 %v2592
    %2598 = vmatprep.subr.mxu0 0.0
    %2599 = vmatpush1.msra.mxu0 %v2593
    %2600 = vmatprep.subr.mxu0 0.0
    %2601 = vmatpush1.msra.mxu0 %v2594
    %2602 = vmatprep.subr.mxu0 0.0
    %2603 = vmatpush1.msra.mxu0 %v2595
    %2604 = vmatprep.subr.mxu0 0.0
    %2605 = vmatpush1.msra.mxu0 0.0
    %2606 = vmatprep.subr.mxu0 0.0
    %2607 = vmatpush1.msra.mxu0 0.0
    %2608 = vmatprep.subr.mxu0 0.0
    %2609 = vmatpush1.msra.mxu0 0.0
    %2610 = vmatprep.subr.mxu0 0.0
    %2611 = vmatpush1.msra.mxu0 0.0
    %2612 = vmatprep.subr.mxu0 0.0
    %2613 = vmatpush1.msra.mxu0 0.0
    %2614 = vmatprep.subr.mxu0 0.0
    %2615 = vmatpush1.msra.mxu0 0.0
    %2616 = vmatprep.subr.mxu0 0.0
    %2617 = vmatpush1.msra.mxu0 0.0
    %2618 = vmatprep.subr.mxu0 0.0
    %2619 = vmatpush1.msra.mxu0 0.0
    %2620 = vmatprep.subr.mxu0 0.0
    %2621 = vmatpush1.msra.mxu0 0.0
    %2622 = vmatprep.subr.mxu0 0.0
    %2623 = vmatpush1.msra.mxu0 0.0
    %2624 = vmatprep.subr.mxu0 0.0
    %2625 = vmatpush1.msra.mxu0 0.0
    %2626 = vmatprep.subr.mxu0 0.0
    %2627 = vmatpush1.msra.mxu0 0.0
    %2628 = vmatprep.subr.mxu0 0.0
    %2629 = vmatpush1.msra.mxu0 0.0
    %2630 = vmatprep.subr.mxu0 0.0
    %2631 = vmatpush1.msra.mxu0 0.0
    %2632 = vmatprep.subr.mxu0 0.0
    %2633 = vmatpush1.msra.mxu0 0.0
    %2634 = vmatprep.subr.mxu0 0.0
    %2635 = vmatpush1.msra.mxu0 0.0
    %2636 = vmatprep.subr.mxu0 0.0
    %2637 = vmatpush1.msra.mxu0 0.0
    %2638 = vmatprep.subr.mxu0 0.0
    %2639 = vmatpush1.msra.mxu0 0.0
    %2640 = vmatprep.subr.mxu0 0.0
    %2641 = vmatpush1.msra.mxu0 0.0
    %2642 = vmatprep.subr.mxu0 0.0
    %2643 = vmatpush1.msra.mxu0 0.0
    %2644 = vmatprep.subr.mxu0 0.0
    %2645 = vmatpush1.msra.mxu0 0.0
    %2646 = vmatprep.subr.mxu0 0.0
    %2647 = vmatpush1.msra.mxu0 0.0
    %2648 = vmatprep.subr.mxu0 0.0
    %2649 = vmatpush1.msra.mxu0 0.0
    %2650 = vmatprep.subr.mxu0 0.0
    %2651 = vmatpush1.msra.mxu0 0.0
    %2652 = vmatprep.subr.mxu0 0.0
    %2653 = vmatpush1.msra.mxu0 0.0
    %2654 = vmatprep.subr.mxu0 0.0
    %2655 = vmatpush1.msra.mxu0 0.0
    %2656 = vmatprep.subr.mxu0 0.0
    %2657 = vmatpush1.msra.mxu0 0.0
    %2658 = vmatprep.subr.mxu0 0.0
    %2659 = vmatpush1.msra.mxu0 0.0
    %2660 = vmatprep.mubr.f32.mxu0 0.0
    %2661 = vmatmul.mubr.f32.gmra.mrb[0].mxu0 %v2233
    %v2662 = vpop.f32.mrb[0].mxu0
    %v2663 = vadd.f32 0.0, %v2662
    %v2664 = vpop.f32.mrb[0].mxu0
    %2665 = vdwg.mxu0
    %2667 = vrot.lane.b32.xlu0 %v2587, 32
    %v2668 = vpop.permute.xlu0 %2667
    %v2669 = vsel %vm180, %v2668, 0
    %2671 = vmatprep.subr.mxu0 0.0
    %2672 = vmatpush1.msra.mxu0 %v2588
    %2673 = vmatprep.subr.mxu0 0.0
    %2674 = vmatpush1.msra.mxu0 %v2589
    %2675 = vmatprep.subr.mxu0 0.0
    %2676 = vmatpush1.msra.mxu0 %v2590
    %2677 = vmatprep.subr.mxu0 0.0
    %2678 = vmatpush1.msra.mxu0 %v2591
    %2679 = vmatprep.subr.mxu0 0.0
    %2680 = vmatpush1.msra.mxu0 0.0
    %2681 = vmatprep.subr.mxu0 0.0
    %2682 = vmatpush1.msra.mxu0 0.0
    %2683 = vmatprep.subr.mxu0 0.0
    %2684 = vmatpush1.msra.mxu0 0.0
    %2685 = vmatprep.subr.mxu0 0.0
    %2686 = vmatpush1.msra.mxu0 0.0
    %2687 = vmatprep.subr.mxu0 0.0
    %2688 = vmatpush1.msra.mxu0 0.0
    %2689 = vmatprep.subr.mxu0 0.0
    %2690 = vmatpush1.msra.mxu0 0.0
    %2691 = vmatprep.subr.mxu0 0.0
    %2692 = vmatpush1.msra.mxu0 0.0
    %2693 = vmatprep.subr.mxu0 0.0
    %2694 = vmatpush1.msra.mxu0 0.0
    %2695 = vmatprep.subr.mxu0 0.0
    %2696 = vmatpush1.msra.mxu0 0.0
    %2697 = vmatprep.subr.mxu0 0.0
    %2698 = vmatpush1.msra.mxu0 0.0
    %2699 = vmatprep.subr.mxu0 0.0
    %2700 = vmatpush1.msra.mxu0 0.0
    %2701 = vmatprep.subr.mxu0 0.0
    %2702 = vmatpush1.msra.mxu0 0.0
    %2703 = vmatprep.subr.mxu0 0.0
    %2704 = vmatpush1.msra.mxu0 0.0
    %2705 = vmatprep.subr.mxu0 0.0
    %2706 = vmatpush1.msra.mxu0 0.0
    %2707 = vmatprep.subr.mxu0 0.0
    %2708 = vmatpush1.msra.mxu0 0.0
    %2709 = vmatprep.subr.mxu0 0.0
    %2710 = vmatpush1.msra.mxu0 0.0
    %2711 = vmatprep.subr.mxu0 0.0
    %2712 = vmatpush1.msra.mxu0 0.0
    %2713 = vmatprep.subr.mxu0 0.0
    %2714 = vmatpush1.msra.mxu0 0.0
    %2715 = vmatprep.subr.mxu0 0.0
    %2716 = vmatpush1.msra.mxu0 0.0
    %2717 = vmatprep.subr.mxu0 0.0
    %2718 = vmatpush1.msra.mxu0 0.0
    %2719 = vmatprep.subr.mxu0 0.0
    %2720 = vmatpush1.msra.mxu0 0.0
    %2721 = vmatprep.subr.mxu0 0.0
    %2722 = vmatpush1.msra.mxu0 0.0
    %2723 = vmatprep.subr.mxu0 0.0
    %2724 = vmatpush1.msra.mxu0 0.0
    %2725 = vmatprep.subr.mxu0 0.0
    %2726 = vmatpush1.msra.mxu0 0.0
    %2727 = vmatprep.subr.mxu0 0.0
    %2728 = vmatpush1.msra.mxu0 0.0
    %2729 = vmatprep.subr.mxu0 0.0
    %2730 = vmatpush1.msra.mxu0 0.0
    %2731 = vmatprep.subr.mxu0 0.0
    %2732 = vmatpush1.msra.mxu0 0.0
    %2733 = vmatprep.subr.mxu0 0.0
    %2734 = vmatpush1.msra.mxu0 0.0
    %2735 = vmatprep.mubr.f32.mxu0 0.0
    %2736 = vmatmul.mubr.f32.gmra.mrb[0].mxu0 %v2669
    %v2737 = vpop.f32.mrb[0].mxu0
    %v2738 = vadd.f32 %v2663, %v2737
    %v2739 = vpop.f32.mrb[0].mxu0
    %2740 = vdwg.mxu0
    %v2741 = vld [vmem:[%s521] sm:$0x1]
    %v2743 = vlaneseq
    %v2744 = vshrl.u32 %v2743, 7
    %v2745 = vsub.s32 0, %v2744
    %v2746 = vrot.slane %v2741, %v2745
    %v2748 = vadd.f32 %v2738, %v2746
    %v2749 = vxor.u32 %v2748, 2147483648
    %v2750 = vmul.f32 %v2749, 1.442695
    %v2751 = vpow.pop %v2750
    %v2752 = vadd.f32 %v2751, 1.0
    %v2753 = vrcp.pop %v2752
    %v2754 = vmul.f32 1.0, %v2753
    %v2755 = vtanh.pop %v2748
    %v2756 = vmul.f32 %v2754, %v2212
    %2758 = vrot.lane.b32.xlu0 %v2755, 64
    %v2759 = vpop.permute.xlu0 %2758
    %v2761 = vmul.f32 %v2754, %v2759
    %2763 = vrot.lane.b32.xlu0 %v2761, 32
    %v2764 = vpop.permute.xlu0 %2763
    %v2766 = vadd.f32 %v2756, %v2764
    %v2767 = vtanh.pop %v2766
    %2769 = vrot.lane.b32.xlu0 %v2767, 64
    %v2770 = vpop.permute.xlu0 %2769
    %v2772 = vmul.f32 %v2754, %v2770
    %v2773 = vld [vmem:[%s5] sm:$0xff]
    %v2774 = vld [vmem:[%s5 + $0x8] sm:$0xff]
    %v2775 = vld [vmem:[%s5 + $0x10] sm:$0xff]
    %v2776 = vld [vmem:[%s5 + $0x18] sm:$0xff]
    %v2777 = vld [vmem:[%s6] sm:$0x1]
    %v2779 = vlaneseq
    %v2780 = vshrl.u32 %v2779, 7
    %v2781 = vsub.s32 0, %v2780
    %v2782 = vrot.slane %v2777, %v2781
    %2785 = vrot.lane.b32.xlu0 %v2772, 32
    %v2786 = vpop.permute.xlu0 %2785
    %v2787 = vsel %vm180, %v2786, 0
    %2789 = vmatprep.subr.mxu0 0.0
    %2790 = vmatpush1.msra.mxu0 %v2773
    %2791 = vmatprep.subr.mxu0 0.0
    %2792 = vmatpush1.msra.mxu0 %v2774
    %2793 = vmatprep.subr.mxu0 0.0
    %2794 = vmatpush1.msra.mxu0 %v2775
    %2795 = vmatprep.subr.mxu0 0.0
    %2796 = vmatpush1.msra.mxu0 %v2776
    %2797 = vmatprep.subr.mxu0 0.0
    %2798 = vmatpush1.msra.mxu0 0.0
    %2799 = vmatprep.subr.mxu0 0.0
    %2800 = vmatpush1.msra.mxu0 0.0
    %2801 = vmatprep.subr.mxu0 0.0
    %2802 = vmatpush1.msra.mxu0 0.0
    %2803 = vmatprep.subr.mxu0 0.0
    %2804 = vmatpush1.msra.mxu0 0.0
    %2805 = vmatprep.subr.mxu0 0.0
    %2806 = vmatpush1.msra.mxu0 0.0
    %2807 = vmatprep.subr.mxu0 0.0
    %2808 = vmatpush1.msra.mxu0 0.0
    %2809 = vmatprep.subr.mxu0 0.0
    %2810 = vmatpush1.msra.mxu0 0.0
    %2811 = vmatprep.subr.mxu0 0.0
    %2812 = vmatpush1.msra.mxu0 0.0
    %2813 = vmatprep.subr.mxu0 0.0
    %2814 = vmatpush1.msra.mxu0 0.0
    %2815 = vmatprep.subr.mxu0 0.0
    %2816 = vmatpush1.msra.mxu0 0.0
    %2817 = vmatprep.subr.mxu0 0.0
    %2818 = vmatpush1.msra.mxu0 0.0
    %2819 = vmatprep.subr.mxu0 0.0
    %2820 = vmatpush1.msra.mxu0 0.0
    %2821 = vmatprep.subr.mxu0 0.0
    %2822 = vmatpush1.msra.mxu0 0.0
    %2823 = vmatprep.subr.mxu0 0.0
    %2824 = vmatpush1.msra.mxu0 0.0
    %2825 = vmatprep.subr.mxu0 0.0
    %2826 = vmatpush1.msra.mxu0 0.0
    %2827 = vmatprep.subr.mxu0 0.0
    %2828 = vmatpush1.msra.mxu0 0.0
    %2829 = vmatprep.subr.mxu0 0.0
    %2830 = vmatpush1.msra.mxu0 0.0
    %2831 = vmatprep.subr.mxu0 0.0
    %2832 = vmatpush1.msra.mxu0 0.0
    %2833 = vmatprep.subr.mxu0 0.0
    %2834 = vmatpush1.msra.mxu0 0.0
    %2835 = vmatprep.subr.mxu0 0.0
    %2836 = vmatpush1.msra.mxu0 0.0
    %2837 = vmatprep.subr.mxu0 0.0
    %2838 = vmatpush1.msra.mxu0 0.0
    %2839 = vmatprep.subr.mxu0 0.0
    %2840 = vmatpush1.msra.mxu0 0.0
    %2841 = vmatprep.subr.mxu0 0.0
    %2842 = vmatpush1.msra.mxu0 0.0
    %2843 = vmatprep.subr.mxu0 0.0
    %2844 = vmatpush1.msra.mxu0 0.0
    %2845 = vmatprep.subr.mxu0 0.0
    %2846 = vmatpush1.msra.mxu0 0.0
    %2847 = vmatprep.subr.mxu0 0.0
    %2848 = vmatpush1.msra.mxu0 0.0
    %2849 = vmatprep.subr.mxu0 0.0
    %2850 = vmatpush1.msra.mxu0 0.0
    %2851 = vmatprep.subr.mxu0 0.0
    %2852 = vmatpush1.msra.mxu0 0.0
    %2853 = vmatprep.mubr.f32.mxu0 0.0
    %2854 = vmatmul.mubr.f32.gmra.mrb[0].mxu0 %v2787
    %v2855 = vpop.f32.mrb[0].mxu0
    %v2856 = vadd.f32 %v2782, %v2855
    %v2857 = vpop.f32.mrb[0].mxu0
    %2858 = vdwg.mxu0
    %s2859 = scalar_lea.vmem [#allocation7], 32
    %2860 = vst [vmem:[%s2859] sm:$0xff] %v2856
    %s2861 = sld [smem:[#allocation2 + $0xa]]
    %v2862 = vstv %s2861
    %vm2863 = vcmp.eq.s32.totalorder %v65, %v2862
    %vm2864 = vmand %vm73, %vm2863
    %v2865 = vsel %vm2864, 1.0, 0.0
    %v2866 = vadd.f32 %v2865, 0.0
    %s2867 = sld [smem:[#allocation2 + $0xb]]
    %v2868 = vstv %s2867
    %vm2869 = vcmp.eq.s32.totalorder %v65, %v2868
    %vm2870 = vmand %vm80, %vm2869
    %v2871 = vsel %vm2870, 1.0, 0.0
    %v2872 = vadd.f32 %v2866, %v2871
    %v2873 = vld [vmem:[%s1] sm:$0xff]
    %v2874 = vld [vmem:[%s1 + $0x8] sm:$0xff]
    %v2875 = vld [vmem:[%s1 + $0x10] sm:$0xff]
    %v2876 = vld [vmem:[%s1 + $0x18] sm:$0xff]
    %v2877 = vld [vmem:[%s1 + $0x20] sm:$0xff]
    %v2878 = vld [vmem:[%s1 + $0x28] sm:$0xff]
    %v2879 = vld [vmem:[%s1 + $0x30] sm:$0xff]
    %v2880 = vld [vmem:[%s1 + $0x38] sm:$0xff]
    %v2881 = vld [vmem:[%s1 + $0x40] sm:$0xff]
    %v2882 = vld [vmem:[%s1 + $0x48] sm:$0xff]
    %v2883 = vld [vmem:[%s1 + $0x50] sm:$0xff]
    %v2884 = vld [vmem:[%s1 + $0x58] sm:$0xff]
    %v2885 = vld [vmem:[%s1 + $0x60] sm:$0xff]
    %v2886 = vld [vmem:[%s1 + $0x68] sm:$0xff]
    %v2887 = vld [vmem:[%s1 + $0x70] sm:$0xff]
    %v2888 = vld [vmem:[%s1 + $0x78] sm:$0xff]
    %2889 = vmatprep.subr.mxu0 0.0
    %2890 = vmatpush1.msra.mxu0 %v2873
    %2891 = vmatprep.subr.mxu0 0.0
    %2892 = vmatpush1.msra.mxu0 %v2874
    %2893 = vmatprep.subr.mxu0 0.0
    %2894 = vmatpush1.msra.mxu0 %v2875
    %2895 = vmatprep.subr.mxu0 0.0
    %2896 = vmatpush1.msra.mxu0 %v2876
    %2897 = vmatprep.subr.mxu0 0.0
    %2898 = vmatpush1.msra.mxu0 %v2877
    %2899 = vmatprep.subr.mxu0 0.0
    %2900 = vmatpush1.msra.mxu0 %v2878
    %2901 = vmatprep.subr.mxu0 0.0
    %2902 = vmatpush1.msra.mxu0 %v2879
    %2903 = vmatprep.subr.mxu0 0.0
    %2904 = vmatpush1.msra.mxu0 %v2880
    %2905 = vmatprep.subr.mxu0 0.0
    %2906 = vmatpush1.msra.mxu0 %v2881
    %2907 = vmatprep.subr.mxu0 0.0
    %2908 = vmatpush1.msra.mxu0 %v2882
    %2909 = vmatprep.subr.mxu0 0.0
    %2910 = vmatpush1.msra.mxu0 %v2883
    %2911 = vmatprep.subr.mxu0 0.0
    %2912 = vmatpush1.msra.mxu0 %v2884
    %2913 = vmatprep.subr.mxu0 0.0
    %2914 = vmatpush1.msra.mxu0 %v2885
    %2915 = vmatprep.subr.mxu0 0.0
    %2916 = vmatpush1.msra.mxu0 %v2886
    %2917 = vmatprep.subr.mxu0 0.0
    %2918 = vmatpush1.msra.mxu0 %v2887
    %2919 = vmatprep.subr.mxu0 0.0
    %2920 = vmatpush1.msra.mxu0 %v2888
    %2921 = vmatprep.subr.mxu0 0.0
    %2922 = vmatpush1.msra.mxu0 0.0
    %2923 = vmatprep.subr.mxu0 0.0
    %2924 = vmatpush1.msra.mxu0 0.0
    %2925 = vmatprep.subr.mxu0 0.0
    %2926 = vmatpush1.msra.mxu0 0.0
    %2927 = vmatprep.subr.mxu0 0.0
    %2928 = vmatpush1.msra.mxu0 0.0
    %2929 = vmatprep.subr.mxu0 0.0
    %2930 = vmatpush1.msra.mxu0 0.0
    %2931 = vmatprep.subr.mxu0 0.0
    %2932 = vmatpush1.msra.mxu0 0.0
    %2933 = vmatprep.subr.mxu0 0.0
    %2934 = vmatpush1.msra.mxu0 0.0
    %2935 = vmatprep.subr.mxu0 0.0
    %2936 = vmatpush1.msra.mxu0 0.0
    %2937 = vmatprep.subr.mxu0 0.0
    %2938 = vmatpush1.msra.mxu0 0.0
    %2939 = vmatprep.subr.mxu0 0.0
    %2940 = vmatpush1.msra.mxu0 0.0
    %2941 = vmatprep.subr.mxu0 0.0
    %2942 = vmatpush1.msra.mxu0 0.0
    %2943 = vmatprep.subr.mxu0 0.0
    %2944 = vmatpush1.msra.mxu0 0.0
    %2945 = vmatprep.subr.mxu0 0.0
    %2946 = vmatpush1.msra.mxu0 0.0
    %2947 = vmatprep.subr.mxu0 0.0
    %2948 = vmatpush1.msra.mxu0 0.0
    %2949 = vmatprep.subr.mxu0 0.0
    %2950 = vmatpush1.msra.mxu0 0.0
    %2951 = vmatprep.subr.mxu0 0.0
    %2952 = vmatpush1.msra.mxu0 0.0
    %2953 = vmatprep.mubr.f32.mxu0 0.0
    %2954 = vmatmul.mubr.f32.gmra.mrb[0].mxu0 %v2872
    %v2955 = vpop.f32.mrb[0].mxu0
    %v2956 = vadd.f32 0.0, %v2955
    %v2957 = vpop.f32.mrb[0].mxu0
    %2958 = vdwg.mxu0
    %v2959 = vld [vmem:[%s2] sm:$0xff]
    %v2960 = vld [vmem:[%s2 + $0x8] sm:$0xff]
    %v2961 = vld [vmem:[%s2 + $0x10] sm:$0xff]
    %v2962 = vld [vmem:[%s2 + $0x18] sm:$0xff]
    %v2963 = vld [vmem:[%s3] sm:$0xff]
    %v2964 = vld [vmem:[%s3 + $0x8] sm:$0xff]
    %v2965 = vld [vmem:[%s3 + $0x10] sm:$0xff]
    %v2966 = vld [vmem:[%s3 + $0x18] sm:$0xff]
    %2967 = vmatprep.subr.mxu0 0.0
    %2968 = vmatpush1.msra.mxu0 %v2963
    %2969 = vmatprep.subr.mxu0 0.0
    %2970 = vmatpush1.msra.mxu0 %v2964
    %2971 = vmatprep.subr.mxu0 0.0
    %2972 = vmatpush1.msra.mxu0 %v2965
    %2973 = vmatprep.subr.mxu0 0.0
    %2974 = vmatpush1.msra.mxu0 %v2966
    %2975 = vmatprep.subr.mxu0 0.0
    %2976 = vmatpush1.msra.mxu0 0.0
    %2977 = vmatprep.subr.mxu0 0.0
    %2978 = vmatpush1.msra.mxu0 0.0
    %2979 = vmatprep.subr.mxu0 0.0
    %2980 = vmatpush1.msra.mxu0 0.0
    %2981 = vmatprep.subr.mxu0 0.0
    %2982 = vmatpush1.msra.mxu0 0.0
    %2983 = vmatprep.subr.mxu0 0.0
    %2984 = vmatpush1.msra.mxu0 0.0
    %2985 = vmatprep.subr.mxu0 0.0
    %2986 = vmatpush1.msra.mxu0 0.0
    %2987 = vmatprep.subr.mxu0 0.0
    %2988 = vmatpush1.msra.mxu0 0.0
    %2989 = vmatprep.subr.mxu0 0.0
    %2990 = vmatpush1.msra.mxu0 0.0
    %2991 = vmatprep.subr.mxu0 0.0
    %2992 = vmatpush1.msra.mxu0 0.0
    %2993 = vmatprep.subr.mxu0 0.0
    %2994 = vmatpush1.msra.mxu0 0.0
    %2995 = vmatprep.subr.mxu0 0.0
    %2996 = vmatpush1.msra.mxu0 0.0
    %2997 = vmatprep.subr.mxu0 0.0
    %2998 = vmatpush1.msra.mxu0 0.0
    %2999 = vmatprep.subr.mxu0 0.0
    %3000 = vmatpush1.msra.mxu0 0.0
    %3001 = vmatprep.subr.mxu0 0.0
    %3002 = vmatpush1.msra.mxu0 0.0
    %3003 = vmatprep.subr.mxu0 0.0
    %3004 = vmatpush1.msra.mxu0 0.0
    %3005 = vmatprep.subr.mxu0 0.0
    %3006 = vmatpush1.msra.mxu0 0.0
    %3007 = vmatprep.subr.mxu0 0.0
    %3008 = vmatpush1.msra.mxu0 0.0
    %3009 = vmatprep.subr.mxu0 0.0
    %3010 = vmatpush1.msra.mxu0 0.0
    %3011 = vmatprep.subr.mxu0 0.0
    %3012 = vmatpush1.msra.mxu0 0.0
    %3013 = vmatprep.subr.mxu0 0.0
    %3014 = vmatpush1.msra.mxu0 0.0
    %3015 = vmatprep.subr.mxu0 0.0
    %3016 = vmatpush1.msra.mxu0 0.0
    %3017 = vmatprep.subr.mxu0 0.0
    %3018 = vmatpush1.msra.mxu0 0.0
    %3019 = vmatprep.subr.mxu0 0.0
    %3020 = vmatpush1.msra.mxu0 0.0
    %3021 = vmatprep.subr.mxu0 0.0
    %3022 = vmatpush1.msra.mxu0 0.0
    %3023 = vmatprep.subr.mxu0 0.0
    %3024 = vmatpush1.msra.mxu0 0.0
    %3025 = vmatprep.subr.mxu0 0.0
    %3026 = vmatpush1.msra.mxu0 0.0
    %3027 = vmatprep.subr.mxu0 0.0
    %3028 = vmatpush1.msra.mxu0 0.0
    %3029 = vmatprep.subr.mxu0 0.0
    %3030 = vmatpush1.msra.mxu0 0.0
    %3031 = vmatprep.mubr.f32.mxu0 0.0
    %3032 = vmatmul.mubr.f32.gmra.mrb[0].mxu0 %v2669
    %v3033 = vpop.f32.mrb[0].mxu0
    %v3034 = vadd.f32 0.0, %v3033
    %v3035 = vpop.f32.mrb[0].mxu0
    %3036 = vdwg.mxu0
    %v3038 = vsel %vm180, %v2956, 0
    %3040 = vmatprep.subr.mxu0 0.0
    %3041 = vmatpush1.msra.mxu0 %v2959
    %3042 = vmatprep.subr.mxu0 0.0
    %3043 = vmatpush1.msra.mxu0 %v2960
    %3044 = vmatprep.subr.mxu0 0.0
    %3045 = vmatpush1.msra.mxu0 %v2961
    %3046 = vmatprep.subr.mxu0 0.0
    %3047 = vmatpush1.msra.mxu0 %v2962
    %3048 = vmatprep.subr.mxu0 0.0
    %3049 = vmatpush1.msra.mxu0 0.0
    %3050 = vmatprep.subr.mxu0 0.0
    %3051 = vmatpush1.msra.mxu0 0.0
    %3052 = vmatprep.subr.mxu0 0.0
    %3053 = vmatpush1.msra.mxu0 0.0
    %3054 = vmatprep.subr.mxu0 0.0
    %3055 = vmatpush1.msra.mxu0 0.0
    %3056 = vmatprep.subr.mxu0 0.0
    %3057 = vmatpush1.msra.mxu0 0.0
    %3058 = vmatprep.subr.mxu0 0.0
    %3059 = vmatpush1.msra.mxu0 0.0
    %3060 = vmatprep.subr.mxu0 0.0
    %3061 = vmatpush1.msra.mxu0 0.0
    %3062 = vmatprep.subr.mxu0 0.0
    %3063 = vmatpush1.msra.mxu0 0.0
    %3064 = vmatprep.subr.mxu0 0.0
    %3065 = vmatpush1.msra.mxu0 0.0
    %3066 = vmatprep.subr.mxu0 0.0
    %3067 = vmatpush1.msra.mxu0 0.0
    %3068 = vmatprep.subr.mxu0 0.0
    %3069 = vmatpush1.msra.mxu0 0.0
    %3070 = vmatprep.subr.mxu0 0.0
    %3071 = vmatpush1.msra.mxu0 0.0
    %3072 = vmatprep.subr.mxu0 0.0
    %3073 = vmatpush1.msra.mxu0 0.0
    %3074 = vmatprep.subr.mxu0 0.0
    %3075 = vmatpush1.msra.mxu0 0.0
    %3076 = vmatprep.subr.mxu0 0.0
    %3077 = vmatpush1.msra.mxu0 0.0
    %3078 = vmatprep.subr.mxu0 0.0
    %3079 = vmatpush1.msra.mxu0 0.0
    %3080 = vmatprep.subr.mxu0 0.0
    %3081 = vmatpush1.msra.mxu0 0.0
    %3082 = vmatprep.subr.mxu0 0.0
    %3083 = vmatpush1.msra.mxu0 0.0
    %3084 = vmatprep.subr.mxu0 0.0
    %3085 = vmatpush1.msra.mxu0 0.0
    %3086 = vmatprep.subr.mxu0 0.0
    %3087 = vmatpush1.msra.mxu0 0.0
    %3088 = vmatprep.subr.mxu0 0.0
    %3089 = vmatpush1.msra.mxu0 0.0
    %3090 = vmatprep.subr.mxu0 0.0
    %3091 = vmatpush1.msra.mxu0 0.0
    %3092 = vmatprep.subr.mxu0 0.0
    %3093 = vmatpush1.msra.mxu0 0.0
    %3094 = vmatprep.subr.mxu0 0.0
    %3095 = vmatpush1.msra.mxu0 0.0
    %3096 = vmatprep.subr.mxu0 0.0
    %3097 = vmatpush1.msra.mxu0 0.0
    %3098 = vmatprep.subr.mxu0 0.0
    %3099 = vmatpush1.msra.mxu0 0.0
    %3100 = vmatprep.subr.mxu0 0.0
    %3101 = vmatpush1.msra.mxu0 0.0
    %3102 = vmatprep.subr.mxu0 0.0
    %3103 = vmatpush1.msra.mxu0 0.0
    %3104 = vmatprep.mubr.f32.mxu0 0.0
    %3105 = vmatmul.mubr.f32.gmra.mrb[0].mxu0 %v3038
    %v3106 = vpop.f32.mrb[0].mxu0
    %v3107 = vadd.f32 %v3034, %v3106
    %v3108 = vpop.f32.mrb[0].mxu0
    %3109 = vdwg.mxu0
    %v3110 = vld [vmem:[%s4] sm:$0x1]
    %v3112 = vlaneseq
    %v3113 = vshrl.u32 %v3112, 7
    %v3114 = vsub.s32 0, %v3113
    %v3115 = vrot.slane %v3110, %v3114
    %v3117 = vadd.f32 %v3107, %v3115
    %v3118 = vxor.u32 %v3117, 2147483648
    %v3119 = vmul.f32 %v3118, 1.442695
    %v3120 = vpow.pop %v3119
    %v3121 = vadd.f32 %v3120, 1.0
    %v3122 = vrcp.pop %v3121
    %v3123 = vmul.f32 1.0, %v3122
    %v3124 = vtanh.pop %v3117
    %v3125 = vmul.f32 %v3123, %v2581
    %3127 = vrot.lane.b32.xlu0 %v3124, 64
    %v3128 = vpop.permute.xlu0 %3127
    %v3130 = vmul.f32 %v3123, %v3128
    %3132 = vrot.lane.b32.xlu0 %v3130, 32
    %v3133 = vpop.permute.xlu0 %3132
    %v3135 = vadd.f32 %v3125, %v3133
    %v3136 = vtanh.pop %v3135
    %3138 = vrot.lane.b32.xlu0 %v3136, 64
    %v3139 = vpop.permute.xlu0 %3138
    %v3141 = vmul.f32 %v3123, %v3139
    %v3142 = vld [vmem:[%s363] sm:$0xff]
    %v3143 = vld [vmem:[%s363 + $0x8] sm:$0xff]
    %v3144 = vld [vmem:[%s363 + $0x10] sm:$0xff]
    %v3145 = vld [vmem:[%s363 + $0x18] sm:$0xff]
    %v3146 = vld [vmem:[%s368] sm:$0xff]
    %v3147 = vld [vmem:[%s368 + $0x8] sm:$0xff]
    %v3148 = vld [vmem:[%s368 + $0x10] sm:$0xff]
    %v3149 = vld [vmem:[%s368 + $0x18] sm:$0xff]
    %3150 = vmatprep.subr.mxu0 0.0
    %3151 = vmatpush1.msra.mxu0 %v3146
    %3152 = vmatprep.subr.mxu0 0.0
    %3153 = vmatpush1.msra.mxu0 %v3147
    %3154 = vmatprep.subr.mxu0 0.0
    %3155 = vmatpush1.msra.mxu0 %v3148
    %3156 = vmatprep.subr.mxu0 0.0
    %3157 = vmatpush1.msra.mxu0 %v3149
    %3158 = vmatprep.subr.mxu0 0.0
    %3159 = vmatpush1.msra.mxu0 0.0
    %3160 = vmatprep.subr.mxu0 0.0
    %3161 = vmatpush1.msra.mxu0 0.0
    %3162 = vmatprep.subr.mxu0 0.0
    %3163 = vmatpush1.msra.mxu0 0.0
    %3164 = vmatprep.subr.mxu0 0.0
    %3165 = vmatpush1.msra.mxu0 0.0
    %3166 = vmatprep.subr.mxu0 0.0
    %3167 = vmatpush1.msra.mxu0 0.0
    %3168 = vmatprep.subr.mxu0 0.0
    %3169 = vmatpush1.msra.mxu0 0.0
    %3170 = vmatprep.subr.mxu0 0.0
    %3171 = vmatpush1.msra.mxu0 0.0
    %3172 = vmatprep.subr.mxu0 0.0
    %3173 = vmatpush1.msra.mxu0 0.0
    %3174 = vmatprep.subr.mxu0 0.0
    %3175 = vmatpush1.msra.mxu0 0.0
    %3176 = vmatprep.subr.mxu0 0.0
    %3177 = vmatpush1.msra.mxu0 0.0
    %3178 = vmatprep.subr.mxu0 0.0
    %3179 = vmatpush1.msra.mxu0 0.0
    %3180 = vmatprep.subr.mxu0 0.0
    %3181 = vmatpush1.msra.mxu0 0.0
    %3182 = vmatprep.subr.mxu0 0.0
    %3183 = vmatpush1.msra.mxu0 0.0
    %3184 = vmatprep.subr.mxu0 0.0
    %3185 = vmatpush1.msra.mxu0 0.0
    %3186 = vmatprep.subr.mxu0 0.0
    %3187 = vmatpush1.msra.mxu0 0.0
    %3188 = vmatprep.subr.mxu0 0.0
    %3189 = vmatpush1.msra.mxu0 0.0
    %3190 = vmatprep.subr.mxu0 0.0
    %3191 = vmatpush1.msra.mxu0 0.0
    %3192 = vmatprep.subr.mxu0 0.0
    %3193 = vmatpush1.msra.mxu0 0.0
    %3194 = vmatprep.subr.mxu0 0.0
    %3195 = vmatpush1.msra.mxu0 0.0
    %3196 = vmatprep.subr.mxu0 0.0
    %3197 = vmatpush1.msra.mxu0 0.0
    %3198 = vmatprep.subr.mxu0 0.0
    %3199 = vmatpush1.msra.mxu0 0.0
    %3200 = vmatprep.subr.mxu0 0.0
    %3201 = vmatpush1.msra.mxu0 0.0
    %3202 = vmatprep.subr.mxu0 0.0
    %3203 = vmatpush1.msra.mxu0 0.0
    %3204 = vmatprep.subr.mxu0 0.0
    %3205 = vmatpush1.msra.mxu0 0.0
    %3206 = vmatprep.subr.mxu0 0.0
    %3207 = vmatpush1.msra.mxu0 0.0
    %3208 = vmatprep.subr.mxu0 0.0
    %3209 = vmatpush1.msra.mxu0 0.0
    %3210 = vmatprep.subr.mxu0 0.0
    %3211 = vmatpush1.msra.mxu0 0.0
    %3212 = vmatprep.subr.mxu0 0.0
    %3213 = vmatpush1.msra.mxu0 0.0
    %3214 = vmatprep.mubr.f32.mxu0 0.0
    %3215 = vmatmul.mubr.f32.gmra.mrb[0].mxu0 %v2787
    %v3216 = vpop.f32.mrb[0].mxu0
    %v3217 = vadd.f32 0.0, %v3216
    %v3218 = vpop.f32.mrb[0].mxu0
    %3219 = vdwg.mxu0
    %3221 = vrot.lane.b32.xlu0 %v3141, 32
    %v3222 = vpop.permute.xlu0 %3221
    %v3223 = vsel %vm180, %v3222, 0
    %3225 = vmatprep.subr.mxu0 0.0
    %3226 = vmatpush1.msra.mxu0 %v3142
    %3227 = vmatprep.subr.mxu0 0.0
    %3228 = vmatpush1.msra.mxu0 %v3143
    %3229 = vmatprep.subr.mxu0 0.0
    %3230 = vmatpush1.msra.mxu0 %v3144
    %3231 = vmatprep.subr.mxu0 0.0
    %3232 = vmatpush1.msra.mxu0 %v3145
    %3233 = vmatprep.subr.mxu0 0.0
    %3234 = vmatpush1.msra.mxu0 0.0
    %3235 = vmatprep.subr.mxu0 0.0
    %3236 = vmatpush1.msra.mxu0 0.0
    %3237 = vmatprep.subr.mxu0 0.0
    %3238 = vmatpush1.msra.mxu0 0.0
    %3239 = vmatprep.subr.mxu0 0.0
    %3240 = vmatpush1.msra.mxu0 0.0
    %3241 = vmatprep.subr.mxu0 0.0
    %3242 = vmatpush1.msra.mxu0 0.0
    %3243 = vmatprep.subr.mxu0 0.0
    %3244 = vmatpush1.msra.mxu0 0.0
    %3245 = vmatprep.subr.mxu0 0.0
    %3246 = vmatpush1.msra.mxu0 0.0
    %3247 = vmatprep.subr.mxu0 0.0
    %3248 = vmatpush1.msra.mxu0 0.0
    %3249 = vmatprep.subr.mxu0 0.0
    %3250 = vmatpush1.msra.mxu0 0.0
    %3251 = vmatprep.subr.mxu0 0.0
    %3252 = vmatpush1.msra.mxu0 0.0
    %3253 = vmatprep.subr.mxu0 0.0
    %3254 = vmatpush1.msra.mxu0 0.0
    %3255 = vmatprep.subr.mxu0 0.0
    %3256 = vmatpush1.msra.mxu0 0.0
    %3257 = vmatprep.subr.mxu0 0.0
    %3258 = vmatpush1.msra.mxu0 0.0
    %3259 = vmatprep.subr.mxu0 0.0
    %3260 = vmatpush1.msra.mxu0 0.0
    %3261 = vmatprep.subr.mxu0 0.0
    %3262 = vmatpush1.msra.mxu0 0.0
    %3263 = vmatprep.subr.mxu0 0.0
    %3264 = vmatpush1.msra.mxu0 0.0
    %3265 = vmatprep.subr.mxu0 0.0
    %3266 = vmatpush1.msra.mxu0 0.0
    %3267 = vmatprep.subr.mxu0 0.0
    %3268 = vmatpush1.msra.mxu0 0.0
    %3269 = vmatprep.subr.mxu0 0.0
    %3270 = vmatpush1.msra.mxu0 0.0
    %3271 = vmatprep.subr.mxu0 0.0
    %3272 = vmatpush1.msra.mxu0 0.0
    %3273 = vmatprep.subr.mxu0 0.0
    %3274 = vmatpush1.msra.mxu0 0.0
    %3275 = vmatprep.subr.mxu0 0.0
    %3276 = vmatpush1.msra.mxu0 0.0
    %3277 = vmatprep.subr.mxu0 0.0
    %3278 = vmatpush1.msra.mxu0 0.0
    %3279 = vmatprep.subr.mxu0 0.0
    %3280 = vmatpush1.msra.mxu0 0.0
    %3281 = vmatprep.subr.mxu0 0.0
    %3282 = vmatpush1.msra.mxu0 0.0
    %3283 = vmatprep.subr.mxu0 0.0
    %3284 = vmatpush1.msra.mxu0 0.0
    %3285 = vmatprep.subr.mxu0 0.0
    %3286 = vmatpush1.msra.mxu0 0.0
    %3287 = vmatprep.subr.mxu0 0.0
    %3288 = vmatpush1.msra.mxu0 0.0
    %3289 = vmatprep.mubr.f32.mxu0 0.0
    %3290 = vmatmul.mubr.f32.gmra.mrb[0].mxu0 %v3223
    %v3291 = vpop.f32.mrb[0].mxu0
    %v3292 = vadd.f32 %v3217, %v3291
    %v3293 = vpop.f32.mrb[0].mxu0
    %3294 = vdwg.mxu0
    %v3295 = vld [vmem:[%s521] sm:$0x1]
    %v3297 = vlaneseq
    %v3298 = vshrl.u32 %v3297, 7
    %v3299 = vsub.s32 0, %v3298
    %v3300 = vrot.slane %v3295, %v3299
    %v3302 = vadd.f32 %v3292, %v3300
    %v3303 = vxor.u32 %v3302, 2147483648
    %v3304 = vmul.f32 %v3303, 1.442695
    %v3305 = vpow.pop %v3304
    %v3306 = vadd.f32 %v3305, 1.0
    %v3307 = vrcp.pop %v3306
    %v3308 = vmul.f32 1.0, %v3307
    %v3309 = vtanh.pop %v3302
    %v3310 = vmul.f32 %v3308, %v2766
    %3312 = vrot.lane.b32.xlu0 %v3309, 64
    %v3313 = vpop.permute.xlu0 %3312
    %v3315 = vmul.f32 %v3308, %v3313
    %3317 = vrot.lane.b32.xlu0 %v3315, 32
    %v3318 = vpop.permute.xlu0 %3317
    %v3320 = vadd.f32 %v3310, %v3318
    %v3321 = vtanh.pop %v3320
    %3323 = vrot.lane.b32.xlu0 %v3321, 64
    %v3324 = vpop.permute.xlu0 %3323
    %v3326 = vmul.f32 %v3308, %v3324
    %v3327 = vld [vmem:[%s5] sm:$0xff]
    %v3328 = vld [vmem:[%s5 + $0x8] sm:$0xff]
    %v3329 = vld [vmem:[%s5 + $0x10] sm:$0xff]
    %v3330 = vld [vmem:[%s5 + $0x18] sm:$0xff]
    %v3331 = vld [vmem:[%s6] sm:$0x1]
    %v3333 = vlaneseq
    %v3334 = vshrl.u32 %v3333, 7
    %v3335 = vsub.s32 0, %v3334
    %v3336 = vrot.slane %v3331, %v3335
    %3339 = vrot.lane.b32.xlu0 %v3326, 32
    %v3340 = vpop.permute.xlu0 %3339
    %v3341 = vsel %vm180, %v3340, 0
    %3343 = vmatprep.subr.mxu0 0.0
    %3344 = vmatpush1.msra.mxu0 %v3327
    %3345 = vmatprep.subr.mxu0 0.0
    %3346 = vmatpush1.msra.mxu0 %v3328
    %3347 = vmatprep.subr.mxu0 0.0
    %3348 = vmatpush1.msra.mxu0 %v3329
    %3349 = vmatprep.subr.mxu0 0.0
    %3350 = vmatpush1.msra.mxu0 %v3330
    %3351 = vmatprep.subr.mxu0 0.0
    %3352 = vmatpush1.msra.mxu0 0.0
    %3353 = vmatprep.subr.mxu0 0.0
    %3354 = vmatpush1.msra.mxu0 0.0
    %3355 = vmatprep.subr.mxu0 0.0
    %3356 = vmatpush1.msra.mxu0 0.0
    %3357 = vmatprep.subr.mxu0 0.0
    %3358 = vmatpush1.msra.mxu0 0.0
    %3359 = vmatprep.subr.mxu0 0.0
    %3360 = vmatpush1.msra.mxu0 0.0
    %3361 = vmatprep.subr.mxu0 0.0
    %3362 = vmatpush1.msra.mxu0 0.0
    %3363 = vmatprep.subr.mxu0 0.0
    %3364 = vmatpush1.msra.mxu0 0.0
    %3365 = vmatprep.subr.mxu0 0.0
    %3366 = vmatpush1.msra.mxu0 0.0
    %3367 = vmatprep.subr.mxu0 0.0
    %3368 = vmatpush1.msra.mxu0 0.0
    %3369 = vmatprep.subr.mxu0 0.0
    %3370 = vmatpush1.msra.mxu0 0.0
    %3371 = vmatprep.subr.mxu0 0.0
    %3372 = vmatpush1.msra.mxu0 0.0
    %3373 = vmatprep.subr.mxu0 0.0
    %3374 = vmatpush1.msra.mxu0 0.0
    %3375 = vmatprep.subr.mxu0 0.0
    %3376 = vmatpush1.msra.mxu0 0.0
    %3377 = vmatprep.subr.mxu0 0.0
    %3378 = vmatpush1.msra.mxu0 0.0
    %3379 = vmatprep.subr.mxu0 0.0
    %3380 = vmatpush1.msra.mxu0 0.0
    %3381 = vmatprep.subr.mxu0 0.0
    %3382 = vmatpush1.msra.mxu0 0.0
    %3383 = vmatprep.subr.mxu0 0.0
    %3384 = vmatpush1.msra.mxu0 0.0
    %3385 = vmatprep.subr.mxu0 0.0
    %3386 = vmatpush1.msra.mxu0 0.0
    %3387 = vmatprep.subr.mxu0 0.0
    %3388 = vmatpush1.msra.mxu0 0.0
    %3389 = vmatprep.subr.mxu0 0.0
    %3390 = vmatpush1.msra.mxu0 0.0
    %3391 = vmatprep.subr.mxu0 0.0
    %3392 = vmatpush1.msra.mxu0 0.0
    %3393 = vmatprep.subr.mxu0 0.0
    %3394 = vmatpush1.msra.mxu0 0.0
    %3395 = vmatprep.subr.mxu0 0.0
    %3396 = vmatpush1.msra.mxu0 0.0
    %3397 = vmatprep.subr.mxu0 0.0
    %3398 = vmatpush1.msra.mxu0 0.0
    %3399 = vmatprep.subr.mxu0 0.0
    %3400 = vmatpush1.msra.mxu0 0.0
    %3401 = vmatprep.subr.mxu0 0.0
    %3402 = vmatpush1.msra.mxu0 0.0
    %3403 = vmatprep.subr.mxu0 0.0
    %3404 = vmatpush1.msra.mxu0 0.0
    %3405 = vmatprep.subr.mxu0 0.0
    %3406 = vmatpush1.msra.mxu0 0.0
    %3407 = vmatprep.mubr.f32.mxu0 0.0
    %3408 = vmatmul.mubr.f32.gmra.mrb[0].mxu0 %v3341
    %v3409 = vpop.f32.mrb[0].mxu0
    %v3410 = vadd.f32 %v3336, %v3409
    %v3411 = vpop.f32.mrb[0].mxu0
    %3412 = vdwg.mxu0
    %s3413 = scalar_lea.vmem [#allocation7], 40
    %3414 = vst [vmem:[%s3413] sm:$0xff] %v3410
    %s3415 = sld [smem:[#allocation2 + $0xc]]
    %v3416 = vstv %s3415
    %vm3417 = vcmp.eq.s32.totalorder %v65, %v3416
    %vm3418 = vmand %vm73, %vm3417
    %v3419 = vsel %vm3418, 1.0, 0.0
    %v3420 = vadd.f32 %v3419, 0.0
    %s3421 = sld [smem:[#allocation2 + $0xd]]
    %v3422 = vstv %s3421
    %vm3423 = vcmp.eq.s32.totalorder %v65, %v3422
    %vm3424 = vmand %vm80, %vm3423
    %v3425 = vsel %vm3424, 1.0, 0.0
    %v3426 = vadd.f32 %v3420, %v3425
    %v3427 = vld [vmem:[%s1] sm:$0xff]
    %v3428 = vld [vmem:[%s1 + $0x8] sm:$0xff]
    %v3429 = vld [vmem:[%s1 + $0x10] sm:$0xff]
    %v3430 = vld [vmem:[%s1 + $0x18] sm:$0xff]
    %v3431 = vld [vmem:[%s1 + $0x20] sm:$0xff]
    %v3432 = vld [vmem:[%s1 + $0x28] sm:$0xff]
    %v3433 = vld [vmem:[%s1 + $0x30] sm:$0xff]
    %v3434 = vld [vmem:[%s1 + $0x38] sm:$0xff]
    %v3435 = vld [vmem:[%s1 + $0x40] sm:$0xff]
    %v3436 = vld [vmem:[%s1 + $0x48] sm:$0xff]
    %v3437 = vld [vmem:[%s1 + $0x50] sm:$0xff]
    %v3438 = vld [vmem:[%s1 + $0x58] sm:$0xff]
    %v3439 = vld [vmem:[%s1 + $0x60] sm:$0xff]
    %v3440 = vld [vmem:[%s1 + $0x68] sm:$0xff]
    %v3441 = vld [vmem:[%s1 + $0x70] sm:$0xff]
    %v3442 = vld [vmem:[%s1 + $0x78] sm:$0xff]
    %3443 = vmatprep.subr.mxu0 0.0
    %3444 = vmatpush1.msra.mxu0 %v3427
    %3445 = vmatprep.subr.mxu0 0.0
    %3446 = vmatpush1.msra.mxu0 %v3428
    %3447 = vmatprep.subr.mxu0 0.0
    %3448 = vmatpush1.msra.mxu0 %v3429
    %3449 = vmatprep.subr.mxu0 0.0
    %3450 = vmatpush1.msra.mxu0 %v3430
    %3451 = vmatprep.subr.mxu0 0.0
    %3452 = vmatpush1.msra.mxu0 %v3431
    %3453 = vmatprep.subr.mxu0 0.0
    %3454 = vmatpush1.msra.mxu0 %v3432
    %3455 = vmatprep.subr.mxu0 0.0
    %3456 = vmatpush1.msra.mxu0 %v3433
    %3457 = vmatprep.subr.mxu0 0.0
    %3458 = vmatpush1.msra.mxu0 %v3434
    %3459 = vmatprep.subr.mxu0 0.0
    %3460 = vmatpush1.msra.mxu0 %v3435
    %3461 = vmatprep.subr.mxu0 0.0
    %3462 = vmatpush1.msra.mxu0 %v3436
    %3463 = vmatprep.subr.mxu0 0.0
    %3464 = vmatpush1.msra.mxu0 %v3437
    %3465 = vmatprep.subr.mxu0 0.0
    %3466 = vmatpush1.msra.mxu0 %v3438
    %3467 = vmatprep.subr.mxu0 0.0
    %3468 = vmatpush1.msra.mxu0 %v3439
    %3469 = vmatprep.subr.mxu0 0.0
    %3470 = vmatpush1.msra.mxu0 %v3440
    %3471 = vmatprep.subr.mxu0 0.0
    %3472 = vmatpush1.msra.mxu0 %v3441
    %3473 = vmatprep.subr.mxu0 0.0
    %3474 = vmatpush1.msra.mxu0 %v3442
    %3475 = vmatprep.subr.mxu0 0.0
    %3476 = vmatpush1.msra.mxu0 0.0
    %3477 = vmatprep.subr.mxu0 0.0
    %3478 = vmatpush1.msra.mxu0 0.0
    %3479 = vmatprep.subr.mxu0 0.0
    %3480 = vmatpush1.msra.mxu0 0.0
    %3481 = vmatprep.subr.mxu0 0.0
    %3482 = vmatpush1.msra.mxu0 0.0
    %3483 = vmatprep.subr.mxu0 0.0
    %3484 = vmatpush1.msra.mxu0 0.0
    %3485 = vmatprep.subr.mxu0 0.0
    %3486 = vmatpush1.msra.mxu0 0.0
    %3487 = vmatprep.subr.mxu0 0.0
    %3488 = vmatpush1.msra.mxu0 0.0
    %3489 = vmatprep.subr.mxu0 0.0
    %3490 = vmatpush1.msra.mxu0 0.0
    %3491 = vmatprep.subr.mxu0 0.0
    %3492 = vmatpush1.msra.mxu0 0.0
    %3493 = vmatprep.subr.mxu0 0.0
    %3494 = vmatpush1.msra.mxu0 0.0
    %3495 = vmatprep.subr.mxu0 0.0
    %3496 = vmatpush1.msra.mxu0 0.0
    %3497 = vmatprep.subr.mxu0 0.0
    %3498 = vmatpush1.msra.mxu0 0.0
    %3499 = vmatprep.subr.mxu0 0.0
    %3500 = vmatpush1.msra.mxu0 0.0
    %3501 = vmatprep.subr.mxu0 0.0
    %3502 = vmatpush1.msra.mxu0 0.0
    %3503 = vmatprep.subr.mxu0 0.0
    %3504 = vmatpush1.msra.mxu0 0.0
    %3505 = vmatprep.subr.mxu0 0.0
    %3506 = vmatpush1.msra.mxu0 0.0
    %3507 = vmatprep.mubr.f32.mxu0 0.0
    %3508 = vmatmul.mubr.f32.gmra.mrb[0].mxu0 %v3426
    %v3509 = vpop.f32.mrb[0].mxu0
    %v3510 = vadd.f32 0.0, %v3509
    %v3511 = vpop.f32.mrb[0].mxu0
    %3512 = vdwg.mxu0
    %v3513 = vld [vmem:[%s2] sm:$0xff]
    %v3514 = vld [vmem:[%s2 + $0x8] sm:$0xff]
    %v3515 = vld [vmem:[%s2 + $0x10] sm:$0xff]
    %v3516 = vld [vmem:[%s2 + $0x18] sm:$0xff]
    %v3517 = vld [vmem:[%s3] sm:$0xff]
    %v3518 = vld [vmem:[%s3 + $0x8] sm:$0xff]
    %v3519 = vld [vmem:[%s3 + $0x10] sm:$0xff]
    %v3520 = vld [vmem:[%s3 + $0x18] sm:$0xff]
    %3521 = vmatprep.subr.mxu0 0.0
    %3522 = vmatpush1.msra.mxu0 %v3517
    %3523 = vmatprep.subr.mxu0 0.0
    %3524 = vmatpush1.msra.mxu0 %v3518
    %3525 = vmatprep.subr.mxu0 0.0
    %3526 = vmatpush1.msra.mxu0 %v3519
    %3527 = vmatprep.subr.mxu0 0.0
    %3528 = vmatpush1.msra.mxu0 %v3520
    %3529 = vmatprep.subr.mxu0 0.0
    %3530 = vmatpush1.msra.mxu0 0.0
    %3531 = vmatprep.subr.mxu0 0.0
    %3532 = vmatpush1.msra.mxu0 0.0
    %3533 = vmatprep.subr.mxu0 0.0
    %3534 = vmatpush1.msra.mxu0 0.0
    %3535 = vmatprep.subr.mxu0 0.0
    %3536 = vmatpush1.msra.mxu0 0.0
    %3537 = vmatprep.subr.mxu0 0.0
    %3538 = vmatpush1.msra.mxu0 0.0
    %3539 = vmatprep.subr.mxu0 0.0
    %3540 = vmatpush1.msra.mxu0 0.0
    %3541 = vmatprep.subr.mxu0 0.0
    %3542 = vmatpush1.msra.mxu0 0.0
    %3543 = vmatprep.subr.mxu0 0.0
    %3544 = vmatpush1.msra.mxu0 0.0
    %3545 = vmatprep.subr.mxu0 0.0
    %3546 = vmatpush1.msra.mxu0 0.0
    %3547 = vmatprep.subr.mxu0 0.0
    %3548 = vmatpush1.msra.mxu0 0.0
    %3549 = vmatprep.subr.mxu0 0.0
    %3550 = vmatpush1.msra.mxu0 0.0
    %3551 = vmatprep.subr.mxu0 0.0
    %3552 = vmatpush1.msra.mxu0 0.0
    %3553 = vmatprep.subr.mxu0 0.0
    %3554 = vmatpush1.msra.mxu0 0.0
    %3555 = vmatprep.subr.mxu0 0.0
    %3556 = vmatpush1.msra.mxu0 0.0
    %3557 = vmatprep.subr.mxu0 0.0
    %3558 = vmatpush1.msra.mxu0 0.0
    %3559 = vmatprep.subr.mxu0 0.0
    %3560 = vmatpush1.msra.mxu0 0.0
    %3561 = vmatprep.subr.mxu0 0.0
    %3562 = vmatpush1.msra.mxu0 0.0
    %3563 = vmatprep.subr.mxu0 0.0
    %3564 = vmatpush1.msra.mxu0 0.0
    %3565 = vmatprep.subr.mxu0 0.0
    %3566 = vmatpush1.msra.mxu0 0.0
    %3567 = vmatprep.subr.mxu0 0.0
    %3568 = vmatpush1.msra.mxu0 0.0
    %3569 = vmatprep.subr.mxu0 0.0
    %3570 = vmatpush1.msra.mxu0 0.0
    %3571 = vmatprep.subr.mxu0 0.0
    %3572 = vmatpush1.msra.mxu0 0.0
    %3573 = vmatprep.subr.mxu0 0.0
    %3574 = vmatpush1.msra.mxu0 0.0
    %3575 = vmatprep.subr.mxu0 0.0
    %3576 = vmatpush1.msra.mxu0 0.0
    %3577 = vmatprep.subr.mxu0 0.0
    %3578 = vmatpush1.msra.mxu0 0.0
    %3579 = vmatprep.subr.mxu0 0.0
    %3580 = vmatpush1.msra.mxu0 0.0
    %3581 = vmatprep.subr.mxu0 0.0
    %3582 = vmatpush1.msra.mxu0 0.0
    %3583 = vmatprep.subr.mxu0 0.0
    %3584 = vmatpush1.msra.mxu0 0.0
    %3585 = vmatprep.mubr.f32.mxu0 0.0
    %3586 = vmatmul.mubr.f32.gmra.mrb[0].mxu0 %v3223
    %v3587 = vpop.f32.mrb[0].mxu0
    %v3588 = vadd.f32 0.0, %v3587
    %v3589 = vpop.f32.mrb[0].mxu0
    %3590 = vdwg.mxu0
    %v3592 = vsel %vm180, %v3510, 0
    %3594 = vmatprep.subr.mxu0 0.0
    %3595 = vmatpush1.msra.mxu0 %v3513
    %3596 = vmatprep.subr.mxu0 0.0
    %3597 = vmatpush1.msra.mxu0 %v3514
    %3598 = vmatprep.subr.mxu0 0.0
    %3599 = vmatpush1.msra.mxu0 %v3515
    %3600 = vmatprep.subr.mxu0 0.0
    %3601 = vmatpush1.msra.mxu0 %v3516
    %3602 = vmatprep.subr.mxu0 0.0
    %3603 = vmatpush1.msra.mxu0 0.0
    %3604 = vmatprep.subr.mxu0 0.0
    %3605 = vmatpush1.msra.mxu0 0.0
    %3606 = vmatprep.subr.mxu0 0.0
    %3607 = vmatpush1.msra.mxu0 0.0
    %3608 = vmatprep.subr.mxu0 0.0
    %3609 = vmatpush1.msra.mxu0 0.0
    %3610 = vmatprep.subr.mxu0 0.0
    %3611 = vmatpush1.msra.mxu0 0.0
    %3612 = vmatprep.subr.mxu0 0.0
    %3613 = vmatpush1.msra.mxu0 0.0
    %3614 = vmatprep.subr.mxu0 0.0
    %3615 = vmatpush1.msra.mxu0 0.0
    %3616 = vmatprep.subr.mxu0 0.0
    %3617 = vmatpush1.msra.mxu0 0.0
    %3618 = vmatprep.subr.mxu0 0.0
    %3619 = vmatpush1.msra.mxu0 0.0
    %3620 = vmatprep.subr.mxu0 0.0
    %3621 = vmatpush1.msra.mxu0 0.0
    %3622 = vmatprep.subr.mxu0 0.0
    %3623 = vmatpush1.msra.mxu0 0.0
    %3624 = vmatprep.subr.mxu0 0.0
    %3625 = vmatpush1.msra.mxu0 0.0
    %3626 = vmatprep.subr.mxu0 0.0
    %3627 = vmatpush1.msra.mxu0 0.0
    %3628 = vmatprep.subr.mxu0 0.0
    %3629 = vmatpush1.msra.mxu0 0.0
    %3630 = vmatprep.subr.mxu0 0.0
    %3631 = vmatpush1.msra.mxu0 0.0
    %3632 = vmatprep.subr.mxu0 0.0
    %3633 = vmatpush1.msra.mxu0 0.0
    %3634 = vmatprep.subr.mxu0 0.0
    %3635 = vmatpush1.msra.mxu0 0.0
    %3636 = vmatprep.subr.mxu0 0.0
    %3637 = vmatpush1.msra.mxu0 0.0
    %3638 = vmatprep.subr.mxu0 0.0
    %3639 = vmatpush1.msra.mxu0 0.0
    %3640 = vmatprep.subr.mxu0 0.0
    %3641 = vmatpush1.msra.mxu0 0.0
    %3642 = vmatprep.subr.mxu0 0.0
    %3643 = vmatpush1.msra.mxu0 0.0
    %3644 = vmatprep.subr.mxu0 0.0
    %3645 = vmatpush1.msra.mxu0 0.0
    %3646 = vmatprep.subr.mxu0 0.0
    %3647 = vmatpush1.msra.mxu0 0.0
    %3648 = vmatprep.subr.mxu0 0.0
    %3649 = vmatpush1.msra.mxu0 0.0
    %3650 = vmatprep.subr.mxu0 0.0
    %3651 = vmatpush1.msra.mxu0 0.0
    %3652 = vmatprep.subr.mxu0 0.0
    %3653 = vmatpush1.msra.mxu0 0.0
    %3654 = vmatprep.subr.mxu0 0.0
    %3655 = vmatpush1.msra.mxu0 0.0
    %3656 = vmatprep.subr.mxu0 0.0
    %3657 = vmatpush1.msra.mxu0 0.0
    %3658 = vmatprep.mubr.f32.mxu0 0.0
    %3659 = vmatmul.mubr.f32.gmra.mrb[0].mxu0 %v3592
    %v3660 = vpop.f32.mrb[0].mxu0
    %v3661 = vadd.f32 %v3588, %v3660
    %v3662 = vpop.f32.mrb[0].mxu0
    %3663 = vdwg.mxu0
    %v3664 = vld [vmem:[%s4] sm:$0x1]
    %v3666 = vlaneseq
    %v3667 = vshrl.u32 %v3666, 7
    %v3668 = vsub.s32 0, %v3667
    %v3669 = vrot.slane %v3664, %v3668
    %v3671 = vadd.f32 %v3661, %v3669
    %v3672 = vxor.u32 %v3671, 2147483648
    %v3673 = vmul.f32 %v3672, 1.442695
    %v3674 = vpow.pop %v3673
    %v3675 = vadd.f32 %v3674, 1.0
    %v3676 = vrcp.pop %v3675
    %v3677 = vmul.f32 1.0, %v3676
    %v3678 = vtanh.pop %v3671
    %v3679 = vmul.f32 %v3677, %v3135
    %3681 = vrot.lane.b32.xlu0 %v3678, 64
    %v3682 = vpop.permute.xlu0 %3681
    %v3684 = vmul.f32 %v3677, %v3682
    %3686 = vrot.lane.b32.xlu0 %v3684, 32
    %v3687 = vpop.permute.xlu0 %3686
    %v3689 = vadd.f32 %v3679, %v3687
    %v3690 = vtanh.pop %v3689
    %3692 = vrot.lane.b32.xlu0 %v3690, 64
    %v3693 = vpop.permute.xlu0 %3692
    %v3695 = vmul.f32 %v3677, %v3693
    %v3696 = vld [vmem:[%s363] sm:$0xff]
    %v3697 = vld [vmem:[%s363 + $0x8] sm:$0xff]
    %v3698 = vld [vmem:[%s363 + $0x10] sm:$0xff]
    %v3699 = vld [vmem:[%s363 + $0x18] sm:$0xff]
    %v3700 = vld [vmem:[%s368] sm:$0xff]
    %v3701 = vld [vmem:[%s368 + $0x8] sm:$0xff]
    %v3702 = vld [vmem:[%s368 + $0x10] sm:$0xff]
    %v3703 = vld [vmem:[%s368 + $0x18] sm:$0xff]
    %3704 = vmatprep.subr.mxu0 0.0
    %3705 = vmatpush1.msra.mxu0 %v3700
    %3706 = vmatprep.subr.mxu0 0.0
    %3707 = vmatpush1.msra.mxu0 %v3701
    %3708 = vmatprep.subr.mxu0 0.0
    %3709 = vmatpush1.msra.mxu0 %v3702
    %3710 = vmatprep.subr.mxu0 0.0
    %3711 = vmatpush1.msra.mxu0 %v3703
    %3712 = vmatprep.subr.mxu0 0.0
    %3713 = vmatpush1.msra.mxu0 0.0
    %3714 = vmatprep.subr.mxu0 0.0
    %3715 = vmatpush1.msra.mxu0 0.0
    %3716 = vmatprep.subr.mxu0 0.0
    %3717 = vmatpush1.msra.mxu0 0.0
    %3718 = vmatprep.subr.mxu0 0.0
    %3719 = vmatpush1.msra.mxu0 0.0
    %3720 = vmatprep.subr.mxu0 0.0
    %3721 = vmatpush1.msra.mxu0 0.0
    %3722 = vmatprep.subr.mxu0 0.0
    %3723 = vmatpush1.msra.mxu0 0.0
    %3724 = vmatprep.subr.mxu0 0.0
    %3725 = vmatpush1.msra.mxu0 0.0
    %3726 = vmatprep.subr.mxu0 0.0
    %3727 = vmatpush1.msra.mxu0 0.0
    %3728 = vmatprep.subr.mxu0 0.0
    %3729 = vmatpush1.msra.mxu0 0.0
    %3730 = vmatprep.subr.mxu0 0.0
    %3731 = vmatpush1.msra.mxu0 0.0
    %3732 = vmatprep.subr.mxu0 0.0
    %3733 = vmatpush1.msra.mxu0 0.0
    %3734 = vmatprep.subr.mxu0 0.0
    %3735 = vmatpush1.msra.mxu0 0.0
    %3736 = vmatprep.subr.mxu0 0.0
    %3737 = vmatpush1.msra.mxu0 0.0
    %3738 = vmatprep.subr.mxu0 0.0
    %3739 = vmatpush1.msra.mxu0 0.0
    %3740 = vmatprep.subr.mxu0 0.0
    %3741 = vmatpush1.msra.mxu0 0.0
    %3742 = vmatprep.subr.mxu0 0.0
    %3743 = vmatpush1.msra.mxu0 0.0
    %3744 = vmatprep.subr.mxu0 0.0
    %3745 = vmatpush1.msra.mxu0 0.0
    %3746 = vmatprep.subr.mxu0 0.0
    %3747 = vmatpush1.msra.mxu0 0.0
    %3748 = vmatprep.subr.mxu0 0.0
    %3749 = vmatpush1.msra.mxu0 0.0
    %3750 = vmatprep.subr.mxu0 0.0
    %3751 = vmatpush1.msra.mxu0 0.0
    %3752 = vmatprep.subr.mxu0 0.0
    %3753 = vmatpush1.msra.mxu0 0.0
    %3754 = vmatprep.subr.mxu0 0.0
    %3755 = vmatpush1.msra.mxu0 0.0
    %3756 = vmatprep.subr.mxu0 0.0
    %3757 = vmatpush1.msra.mxu0 0.0
    %3758 = vmatprep.subr.mxu0 0.0
    %3759 = vmatpush1.msra.mxu0 0.0
    %3760 = vmatprep.subr.mxu0 0.0
    %3761 = vmatpush1.msra.mxu0 0.0
    %3762 = vmatprep.subr.mxu0 0.0
    %3763 = vmatpush1.msra.mxu0 0.0
    %3764 = vmatprep.subr.mxu0 0.0
    %3765 = vmatpush1.msra.mxu0 0.0
    %3766 = vmatprep.subr.mxu0 0.0
    %3767 = vmatpush1.msra.mxu0 0.0
    %3768 = vmatprep.mubr.f32.mxu0 0.0
    %3769 = vmatmul.mubr.f32.gmra.mrb[0].mxu0 %v3341
    %v3770 = vpop.f32.mrb[0].mxu0
    %v3771 = vadd.f32 0.0, %v3770
    %v3772 = vpop.f32.mrb[0].mxu0
    %3773 = vdwg.mxu0
    %3775 = vrot.lane.b32.xlu0 %v3695, 32
    %v3776 = vpop.permute.xlu0 %3775
    %v3777 = vsel %vm180, %v3776, 0
    %3779 = vmatprep.subr.mxu0 0.0
    %3780 = vmatpush1.msra.mxu0 %v3696
    %3781 = vmatprep.subr.mxu0 0.0
    %3782 = vmatpush1.msra.mxu0 %v3697
    %3783 = vmatprep.subr.mxu0 0.0
    %3784 = vmatpush1.msra.mxu0 %v3698
    %3785 = vmatprep.subr.mxu0 0.0
    %3786 = vmatpush1.msra.mxu0 %v3699
    %3787 = vmatprep.subr.mxu0 0.0
    %3788 = vmatpush1.msra.mxu0 0.0
    %3789 = vmatprep.subr.mxu0 0.0
    %3790 = vmatpush1.msra.mxu0 0.0
    %3791 = vmatprep.subr.mxu0 0.0
    %3792 = vmatpush1.msra.mxu0 0.0
    %3793 = vmatprep.subr.mxu0 0.0
    %3794 = vmatpush1.msra.mxu0 0.0
    %3795 = vmatprep.subr.mxu0 0.0
    %3796 = vmatpush1.msra.mxu0 0.0
    %3797 = vmatprep.subr.mxu0 0.0
    %3798 = vmatpush1.msra.mxu0 0.0
    %3799 = vmatprep.subr.mxu0 0.0
    %3800 = vmatpush1.msra.mxu0 0.0
    %3801 = vmatprep.subr.mxu0 0.0
    %3802 = vmatpush1.msra.mxu0 0.0
    %3803 = vmatprep.subr.mxu0 0.0
    %3804 = vmatpush1.msra.mxu0 0.0
    %3805 = vmatprep.subr.mxu0 0.0
    %3806 = vmatpush1.msra.mxu0 0.0
    %3807 = vmatprep.subr.mxu0 0.0
    %3808 = vmatpush1.msra.mxu0 0.0
    %3809 = vmatprep.subr.mxu0 0.0
    %3810 = vmatpush1.msra.mxu0 0.0
    %3811 = vmatprep.subr.mxu0 0.0
    %3812 = vmatpush1.msra.mxu0 0.0
    %3813 = vmatprep.subr.mxu0 0.0
    %3814 = vmatpush1.msra.mxu0 0.0
    %3815 = vmatprep.subr.mxu0 0.0
    %3816 = vmatpush1.msra.mxu0 0.0
    %3817 = vmatprep.subr.mxu0 0.0
    %3818 = vmatpush1.msra.mxu0 0.0
    %3819 = vmatprep.subr.mxu0 0.0
    %3820 = vmatpush1.msra.mxu0 0.0
    %3821 = vmatprep.subr.mxu0 0.0
    %3822 = vmatpush1.msra.mxu0 0.0
    %3823 = vmatprep.subr.mxu0 0.0
    %3824 = vmatpush1.msra.mxu0 0.0
    %3825 = vmatprep.subr.mxu0 0.0
    %3826 = vmatpush1.msra.mxu0 0.0
    %3827 = vmatprep.subr.mxu0 0.0
    %3828 = vmatpush1.msra.mxu0 0.0
    %3829 = vmatprep.subr.mxu0 0.0
    %3830 = vmatpush1.msra.mxu0 0.0
    %3831 = vmatprep.subr.mxu0 0.0
    %3832 = vmatpush1.msra.mxu0 0.0
    %3833 = vmatprep.subr.mxu0 0.0
    %3834 = vmatpush1.msra.mxu0 0.0
    %3835 = vmatprep.subr.mxu0 0.0
    %3836 = vmatpush1.msra.mxu0 0.0
    %3837 = vmatprep.subr.mxu0 0.0
    %3838 = vmatpush1.msra.mxu0 0.0
    %3839 = vmatprep.subr.mxu0 0.0
    %3840 = vmatpush1.msra.mxu0 0.0
    %3841 = vmatprep.subr.mxu0 0.0
    %3842 = vmatpush1.msra.mxu0 0.0
    %3843 = vmatprep.mubr.f32.mxu0 0.0
    %3844 = vmatmul.mubr.f32.gmra.mrb[0].mxu0 %v3777
    %v3845 = vpop.f32.mrb[0].mxu0
    %v3846 = vadd.f32 %v3771, %v3845
    %v3847 = vpop.f32.mrb[0].mxu0
    %3848 = vdwg.mxu0
    %v3849 = vld [vmem:[%s521] sm:$0x1]
    %v3851 = vlaneseq
    %v3852 = vshrl.u32 %v3851, 7
    %v3853 = vsub.s32 0, %v3852
    %v3854 = vrot.slane %v3849, %v3853
    %v3856 = vadd.f32 %v3846, %v3854
    %v3857 = vxor.u32 %v3856, 2147483648
    %v3858 = vmul.f32 %v3857, 1.442695
    %v3859 = vpow.pop %v3858
    %v3860 = vadd.f32 %v3859, 1.0
    %v3861 = vrcp.pop %v3860
    %v3862 = vmul.f32 1.0, %v3861
    %v3863 = vtanh.pop %v3856
    %v3864 = vmul.f32 %v3862, %v3320
    %3866 = vrot.lane.b32.xlu0 %v3863, 64
    %v3867 = vpop.permute.xlu0 %3866
    %v3869 = vmul.f32 %v3862, %v3867
    %3871 = vrot.lane.b32.xlu0 %v3869, 32
    %v3872 = vpop.permute.xlu0 %3871
    %v3874 = vadd.f32 %v3864, %v3872
    %v3875 = vtanh.pop %v3874
    %3877 = vrot.lane.b32.xlu0 %v3875, 64
    %v3878 = vpop.permute.xlu0 %3877
    %v3880 = vmul.f32 %v3862, %v3878
    %v3881 = vld [vmem:[%s5] sm:$0xff]
    %v3882 = vld [vmem:[%s5 + $0x8] sm:$0xff]
    %v3883 = vld [vmem:[%s5 + $0x10] sm:$0xff]
    %v3884 = vld [vmem:[%s5 + $0x18] sm:$0xff]
    %v3885 = vld [vmem:[%s6] sm:$0x1]
    %v3887 = vlaneseq
    %v3888 = vshrl.u32 %v3887, 7
    %v3889 = vsub.s32 0, %v3888
    %v3890 = vrot.slane %v3885, %v3889
    %3893 = vrot.lane.b32.xlu0 %v3880, 32
    %v3894 = vpop.permute.xlu0 %3893
    %v3895 = vsel %vm180, %v3894, 0
    %3897 = vmatprep.subr.mxu0 0.0
    %3898 = vmatpush1.msra.mxu0 %v3881
    %3899 = vmatprep.subr.mxu0 0.0
    %3900 = vmatpush1.msra.mxu0 %v3882
    %3901 = vmatprep.subr.mxu0 0.0
    %3902 = vmatpush1.msra.mxu0 %v3883
    %3903 = vmatprep.subr.mxu0 0.0
    %3904 = vmatpush1.msra.mxu0 %v3884
    %3905 = vmatprep.subr.mxu0 0.0
    %3906 = vmatpush1.msra.mxu0 0.0
    %3907 = vmatprep.subr.mxu0 0.0
    %3908 = vmatpush1.msra.mxu0 0.0
    %3909 = vmatprep.subr.mxu0 0.0
    %3910 = vmatpush1.msra.mxu0 0.0
    %3911 = vmatprep.subr.mxu0 0.0
    %3912 = vmatpush1.msra.mxu0 0.0
    %3913 = vmatprep.subr.mxu0 0.0
    %3914 = vmatpush1.msra.mxu0 0.0
    %3915 = vmatprep.subr.mxu0 0.0
    %3916 = vmatpush1.msra.mxu0 0.0
    %3917 = vmatprep.subr.mxu0 0.0
    %3918 = vmatpush1.msra.mxu0 0.0
    %3919 = vmatprep.subr.mxu0 0.0
    %3920 = vmatpush1.msra.mxu0 0.0
    %3921 = vmatprep.subr.mxu0 0.0
    %3922 = vmatpush1.msra.mxu0 0.0
    %3923 = vmatprep.subr.mxu0 0.0
    %3924 = vmatpush1.msra.mxu0 0.0
    %3925 = vmatprep.subr.mxu0 0.0
    %3926 = vmatpush1.msra.mxu0 0.0
    %3927 = vmatprep.subr.mxu0 0.0
    %3928 = vmatpush1.msra.mxu0 0.0
    %3929 = vmatprep.subr.mxu0 0.0
    %3930 = vmatpush1.msra.mxu0 0.0
    %3931 = vmatprep.subr.mxu0 0.0
    %3932 = vmatpush1.msra.mxu0 0.0
    %3933 = vmatprep.subr.mxu0 0.0
    %3934 = vmatpush1.msra.mxu0 0.0
    %3935 = vmatprep.subr.mxu0 0.0
    %3936 = vmatpush1.msra.mxu0 0.0
    %3937 = vmatprep.subr.mxu0 0.0
    %3938 = vmatpush1.msra.mxu0 0.0
    %3939 = vmatprep.subr.mxu0 0.0
    %3940 = vmatpush1.msra.mxu0 0.0
    %3941 = vmatprep.subr.mxu0 0.0
    %3942 = vmatpush1.msra.mxu0 0.0
    %3943 = vmatprep.subr.mxu0 0.0
    %3944 = vmatpush1.msra.mxu0 0.0
    %3945 = vmatprep.subr.mxu0 0.0
    %3946 = vmatpush1.msra.mxu0 0.0
    %3947 = vmatprep.subr.mxu0 0.0
    %3948 = vmatpush1.msra.mxu0 0.0
    %3949 = vmatprep.subr.mxu0 0.0
    %3950 = vmatpush1.msra.mxu0 0.0
    %3951 = vmatprep.subr.mxu0 0.0
    %3952 = vmatpush1.msra.mxu0 0.0
    %3953 = vmatprep.subr.mxu0 0.0
    %3954 = vmatpush1.msra.mxu0 0.0
    %3955 = vmatprep.subr.mxu0 0.0
    %3956 = vmatpush1.msra.mxu0 0.0
    %3957 = vmatprep.subr.mxu0 0.0
    %3958 = vmatpush1.msra.mxu0 0.0
    %3959 = vmatprep.subr.mxu0 0.0
    %3960 = vmatpush1.msra.mxu0 0.0
    %3961 = vmatprep.mubr.f32.mxu0 0.0
    %3962 = vmatmul.mubr.f32.gmra.mrb[0].mxu0 %v3895
    %v3963 = vpop.f32.mrb[0].mxu0
    %v3964 = vadd.f32 %v3890, %v3963
    %v3965 = vpop.f32.mrb[0].mxu0
    %3966 = vdwg.mxu0
    %s3967 = scalar_lea.vmem [#allocation7], 48
    %3968 = vst [vmem:[%s3967] sm:$0xff] %v3964
    %s3969 = sld [smem:[#allocation2 + $0xe]]
    %v3970 = vstv %s3969
    %vm3971 = vcmp.eq.s32.totalorder %v65, %v3970
    %vm3972 = vmand %vm73, %vm3971
    %v3973 = vsel %vm3972, 1.0, 0.0
    %v3974 = vadd.f32 %v3973, 0.0
    %s3975 = sld [smem:[#allocation2 + $0xf]]
    %v3976 = vstv %s3975
    %vm3977 = vcmp.eq.s32.totalorder %v65, %v3976
    %vm3978 = vmand %vm80, %vm3977
    %v3979 = vsel %vm3978, 1.0, 0.0
    %v3980 = vadd.f32 %v3974, %v3979
    %v3981 = vld [vmem:[%s1] sm:$0xff]
    %v3982 = vld [vmem:[%s1 + $0x8] sm:$0xff]
    %v3983 = vld [vmem:[%s1 + $0x10] sm:$0xff]
    %v3984 = vld [vmem:[%s1 + $0x18] sm:$0xff]
    %v3985 = vld [vmem:[%s1 + $0x20] sm:$0xff]
    %v3986 = vld [vmem:[%s1 + $0x28] sm:$0xff]
    %v3987 = vld [vmem:[%s1 + $0x30] sm:$0xff]
    %v3988 = vld [vmem:[%s1 + $0x38] sm:$0xff]
    %v3989 = vld [vmem:[%s1 + $0x40] sm:$0xff]
    %v3990 = vld [vmem:[%s1 + $0x48] sm:$0xff]
    %v3991 = vld [vmem:[%s1 + $0x50] sm:$0xff]
    %v3992 = vld [vmem:[%s1 + $0x58] sm:$0xff]
    %v3993 = vld [vmem:[%s1 + $0x60] sm:$0xff]
    %v3994 = vld [vmem:[%s1 + $0x68] sm:$0xff]
    %v3995 = vld [vmem:[%s1 + $0x70] sm:$0xff]
    %v3996 = vld [vmem:[%s1 + $0x78] sm:$0xff]
    %3997 = vmatprep.subr.mxu0 0.0
    %3998 = vmatpush1.msra.mxu0 %v3981
    %3999 = vmatprep.subr.mxu0 0.0
    %4000 = vmatpush1.msra.mxu0 %v3982
    %4001 = vmatprep.subr.mxu0 0.0
    %4002 = vmatpush1.msra.mxu0 %v3983
    %4003 = vmatprep.subr.mxu0 0.0
    %4004 = vmatpush1.msra.mxu0 %v3984
    %4005 = vmatprep.subr.mxu0 0.0
    %4006 = vmatpush1.msra.mxu0 %v3985
    %4007 = vmatprep.subr.mxu0 0.0
    %4008 = vmatpush1.msra.mxu0 %v3986
    %4009 = vmatprep.subr.mxu0 0.0
    %4010 = vmatpush1.msra.mxu0 %v3987
    %4011 = vmatprep.subr.mxu0 0.0
    %4012 = vmatpush1.msra.mxu0 %v3988
    %4013 = vmatprep.subr.mxu0 0.0
    %4014 = vmatpush1.msra.mxu0 %v3989
    %4015 = vmatprep.subr.mxu0 0.0
    %4016 = vmatpush1.msra.mxu0 %v3990
    %4017 = vmatprep.subr.mxu0 0.0
    %4018 = vmatpush1.msra.mxu0 %v3991
    %4019 = vmatprep.subr.mxu0 0.0
    %4020 = vmatpush1.msra.mxu0 %v3992
    %4021 = vmatprep.subr.mxu0 0.0
    %4022 = vmatpush1.msra.mxu0 %v3993
    %4023 = vmatprep.subr.mxu0 0.0
    %4024 = vmatpush1.msra.mxu0 %v3994
    %4025 = vmatprep.subr.mxu0 0.0
    %4026 = vmatpush1.msra.mxu0 %v3995
    %4027 = vmatprep.subr.mxu0 0.0
    %4028 = vmatpush1.msra.mxu0 %v3996
    %4029 = vmatprep.subr.mxu0 0.0
    %4030 = vmatpush1.msra.mxu0 0.0
    %4031 = vmatprep.subr.mxu0 0.0
    %4032 = vmatpush1.msra.mxu0 0.0
    %4033 = vmatprep.subr.mxu0 0.0
    %4034 = vmatpush1.msra.mxu0 0.0
    %4035 = vmatprep.subr.mxu0 0.0
    %4036 = vmatpush1.msra.mxu0 0.0
    %4037 = vmatprep.subr.mxu0 0.0
    %4038 = vmatpush1.msra.mxu0 0.0
    %4039 = vmatprep.subr.mxu0 0.0
    %4040 = vmatpush1.msra.mxu0 0.0
    %4041 = vmatprep.subr.mxu0 0.0
    %4042 = vmatpush1.msra.mxu0 0.0
    %4043 = vmatprep.subr.mxu0 0.0
    %4044 = vmatpush1.msra.mxu0 0.0
    %4045 = vmatprep.subr.mxu0 0.0
    %4046 = vmatpush1.msra.mxu0 0.0
    %4047 = vmatprep.subr.mxu0 0.0
    %4048 = vmatpush1.msra.mxu0 0.0
    %4049 = vmatprep.subr.mxu0 0.0
    %4050 = vmatpush1.msra.mxu0 0.0
    %4051 = vmatprep.subr.mxu0 0.0
    %4052 = vmatpush1.msra.mxu0 0.0
    %4053 = vmatprep.subr.mxu0 0.0
    %4054 = vmatpush1.msra.mxu0 0.0
    %4055 = vmatprep.subr.mxu0 0.0
    %4056 = vmatpush1.msra.mxu0 0.0
    %4057 = vmatprep.subr.mxu0 0.0
    %4058 = vmatpush1.msra.mxu0 0.0
    %4059 = vmatprep.subr.mxu0 0.0
    %4060 = vmatpush1.msra.mxu0 0.0
    %4061 = vmatprep.mubr.f32.mxu0 0.0
    %4062 = vmatmul.mubr.f32.gmra.mrb[0].mxu0 %v3980
    %v4063 = vpop.f32.mrb[0].mxu0
    %v4064 = vadd.f32 0.0, %v4063
    %v4065 = vpop.f32.mrb[0].mxu0
    %4066 = vdwg.mxu0
    %v4067 = vld [vmem:[%s2] sm:$0xff]
    %v4068 = vld [vmem:[%s2 + $0x8] sm:$0xff]
    %v4069 = vld [vmem:[%s2 + $0x10] sm:$0xff]
    %v4070 = vld [vmem:[%s2 + $0x18] sm:$0xff]
    %v4071 = vld [vmem:[%s3] sm:$0xff]
    %v4072 = vld [vmem:[%s3 + $0x8] sm:$0xff]
    %v4073 = vld [vmem:[%s3 + $0x10] sm:$0xff]
    %v4074 = vld [vmem:[%s3 + $0x18] sm:$0xff]
    %4075 = vmatprep.subr.mxu0 0.0
    %4076 = vmatpush1.msra.mxu0 %v4071
    %4077 = vmatprep.subr.mxu0 0.0
    %4078 = vmatpush1.msra.mxu0 %v4072
    %4079 = vmatprep.subr.mxu0 0.0
    %4080 = vmatpush1.msra.mxu0 %v4073
    %4081 = vmatprep.subr.mxu0 0.0
    %4082 = vmatpush1.msra.mxu0 %v4074
    %4083 = vmatprep.subr.mxu0 0.0
    %4084 = vmatpush1.msra.mxu0 0.0
    %4085 = vmatprep.subr.mxu0 0.0
    %4086 = vmatpush1.msra.mxu0 0.0
    %4087 = vmatprep.subr.mxu0 0.0
    %4088 = vmatpush1.msra.mxu0 0.0
    %4089 = vmatprep.subr.mxu0 0.0
    %4090 = vmatpush1.msra.mxu0 0.0
    %4091 = vmatprep.subr.mxu0 0.0
    %4092 = vmatpush1.msra.mxu0 0.0
    %4093 = vmatprep.subr.mxu0 0.0
    %4094 = vmatpush1.msra.mxu0 0.0
    %4095 = vmatprep.subr.mxu0 0.0
    %4096 = vmatpush1.msra.mxu0 0.0
    %4097 = vmatprep.subr.mxu0 0.0
    %4098 = vmatpush1.msra.mxu0 0.0
    %4099 = vmatprep.subr.mxu0 0.0
    %4100 = vmatpush1.msra.mxu0 0.0
    %4101 = vmatprep.subr.mxu0 0.0
    %4102 = vmatpush1.msra.mxu0 0.0
    %4103 = vmatprep.subr.mxu0 0.0
    %4104 = vmatpush1.msra.mxu0 0.0
    %4105 = vmatprep.subr.mxu0 0.0
    %4106 = vmatpush1.msra.mxu0 0.0
    %4107 = vmatprep.subr.mxu0 0.0
    %4108 = vmatpush1.msra.mxu0 0.0
    %4109 = vmatprep.subr.mxu0 0.0
    %4110 = vmatpush1.msra.mxu0 0.0
    %4111 = vmatprep.subr.mxu0 0.0
    %4112 = vmatpush1.msra.mxu0 0.0
    %4113 = vmatprep.subr.mxu0 0.0
    %4114 = vmatpush1.msra.mxu0 0.0
    %4115 = vmatprep.subr.mxu0 0.0
    %4116 = vmatpush1.msra.mxu0 0.0
    %4117 = vmatprep.subr.mxu0 0.0
    %4118 = vmatpush1.msra.mxu0 0.0
    %4119 = vmatprep.subr.mxu0 0.0
    %4120 = vmatpush1.msra.mxu0 0.0
    %4121 = vmatprep.subr.mxu0 0.0
    %4122 = vmatpush1.msra.mxu0 0.0
    %4123 = vmatprep.subr.mxu0 0.0
    %4124 = vmatpush1.msra.mxu0 0.0
    %4125 = vmatprep.subr.mxu0 0.0
    %4126 = vmatpush1.msra.mxu0 0.0
    %4127 = vmatprep.subr.mxu0 0.0
    %4128 = vmatpush1.msra.mxu0 0.0
    %4129 = vmatprep.subr.mxu0 0.0
    %4130 = vmatpush1.msra.mxu0 0.0
    %4131 = vmatprep.subr.mxu0 0.0
    %4132 = vmatpush1.msra.mxu0 0.0
    %4133 = vmatprep.subr.mxu0 0.0
    %4134 = vmatpush1.msra.mxu0 0.0
    %4135 = vmatprep.subr.mxu0 0.0
    %4136 = vmatpush1.msra.mxu0 0.0
    %4137 = vmatprep.subr.mxu0 0.0
    %4138 = vmatpush1.msra.mxu0 0.0
    %4139 = vmatprep.mubr.f32.mxu0 0.0
    %4140 = vmatmul.mubr.f32.gmra.mrb[0].mxu0 %v3777
    %v4141 = vpop.f32.mrb[0].mxu0
    %v4142 = vadd.f32 0.0, %v4141
    %v4143 = vpop.f32.mrb[0].mxu0
    %4144 = vdwg.mxu0
    %v4146 = vsel %vm180, %v4064, 0
    %4148 = vmatprep.subr.mxu0 0.0
    %4149 = vmatpush1.msra.mxu0 %v4067
    %4150 = vmatprep.subr.mxu0 0.0
    %4151 = vmatpush1.msra.mxu0 %v4068
    %4152 = vmatprep.subr.mxu0 0.0
    %4153 = vmatpush1.msra.mxu0 %v4069
    %4154 = vmatprep.subr.mxu0 0.0
    %4155 = vmatpush1.msra.mxu0 %v4070
    %4156 = vmatprep.subr.mxu0 0.0
    %4157 = vmatpush1.msra.mxu0 0.0
    %4158 = vmatprep.subr.mxu0 0.0
    %4159 = vmatpush1.msra.mxu0 0.0
    %4160 = vmatprep.subr.mxu0 0.0
    %4161 = vmatpush1.msra.mxu0 0.0
    %4162 = vmatprep.subr.mxu0 0.0
    %4163 = vmatpush1.msra.mxu0 0.0
    %4164 = vmatprep.subr.mxu0 0.0
    %4165 = vmatpush1.msra.mxu0 0.0
    %4166 = vmatprep.subr.mxu0 0.0
    %4167 = vmatpush1.msra.mxu0 0.0
    %4168 = vmatprep.subr.mxu0 0.0
    %4169 = vmatpush1.msra.mxu0 0.0
    %4170 = vmatprep.subr.mxu0 0.0
    %4171 = vmatpush1.msra.mxu0 0.0
    %4172 = vmatprep.subr.mxu0 0.0
    %4173 = vmatpush1.msra.mxu0 0.0
    %4174 = vmatprep.subr.mxu0 0.0
    %4175 = vmatpush1.msra.mxu0 0.0
    %4176 = vmatprep.subr.mxu0 0.0
    %4177 = vmatpush1.msra.mxu0 0.0
    %4178 = vmatprep.subr.mxu0 0.0
    %4179 = vmatpush1.msra.mxu0 0.0
    %4180 = vmatprep.subr.mxu0 0.0
    %4181 = vmatpush1.msra.mxu0 0.0
    %4182 = vmatprep.subr.mxu0 0.0
    %4183 = vmatpush1.msra.mxu0 0.0
    %4184 = vmatprep.subr.mxu0 0.0
    %4185 = vmatpush1.msra.mxu0 0.0
    %4186 = vmatprep.subr.mxu0 0.0
    %4187 = vmatpush1.msra.mxu0 0.0
    %4188 = vmatprep.subr.mxu0 0.0
    %4189 = vmatpush1.msra.mxu0 0.0
    %4190 = vmatprep.subr.mxu0 0.0
    %4191 = vmatpush1.msra.mxu0 0.0
    %4192 = vmatprep.subr.mxu0 0.0
    %4193 = vmatpush1.msra.mxu0 0.0
    %4194 = vmatprep.subr.mxu0 0.0
    %4195 = vmatpush1.msra.mxu0 0.0
    %4196 = vmatprep.subr.mxu0 0.0
    %4197 = vmatpush1.msra.mxu0 0.0
    %4198 = vmatprep.subr.mxu0 0.0
    %4199 = vmatpush1.msra.mxu0 0.0
    %4200 = vmatprep.subr.mxu0 0.0
    %4201 = vmatpush1.msra.mxu0 0.0
    %4202 = vmatprep.subr.mxu0 0.0
    %4203 = vmatpush1.msra.mxu0 0.0
    %4204 = vmatprep.subr.mxu0 0.0
    %4205 = vmatpush1.msra.mxu0 0.0
    %4206 = vmatprep.subr.mxu0 0.0
    %4207 = vmatpush1.msra.mxu0 0.0
    %4208 = vmatprep.subr.mxu0 0.0
    %4209 = vmatpush1.msra.mxu0 0.0
    %4210 = vmatprep.subr.mxu0 0.0
    %4211 = vmatpush1.msra.mxu0 0.0
    %4212 = vmatprep.mubr.f32.mxu0 0.0
    %4213 = vmatmul.mubr.f32.gmra.mrb[0].mxu0 %v4146
    %v4214 = vpop.f32.mrb[0].mxu0
    %v4215 = vadd.f32 %v4142, %v4214
    %v4216 = vpop.f32.mrb[0].mxu0
    %4217 = vdwg.mxu0
    %v4218 = vld [vmem:[%s4] sm:$0x1]
    %v4220 = vlaneseq
    %v4221 = vshrl.u32 %v4220, 7
    %v4222 = vsub.s32 0, %v4221
    %v4223 = vrot.slane %v4218, %v4222
    %v4225 = vadd.f32 %v4215, %v4223
    %v4226 = vxor.u32 %v4225, 2147483648
    %v4227 = vmul.f32 %v4226, 1.442695
    %v4228 = vpow.pop %v4227
    %v4229 = vadd.f32 %v4228, 1.0
    %v4230 = vrcp.pop %v4229
    %v4231 = vmul.f32 1.0, %v4230
    %v4232 = vtanh.pop %v4225
    %v4233 = vmul.f32 %v4231, %v3689
    %4235 = vrot.lane.b32.xlu0 %v4232, 64
    %v4236 = vpop.permute.xlu0 %4235
    %v4238 = vmul.f32 %v4231, %v4236
    %4240 = vrot.lane.b32.xlu0 %v4238, 32
    %v4241 = vpop.permute.xlu0 %4240
    %v4243 = vadd.f32 %v4233, %v4241
    %v4244 = vtanh.pop %v4243
    %4246 = vrot.lane.b32.xlu0 %v4244, 64
    %v4247 = vpop.permute.xlu0 %4246
    %v4249 = vmul.f32 %v4231, %v4247
    %v4250 = vld [vmem:[%s363] sm:$0xff]
    %v4251 = vld [vmem:[%s363 + $0x8] sm:$0xff]
    %v4252 = vld [vmem:[%s363 + $0x10] sm:$0xff]
    %v4253 = vld [vmem:[%s363 + $0x18] sm:$0xff]
    %v4254 = vld [vmem:[%s368] sm:$0xff]
    %v4255 = vld [vmem:[%s368 + $0x8] sm:$0xff]
    %v4256 = vld [vmem:[%s368 + $0x10] sm:$0xff]
    %v4257 = vld [vmem:[%s368 + $0x18] sm:$0xff]
    %4258 = vmatprep.subr.mxu0 0.0
    %4259 = vmatpush1.msra.mxu0 %v4254
    %4260 = vmatprep.subr.mxu0 0.0
    %4261 = vmatpush1.msra.mxu0 %v4255
    %4262 = vmatprep.subr.mxu0 0.0
    %4263 = vmatpush1.msra.mxu0 %v4256
    %4264 = vmatprep.subr.mxu0 0.0
    %4265 = vmatpush1.msra.mxu0 %v4257
    %4266 = vmatprep.subr.mxu0 0.0
    %4267 = vmatpush1.msra.mxu0 0.0
    %4268 = vmatprep.subr.mxu0 0.0
    %4269 = vmatpush1.msra.mxu0 0.0
    %4270 = vmatprep.subr.mxu0 0.0
    %4271 = vmatpush1.msra.mxu0 0.0
    %4272 = vmatprep.subr.mxu0 0.0
    %4273 = vmatpush1.msra.mxu0 0.0
    %4274 = vmatprep.subr.mxu0 0.0
    %4275 = vmatpush1.msra.mxu0 0.0
    %4276 = vmatprep.subr.mxu0 0.0
    %4277 = vmatpush1.msra.mxu0 0.0
    %4278 = vmatprep.subr.mxu0 0.0
    %4279 = vmatpush1.msra.mxu0 0.0
    %4280 = vmatprep.subr.mxu0 0.0
    %4281 = vmatpush1.msra.mxu0 0.0
    %4282 = vmatprep.subr.mxu0 0.0
    %4283 = vmatpush1.msra.mxu0 0.0
    %4284 = vmatprep.subr.mxu0 0.0
    %4285 = vmatpush1.msra.mxu0 0.0
    %4286 = vmatprep.subr.mxu0 0.0
    %4287 = vmatpush1.msra.mxu0 0.0
    %4288 = vmatprep.subr.mxu0 0.0
    %4289 = vmatpush1.msra.mxu0 0.0
    %4290 = vmatprep.subr.mxu0 0.0
    %4291 = vmatpush1.msra.mxu0 0.0
    %4292 = vmatprep.subr.mxu0 0.0
    %4293 = vmatpush1.msra.mxu0 0.0
    %4294 = vmatprep.subr.mxu0 0.0
    %4295 = vmatpush1.msra.mxu0 0.0
    %4296 = vmatprep.subr.mxu0 0.0
    %4297 = vmatpush1.msra.mxu0 0.0
    %4298 = vmatprep.subr.mxu0 0.0
    %4299 = vmatpush1.msra.mxu0 0.0
    %4300 = vmatprep.subr.mxu0 0.0
    %4301 = vmatpush1.msra.mxu0 0.0
    %4302 = vmatprep.subr.mxu0 0.0
    %4303 = vmatpush1.msra.mxu0 0.0
    %4304 = vmatprep.subr.mxu0 0.0
    %4305 = vmatpush1.msra.mxu0 0.0
    %4306 = vmatprep.subr.mxu0 0.0
    %4307 = vmatpush1.msra.mxu0 0.0
    %4308 = vmatprep.subr.mxu0 0.0
    %4309 = vmatpush1.msra.mxu0 0.0
    %4310 = vmatprep.subr.mxu0 0.0
    %4311 = vmatpush1.msra.mxu0 0.0
    %4312 = vmatprep.subr.mxu0 0.0
    %4313 = vmatpush1.msra.mxu0 0.0
    %4314 = vmatprep.subr.mxu0 0.0
    %4315 = vmatpush1.msra.mxu0 0.0
    %4316 = vmatprep.subr.mxu0 0.0
    %4317 = vmatpush1.msra.mxu0 0.0
    %4318 = vmatprep.subr.mxu0 0.0
    %4319 = vmatpush1.msra.mxu0 0.0
    %4320 = vmatprep.subr.mxu0 0.0
    %4321 = vmatpush1.msra.mxu0 0.0
    %4322 = vmatprep.mubr.f32.mxu0 0.0
    %4323 = vmatmul.mubr.f32.gmra.mrb[0].mxu0 %v3895
    %v4324 = vpop.f32.mrb[0].mxu0
    %v4325 = vadd.f32 0.0, %v4324
    %v4326 = vpop.f32.mrb[0].mxu0
    %4327 = vdwg.mxu0
    %4329 = vrot.lane.b32.xlu0 %v4249, 32
    %v4330 = vpop.permute.xlu0 %4329
    %v4331 = vsel %vm180, %v4330, 0
    %4333 = vmatprep.subr.mxu0 0.0
    %4334 = vmatpush1.msra.mxu0 %v4250
    %4335 = vmatprep.subr.mxu0 0.0
    %4336 = vmatpush1.msra.mxu0 %v4251
    %4337 = vmatprep.subr.mxu0 0.0
    %4338 = vmatpush1.msra.mxu0 %v4252
    %4339 = vmatprep.subr.mxu0 0.0
    %4340 = vmatpush1.msra.mxu0 %v4253
    %4341 = vmatprep.subr.mxu0 0.0
    %4342 = vmatpush1.msra.mxu0 0.0
    %4343 = vmatprep.subr.mxu0 0.0
    %4344 = vmatpush1.msra.mxu0 0.0
    %4345 = vmatprep.subr.mxu0 0.0
    %4346 = vmatpush1.msra.mxu0 0.0
    %4347 = vmatprep.subr.mxu0 0.0
    %4348 = vmatpush1.msra.mxu0 0.0
    %4349 = vmatprep.subr.mxu0 0.0
    %4350 = vmatpush1.msra.mxu0 0.0
    %4351 = vmatprep.subr.mxu0 0.0
    %4352 = vmatpush1.msra.mxu0 0.0
    %4353 = vmatprep.subr.mxu0 0.0
    %4354 = vmatpush1.msra.mxu0 0.0
    %4355 = vmatprep.subr.mxu0 0.0
    %4356 = vmatpush1.msra.mxu0 0.0
    %4357 = vmatprep.subr.mxu0 0.0
    %4358 = vmatpush1.msra.mxu0 0.0
    %4359 = vmatprep.subr.mxu0 0.0
    %4360 = vmatpush1.msra.mxu0 0.0
    %4361 = vmatprep.subr.mxu0 0.0
    %4362 = vmatpush1.msra.mxu0 0.0
    %4363 = vmatprep.subr.mxu0 0.0
    %4364 = vmatpush1.msra.mxu0 0.0
    %4365 = vmatprep.subr.mxu0 0.0
    %4366 = vmatpush1.msra.mxu0 0.0
    %4367 = vmatprep.subr.mxu0 0.0
    %4368 = vmatpush1.msra.mxu0 0.0
    %4369 = vmatprep.subr.mxu0 0.0
    %4370 = vmatpush1.msra.mxu0 0.0
    %4371 = vmatprep.subr.mxu0 0.0
    %4372 = vmatpush1.msra.mxu0 0.0
    %4373 = vmatprep.subr.mxu0 0.0
    %4374 = vmatpush1.msra.mxu0 0.0
    %4375 = vmatprep.subr.mxu0 0.0
    %4376 = vmatpush1.msra.mxu0 0.0
    %4377 = vmatprep.subr.mxu0 0.0
    %4378 = vmatpush1.msra.mxu0 0.0
    %4379 = vmatprep.subr.mxu0 0.0
    %4380 = vmatpush1.msra.mxu0 0.0
    %4381 = vmatprep.subr.mxu0 0.0
    %4382 = vmatpush1.msra.mxu0 0.0
    %4383 = vmatprep.subr.mxu0 0.0
    %4384 = vmatpush1.msra.mxu0 0.0
    %4385 = vmatprep.subr.mxu0 0.0
    %4386 = vmatpush1.msra.mxu0 0.0
    %4387 = vmatprep.subr.mxu0 0.0
    %4388 = vmatpush1.msra.mxu0 0.0
    %4389 = vmatprep.subr.mxu0 0.0
    %4390 = vmatpush1.msra.mxu0 0.0
    %4391 = vmatprep.subr.mxu0 0.0
    %4392 = vmatpush1.msra.mxu0 0.0
    %4393 = vmatprep.subr.mxu0 0.0
    %4394 = vmatpush1.msra.mxu0 0.0
    %4395 = vmatprep.subr.mxu0 0.0
    %4396 = vmatpush1.msra.mxu0 0.0
    %4397 = vmatprep.mubr.f32.mxu0 0.0
    %4398 = vmatmul.mubr.f32.gmra.mrb[0].mxu0 %v4331
    %v4399 = vpop.f32.mrb[0].mxu0
    %v4400 = vadd.f32 %v4325, %v4399
    %v4401 = vpop.f32.mrb[0].mxu0
    %4402 = vdwg.mxu0
    %v4403 = vld [vmem:[%s521] sm:$0x1]
    %v4405 = vlaneseq
    %v4406 = vshrl.u32 %v4405, 7
    %v4407 = vsub.s32 0, %v4406
    %v4408 = vrot.slane %v4403, %v4407
    %v4410 = vadd.f32 %v4400, %v4408
    %v4411 = vxor.u32 %v4410, 2147483648
    %v4412 = vmul.f32 %v4411, 1.442695
    %v4413 = vpow.pop %v4412
    %v4414 = vadd.f32 %v4413, 1.0
    %v4415 = vrcp.pop %v4414
    %v4416 = vmul.f32 1.0, %v4415
    %v4417 = vtanh.pop %v4410
    %v4418 = vmul.f32 %v4416, %v3874
    %4420 = vrot.lane.b32.xlu0 %v4417, 64
    %v4421 = vpop.permute.xlu0 %4420
    %v4423 = vmul.f32 %v4416, %v4421
    %4425 = vrot.lane.b32.xlu0 %v4423, 32
    %v4426 = vpop.permute.xlu0 %4425
    %v4428 = vadd.f32 %v4418, %v4426
    %v4429 = vtanh.pop %v4428
    %4431 = vrot.lane.b32.xlu0 %v4429, 64
    %v4432 = vpop.permute.xlu0 %4431
    %v4434 = vmul.f32 %v4416, %v4432
    %v4435 = vld [vmem:[%s5] sm:$0xff]
    %v4436 = vld [vmem:[%s5 + $0x8] sm:$0xff]
    %v4437 = vld [vmem:[%s5 + $0x10] sm:$0xff]
    %v4438 = vld [vmem:[%s5 + $0x18] sm:$0xff]
    %v4439 = vld [vmem:[%s6] sm:$0x1]
    %v4441 = vlaneseq
    %v4442 = vshrl.u32 %v4441, 7
    %v4443 = vsub.s32 0, %v4442
    %v4444 = vrot.slane %v4439, %v4443
    %4447 = vrot.lane.b32.xlu0 %v4434, 32
    %v4448 = vpop.permute.xlu0 %4447
    %v4449 = vsel %vm180, %v4448, 0
    %4451 = vmatprep.subr.mxu0 0.0
    %4452 = vmatpush1.msra.mxu0 %v4435
    %4453 = vmatprep.subr.mxu0 0.0
    %4454 = vmatpush1.msra.mxu0 %v4436
    %4455 = vmatprep.subr.mxu0 0.0
    %4456 = vmatpush1.msra.mxu0 %v4437
    %4457 = vmatprep.subr.mxu0 0.0
    %4458 = vmatpush1.msra.mxu0 %v4438
    %4459 = vmatprep.subr.mxu0 0.0
    %4460 = vmatpush1.msra.mxu0 0.0
    %4461 = vmatprep.subr.mxu0 0.0
    %4462 = vmatpush1.msra.mxu0 0.0
    %4463 = vmatprep.subr.mxu0 0.0
    %4464 = vmatpush1.msra.mxu0 0.0
    %4465 = vmatprep.subr.mxu0 0.0
    %4466 = vmatpush1.msra.mxu0 0.0
    %4467 = vmatprep.subr.mxu0 0.0
    %4468 = vmatpush1.msra.mxu0 0.0
    %4469 = vmatprep.subr.mxu0 0.0
    %4470 = vmatpush1.msra.mxu0 0.0
    %4471 = vmatprep.subr.mxu0 0.0
    %4472 = vmatpush1.msra.mxu0 0.0
    %4473 = vmatprep.subr.mxu0 0.0
    %4474 = vmatpush1.msra.mxu0 0.0
    %4475 = vmatprep.subr.mxu0 0.0
    %4476 = vmatpush1.msra.mxu0 0.0
    %4477 = vmatprep.subr.mxu0 0.0
    %4478 = vmatpush1.msra.mxu0 0.0
    %4479 = vmatprep.subr.mxu0 0.0
    %4480 = vmatpush1.msra.mxu0 0.0
    %4481 = vmatprep.subr.mxu0 0.0
    %4482 = vmatpush1.msra.mxu0 0.0
    %4483 = vmatprep.subr.mxu0 0.0
    %4484 = vmatpush1.msra.mxu0 0.0
    %4485 = vmatprep.subr.mxu0 0.0
    %4486 = vmatpush1.msra.mxu0 0.0
    %4487 = vmatprep.subr.mxu0 0.0
    %4488 = vmatpush1.msra.mxu0 0.0
    %4489 = vmatprep.subr.mxu0 0.0
    %4490 = vmatpush1.msra.mxu0 0.0
    %4491 = vmatprep.subr.mxu0 0.0
    %4492 = vmatpush1.msra.mxu0 0.0
    %4493 = vmatprep.subr.mxu0 0.0
    %4494 = vmatpush1.msra.mxu0 0.0
    %4495 = vmatprep.subr.mxu0 0.0
    %4496 = vmatpush1.msra.mxu0 0.0
    %4497 = vmatprep.subr.mxu0 0.0
    %4498 = vmatpush1.msra.mxu0 0.0
    %4499 = vmatprep.subr.mxu0 0.0
    %4500 = vmatpush1.msra.mxu0 0.0
    %4501 = vmatprep.subr.mxu0 0.0
    %4502 = vmatpush1.msra.mxu0 0.0
    %4503 = vmatprep.subr.mxu0 0.0
    %4504 = vmatpush1.msra.mxu0 0.0
    %4505 = vmatprep.subr.mxu0 0.0
    %4506 = vmatpush1.msra.mxu0 0.0
    %4507 = vmatprep.subr.mxu0 0.0
    %4508 = vmatpush1.msra.mxu0 0.0
    %4509 = vmatprep.subr.mxu0 0.0
    %4510 = vmatpush1.msra.mxu0 0.0
    %4511 = vmatprep.subr.mxu0 0.0
    %4512 = vmatpush1.msra.mxu0 0.0
    %4513 = vmatprep.subr.mxu0 0.0
    %4514 = vmatpush1.msra.mxu0 0.0
    %4515 = vmatprep.mubr.f32.mxu0 0.0
    %4516 = vmatmul.mubr.f32.gmra.mrb[0].mxu0 %v4449
    %v4517 = vpop.f32.mrb[0].mxu0
    %v4518 = vadd.f32 %v4444, %v4517
    %v4519 = vpop.f32.mrb[0].mxu0
    %4520 = vdwg.mxu0
    %s4521 = scalar_lea.vmem [#allocation7], 56
    %4522 = vst [vmem:[%s4521] sm:$0xff] %v4518
    %4524 = vst.msk [vmem:[#allocation8] sm:$0xff] %vm180, %v4330
    %4526 = vrot.lane.b32.xlu0 %v4243, 96
    %v4527 = vpop.permute.xlu0 %4526
    %4529 = vst.msk [vmem:[#allocation10] sm:$0xff] %vm180, %v4527
    %s4531 = scalar_lea.vmem [#allocation8], 8
    %4532 = vst.msk [vmem:[%s4531] sm:$0xff] %vm180, %v4448
    %4534 = vrot.lane.b32.xlu0 %v4428, 96
    %v4535 = vpop.permute.xlu0 %4534
    %s4537 = scalar_lea.vmem [#allocation10], 8
    %4538 = vst.msk [vmem:[%s4537] sm:$0xff] %vm180, %v4535
    // Predicated region
    $region46: #{tpu_custom_call.1} parent=1 // pred_check
      _
    $region47: #{tpu_custom_call.1} parent=1 // pred_check_branch
      %4540 = sbr.rel (0) target = $region49
    $region48: #{tpu_custom_call.1} parent=1 // pred_region
      %s4542 = ssub.s32 1024, 1024
      %4543 = vsyncadd [#allocation4], %s4542
      %s4544 = sshll.u32 [#allocation7], 4
      %s4545 = int_to_ptr.vmem [resolvable:$true] %s4544
      %4550 = dma.vmem_to_hbm [thread:$0]  %s4545, 1024, %s9, [#allocation4], 128, 128, 8
    $region49: #{tpu_custom_call.1} parent=1 // pred_fallthru
      _
    // Predicated region
    $region50: #{tpu_custom_call.1} parent=1 // pred_check
      _
    $region51: #{tpu_custom_call.1} parent=1 // pred_check_branch
      %4552 = sbr.rel (0) target = $region53
    $region52: #{tpu_custom_call.1} parent=1 // pred_region
      %s4554 = ssub.s32 256, 256
      %4555 = vsyncadd [#allocation9], %s4554
      %s4556 = sshll.u32 [#allocation8], 4
      %s4557 = int_to_ptr.vmem [resolvable:$true] %s4556
      %4562 = dma.vmem_to_hbm [thread:$0]  %s4557, 256, %s10, [#allocation9], 128, 128, 8
    $region53: #{tpu_custom_call.1} parent=1 // pred_fallthru
      _
    // Predicated region
    $region54: #{tpu_custom_call.1} parent=1 // pred_check
      _
    $region55: #{tpu_custom_call.1} parent=1 // pred_check_branch
      %4564 = sbr.rel (0) target = $region57
    $region56: #{tpu_custom_call.1} parent=1 // pred_region
      %s4566 = ssub.s32 256, 256
      %4567 = vsyncadd [#allocation9], %s4566
      %s4568 = sshll.u32 [#allocation10], 4
      %s4569 = int_to_ptr.vmem [resolvable:$true] %s4568
      %4574 = dma.vmem_to_hbm [thread:$0]  %s4569, 256, %s11, [#allocation9], 128, 128, 8
    $region57: #{tpu_custom_call.1} parent=1 // pred_fallthru
      _
    // Predicated region
    $region58: #{tpu_custom_call.1} parent=1 // pred_check
      _
    $region59: #{tpu_custom_call.1} parent=1 // pred_check_branch
      %4576 = sbr.rel (0) target = $region61
    $region60: #{tpu_custom_call.1} parent=1 // pred_region
      %4577 = dma.done [#allocation4], 1024
    $region61: #{tpu_custom_call.1} parent=1 // pred_fallthru
      _
    // Predicated region
    $region62: #{tpu_custom_call.1} parent=1 // pred_check
      _
    $region63: #{tpu_custom_call.1} parent=1 // pred_check_branch
      %4579 = sbr.rel (0) target = $region65
    $region64: #{tpu_custom_call.1} parent=1 // pred_region
      %4580 = dma.done [#allocation9], 256
    $region65: #{tpu_custom_call.1} parent=1 // pred_fallthru
      _
    // Predicated region
    $region66: #{tpu_custom_call.1} parent=1 // pred_check
      _
    $region67: #{tpu_custom_call.1} parent=1 // pred_check_branch
      %4582 = sbr.rel (0) target = $region69
    $region68: #{tpu_custom_call.1} parent=1 // pred_region
      %4583 = dma.done [#allocation9], 256
    $region69: #{tpu_custom_call.1} parent=1 // pred_fallthru
      _
    %4584 = vsyncpa [#allocation3], 1
    %4585 = vsyncpa [#allocation4], 1
    %4586 = vsyncpa [#allocation9], 1
    %4587 = vsyncpa [#allocation5], 1

</llo_original>
